<compile_context>
chip_gen: v6e
topology: v6e:2x2x1
jax: 0.10.0
libtpu: 0.0.40
codegen_flags: <defaults>
</compile_context>

<pallas_src>
import jax
import jax.numpy as jnp
from jax import lax
from jax.experimental import pallas as pl
from jax.experimental.pallas import tpu as pltpu
import numpy as np

# ---------------- model hyperparameters (match the PyTorch module) ----------------
INPUT_SIZE = 1
HIDDEN_SIZE = 64
NUM_LAYERS = 2        # module hardcodes 2 layers; kernel implements both explicitly
NUM_CLASSES = 3
BATCH = 2
SEQ = 8

GATE = 128            # lane-aligned padded gate width (>= HIDDEN_SIZE)
G3 = 3 * GATE


def gru_fc_kernel(x_ref,
                  wih0_ref, whh0_ref, bg0_ref, bhn0_ref,
                  w1_ref, brz1_ref, bxn1_ref, bhn1_ref,
                  wfc_ref, bfc_ref,
                  out_ref):
    """2-layer GRU over the full sequence + final Linear, all VMEM-resident.

    x_ref:    (T, B, 1)   time-major input
    wih0:     (1, 3G)     layer-0 input weights, gate-padded to 128 lanes/gate
    whh0:     (G, 3G)     layer-0 recurrent weights (rows >= H are zero)
    bg0:      (1, 3G)     layer-0 bias: (b_ih + b_hh) for r,z ; b_ih for n
    bhn0:     (1, G)      layer-0 b_hh for the n gate (must stay inside r*(...))
    w1:       (2G, 4G)    layer-1 packed weights:
                            cols 0:2G   = stacked [W_ih1_rz ; W_hh1_rz] (summed by matmul)
                            cols 2G:3G  = [W_ih1_n ; 0]
                            cols 3G:4G  = [0 ; W_hh1_n]
    brz1:     (1, 2G)     layer-1 (b_ih + b_hh) for r,z
    bxn1:     (1, G)      layer-1 b_ih for n
    bhn1:     (1, G)      layer-1 b_hh for n
    wfc:      (G, G)      FC weights, lane-dense (rows >= H, cols >= C are zero)
    bfc:      (1, G)
    out_ref:  (B, G)      lane-dense output; wrapper slices [:, :NUM_CLASSES]
    """
    T, B, _ = x_ref.shape
    G = GATE

    # ---- hoisted layer-0 input projection (I == 1 -> pure VPU broadcast) ---------
    # gx0_all[t] = x[t] * W_ih0 + bg0   for all timesteps, computed once.
    gx0_all = x_ref[...] * wih0_ref[...][None] + bg0_ref[...][None]      # (T, B, 3G)

    # ---- biases pre-broadcast once (JAX does not CSE broadcast_in_dim) -----------
    bhn0 = jnp.broadcast_to(bhn0_ref[...], (B, G))
    brz1 = jnp.broadcast_to(brz1_ref[...], (B, 2 * G))
    bxn1 = jnp.broadcast_to(bxn1_ref[...], (B, G))
    bhn1 = jnp.broadcast_to(bhn1_ref[...], (B, G))

    whh0 = whh0_ref[...]
    w1 = w1_ref[...]

    def gru_update(pre_rz, pre_nx, pre_nh, h_prev):
        # PyTorch gate order (r, z, n); all slices fall on 128-lane boundaries.
        rz = jax.nn.sigmoid(pre_rz)                     # fused sigmoid over r|z slab
        r = rz[:, :G]
        z = rz[:, G:2 * G]
        n = jnp.tanh(pre_nx + r * pre_nh)
        return (1.0 - z) * n + z * h_prev

    h0 = jnp.zeros((B, G), jnp.float32)
    h1 = jnp.zeros((B, G), jnp.float32)

    # Fully unrolled time loop (T static) -> cross-step EUP/MXU overlap.
    for t in range(T):
        # layer 0: only the recurrent matmul remains on the serial chain
        gx0 = gx0_all[t]                                                  # (B, 3G)
        gh0 = jnp.dot(h0, whh0, preferred_element_type=jnp.float32)      # (B, 3G)
        h0 = gru_update(gx0[:, :2 * G] + gh0[:, :2 * G],
                        gx0[:, 2 * G:],
                        gh0[:, 2 * G:] + bhn0,
                        h0)

        # layer 1: input + recurrent projections in ONE packed matmul
        lw = jnp.dot(jnp.concatenate([h0, h1], axis=1), w1,
                     preferred_element_type=jnp.float32)                  # (B, 4G)
        h1 = gru_update(lw[:, :2 * G] + brz1,
                        lw[:, 2 * G:3 * G] + bxn1,
                        lw[:, 3 * G:4 * G] + bhn1,
                        h1)

    # FC on the last-timestep output of the top layer; lane-dense (B, 128) store.
    out_ref[...] = (jnp.dot(h1, wfc_ref[...], preferred_element_type=jnp.float32)
                    + bfc_ref[...])


# --------------------------- parameter packing (one-time) --------------------------
def _pad_gates(a, rows_pad, num_gates):
    """(rows, num_gates*H) -> (rows_pad, num_gates*GATE): each gate lane-aligned."""
    rows, cols = a.shape
    H = cols // num_gates
    out = jnp.zeros((rows_pad, num_gates * GATE), jnp.float32)
    for g in range(num_gates):
        out = out.at[:rows, g * GATE:g * GATE + H].set(a[:, g * H:(g + 1) * H])
    return out


def pack_params(params):
    """Fold biases and pad weights to the lane-aligned layout the kernel expects."""
    H, G, C = HIDDEN_SIZE, GATE, NUM_CLASSES

    # ---- layer 0 ----
    b_ih0, b_hh0 = params["b_ih0"], params["b_hh0"]
    bg0_raw = jnp.concatenate([b_ih0[:, :2 * H] + b_hh0[:, :2 * H],
                               b_ih0[:, 2 * H:]], axis=1)                 # (1, 3H)
    packed = {
        "wih0": _pad_gates(params["w_ih0"], params["w_ih0"].shape[0], 3),  # (1, 3G)
        "whh0": _pad_gates(params["w_hh0"], G, 3),                         # (G, 3G)
        "bg0": _pad_gates(bg0_raw, 1, 3),                                  # (1, 3G)
        "bhn0": _pad_gates(b_hh0[:, 2 * H:], 1, 1),                        # (1, G)
    }

    # ---- layer 1: packed (2G, 4G) weight ----
    wih1, whh1 = params["w_ih1"], params["w_hh1"]
    b_ih1, b_hh1 = params["b_ih1"], params["b_hh1"]
    w1 = jnp.zeros((2 * G, 4 * G), jnp.float32)
    w1 = w1.at[0:G, 0:2 * G].set(_pad_gates(wih1[:, :2 * H], G, 2))        # r,z input
    w1 = w1.at[G:2 * G, 0:2 * G].set(_pad_gates(whh1[:, :2 * H], G, 2))    # r,z recurrent
    w1 = w1.at[0:G, 2 * G:3 * G].set(_pad_gates(wih1[:, 2 * H:], G, 1))    # n input
    w1 = w1.at[G:2 * G, 3 * G:4 * G].set(_pad_gates(whh1[:, 2 * H:], G, 1))  # n recurrent
    packed["w1"] = w1
    packed["brz1"] = _pad_gates(b_ih1[:, :2 * H] + b_hh1[:, :2 * H], 1, 2)  # (1, 2G)
    packed["bxn1"] = _pad_gates(b_ih1[:, 2 * H:], 1, 1)                     # (1, G)
    packed["bhn1"] = _pad_gates(b_hh1[:, 2 * H:], 1, 1)                     # (1, G)

    # ---- fc: padded lane-dense ----
    packed["wfc"] = jnp.zeros((G, G), jnp.float32).at[:H, :C].set(params["w_fc"])
    packed["bfc"] = jnp.zeros((1, G), jnp.float32).at[:, :C].set(params["b_fc"])
    return packed


def gru_model_forward(x, packed):
    """x: (B, T, I) batch_first, float32. Returns (B, NUM_CLASSES)."""
    B, T, _ = x.shape
    x_tm = jnp.transpose(x, (1, 0, 2))            # (T, B, I) time-major for the kernel

    vmem = pl.BlockSpec(memory_space=pltpu.MemorySpace.VMEM)
    out_padded = pl.pallas_call(
        gru_fc_kernel,
        out_shape=jax.ShapeDtypeStruct((B, GATE), jnp.float32),
        in_specs=[vmem] * 11,                     # every operand explicitly VMEM-resident
        out_specs=vmem,
        # No grid: total footprint ~1 MiB, far under VMEM on v5e/v6e/v7x.
    )(x_tm,
      packed["wih0"], packed["whh0"], packed["bg0"], packed["bhn0"],
      packed["w1"], packed["brz1"], packed["bxn1"], packed["bhn1"],
      packed["wfc"], packed["bfc"])
    return out_padded[:, :NUM_CLASSES]


# --------------------------- init + pure-JAX reference -----------------------------
def init_params(key):
    """PyTorch-style uniform(-1/sqrt(H), 1/sqrt(H)); weights stored as (in, 3H)/(H, C)."""
    H, I, C = HIDDEN_SIZE, INPUT_SIZE, NUM_CLASSES
    stdv = 1.0 / np.sqrt(H)
    keys = jax.random.split(key, 10)

    def u(k, shape, bound):
        return jax.random.uniform(k, shape, jnp.float32, -bound, bound)

    return {
        "w_ih0": u(keys[0], (I, 3 * H), stdv),
        "w_hh0": u(keys[1], (H, 3 * H), stdv),
        "b_ih0": u(keys[2], (1, 3 * H), stdv),
        "b_hh0": u(keys[3], (1, 3 * H), stdv),
        "w_ih1": u(keys[4], (H, 3 * H), stdv),
        "w_hh1": u(keys[5], (H, 3 * H), stdv),
        "b_ih1": u(keys[6], (1, 3 * H), stdv),
        "b_hh1": u(keys[7], (1, 3 * H), stdv),
        "w_fc": u(keys[8], (H, C), stdv),
        "b_fc": u(keys[9], (1, C), stdv),
    }


def gru_model_reference(x, params):
    """Pure-JAX reference with identical (unpadded) math, matching torch.nn.GRU."""
    H = HIDDEN_SIZE
    B = x.shape[0]

    def cell(gx, h, w_hh, b_hh):
        gh = h @ w_hh + b_hh
        r = jax.nn.sigmoid(gx[:, :H] + gh[:, :H])
        z = jax.nn.sigmoid(gx[:, H:2 * H] + gh[:, H:2 * H])
        n = jnp.tanh(gx[:, 2 * H:] + r * gh[:, 2 * H:])
        return (1.0 - z) * n + z * h

    def scan_fn(carry, x_t):
        h0, h1 = carry
        # I == 1: the input projection is an exact f32 outer product (matches kernel).
        gx0 = x_t * params["w_ih0"] + params["b_ih0"]
        h0 = cell(gx0, h0, params["w_hh0"], params["b_hh0"])
        gx1 = h0 @ params["w_ih1"] + params["b_ih1"]
        h1 = cell(gx1, h1, params["w_hh1"], params["b_hh1"])
        return (h0, h1), None

    x_tm = jnp.transpose(x, (1, 0, 2))
    init = (jnp.zeros((B, H), jnp.float32), jnp.zeros((B, H), jnp.float32))
    (_, h1), _ = lax.scan(scan_fn, init, x_tm)
    return h1 @ params["w_fc"] + params["b_fc"]


if __name__ == "__main__":
    key = jax.random.PRNGKey(0)
    k_x, k_p = jax.random.split(key)

    x = jax.random.normal(k_x, (BATCH, SEQ, INPUT_SIZE), jnp.float32)
    params = init_params(k_p)
    packed = pack_params(params)

    out = jax.block_until_ready(gru_model_forward(x, packed))
    ref = jax.block_until_ready(gru_model_reference(x, params))

    assert out.shape == (BATCH, NUM_CLASSES)
    np.testing.assert_allclose(np.asarray(out), np.asarray(ref), rtol=1e-5, atol=1e-5)

    print("KERNEL_OK")
</pallas_src>

<mosaic_0001>
module attributes {stable_mosaic.version = 11 : i64} {
  func.func @gru_fc_kernel(%arg0: memref<8x2x1xf32, #tpu.memory_space<vmem>>, %arg1: memref<1x384xf32, #tpu.memory_space<vmem>>, %arg2: memref<128x384xf32, #tpu.memory_space<vmem>>, %arg3: memref<1x384xf32, #tpu.memory_space<vmem>>, %arg4: memref<1x128xf32, #tpu.memory_space<vmem>>, %arg5: memref<256x512xf32, #tpu.memory_space<vmem>>, %arg6: memref<1x256xf32, #tpu.memory_space<vmem>>, %arg7: memref<1x128xf32, #tpu.memory_space<vmem>>, %arg8: memref<1x128xf32, #tpu.memory_space<vmem>>, %arg9: memref<128x128xf32, #tpu.memory_space<vmem>>, %arg10: memref<1x128xf32, #tpu.memory_space<vmem>>, %arg11: memref<2x128xf32, #tpu.memory_space<vmem>>) attributes {dimension_semantics = [], scalar_prefetch = 0 : i64, scratch_operands = 0 : i64, tpu.core_type = #tpu.core_type<tc>} {
    %c0 = arith.constant 0 : index
    %c0_0 = arith.constant 0 : index
    %c0_1 = arith.constant 0 : index
    %0 = vector.load %arg0[%c0, %c0_0, %c0_1] : memref<8x2x1xf32, #tpu.memory_space<vmem>>, vector<8x2x1xf32>
    %c0_2 = arith.constant 0 : index
    %c0_3 = arith.constant 0 : index
    %1 = vector.load %arg1[%c0_2, %c0_3] : memref<1x384xf32, #tpu.memory_space<vmem>>, vector<1x384xf32>
    %2 = vector.shape_cast %1 : vector<1x384xf32> to vector<1x1x384xf32>
    %3 = vector.broadcast %0 : vector<8x2x1xf32> to vector<8x2x384xf32>
    %4 = vector.broadcast %2 : vector<1x1x384xf32> to vector<8x2x384xf32>
    %5 = arith.mulf %3, %4 : vector<8x2x384xf32>
    %c0_4 = arith.constant 0 : index
    %c0_5 = arith.constant 0 : index
    %6 = vector.load %arg3[%c0_4, %c0_5] : memref<1x384xf32, #tpu.memory_space<vmem>>, vector<1x384xf32>
    %7 = vector.shape_cast %6 : vector<1x384xf32> to vector<1x1x384xf32>
    %8 = vector.broadcast %7 : vector<1x1x384xf32> to vector<8x2x384xf32>
    %9 = arith.addf %5, %8 : vector<8x2x384xf32>
    %c0_6 = arith.constant 0 : index
    %c0_7 = arith.constant 0 : index
    %10 = vector.load %arg4[%c0_6, %c0_7] : memref<1x128xf32, #tpu.memory_space<vmem>>, vector<1x128xf32>
    %11 = vector.shape_cast %10 : vector<1x128xf32> to vector<1x128xf32>
    %12 = vector.broadcast %11 : vector<1x128xf32> to vector<2x128xf32>
    %c0_8 = arith.constant 0 : index
    %c0_9 = arith.constant 0 : index
    %13 = vector.load %arg6[%c0_8, %c0_9] : memref<1x256xf32, #tpu.memory_space<vmem>>, vector<1x256xf32>
    %14 = vector.shape_cast %13 : vector<1x256xf32> to vector<1x256xf32>
    %15 = vector.broadcast %14 : vector<1x256xf32> to vector<2x256xf32>
    %c0_10 = arith.constant 0 : index
    %c0_11 = arith.constant 0 : index
    %16 = vector.load %arg7[%c0_10, %c0_11] : memref<1x128xf32, #tpu.memory_space<vmem>>, vector<1x128xf32>
    %17 = vector.shape_cast %16 : vector<1x128xf32> to vector<1x128xf32>
    %18 = vector.broadcast %17 : vector<1x128xf32> to vector<2x128xf32>
    %c0_12 = arith.constant 0 : index
    %c0_13 = arith.constant 0 : index
    %19 = vector.load %arg8[%c0_12, %c0_13] : memref<1x128xf32, #tpu.memory_space<vmem>>, vector<1x128xf32>
    %20 = vector.shape_cast %19 : vector<1x128xf32> to vector<1x128xf32>
    %21 = vector.broadcast %20 : vector<1x128xf32> to vector<2x128xf32>
    %c0_14 = arith.constant 0 : index
    %c0_15 = arith.constant 0 : index
    %22 = vector.load %arg2[%c0_14, %c0_15] : memref<128x384xf32, #tpu.memory_space<vmem>>, vector<128x384xf32>
    %c0_16 = arith.constant 0 : index
    %c0_17 = arith.constant 0 : index
    %23 = vector.load %arg5[%c0_16, %c0_17] : memref<256x512xf32, #tpu.memory_space<vmem>>, vector<256x512xf32>
    %cst = arith.constant 0.000000e+00 : f32
    %24 = vector.broadcast %cst : f32 to vector<2x128xf32>
    %cst_18 = arith.constant 0.000000e+00 : f32
    %25 = vector.broadcast %cst_18 : f32 to vector<2x128xf32>
    %26 = vector.extract_strided_slice %9 {offsets = [0, 0, 0], sizes = [1, 2, 384], strides = [1, 1, 1]} : vector<8x2x384xf32> to vector<1x2x384xf32>
    %27 = vector.shape_cast %26 : vector<1x2x384xf32> to vector<2x384xf32>
    %cst_19 = arith.constant dense<0.000000e+00> : vector<2x384xf32>
    %28 = tpu.matmul %24, %22, %cst_19 {dimension_numbers = #tpu.dot_dimension_numbers<[1], [0], [0], [1], [0, 0, 1, 1], [], []>} : vector<2x128xf32>, vector<128x384xf32>, vector<2x384xf32> -> vector<2x384xf32>
    %29 = vector.extract_strided_slice %27 {offsets = [0, 0], sizes = [2, 256], strides = [1, 1]} : vector<2x384xf32> to vector<2x256xf32>
    %30 = vector.extract_strided_slice %28 {offsets = [0, 0], sizes = [2, 256], strides = [1, 1]} : vector<2x384xf32> to vector<2x256xf32>
    %31 = arith.addf %29, %30 : vector<2x256xf32>
    %32 = vector.extract_strided_slice %27 {offsets = [0, 256], sizes = [2, 128], strides = [1, 1]} : vector<2x384xf32> to vector<2x128xf32>
    %33 = vector.extract_strided_slice %28 {offsets = [0, 256], sizes = [2, 128], strides = [1, 1]} : vector<2x384xf32> to vector<2x128xf32>
    %34 = arith.addf %33, %12 : vector<2x128xf32>
    %35 = arith.negf %31 : vector<2x256xf32>
    %36 = math.exp %35 : vector<2x256xf32>
    %cst_20 = arith.constant 1.000000e+00 : f32
    %37 = vector.broadcast %cst_20 : f32 to vector<2x256xf32>
    %38 = arith.addf %37, %36 : vector<2x256xf32>
    %39 = arith.divf %37, %38 : vector<2x256xf32>
    %40 = vector.extract_strided_slice %39 {offsets = [0, 0], sizes = [2, 128], strides = [1, 1]} : vector<2x256xf32> to vector<2x128xf32>
    %41 = vector.extract_strided_slice %39 {offsets = [0, 128], sizes = [2, 128], strides = [1, 1]} : vector<2x256xf32> to vector<2x128xf32>
    %42 = arith.mulf %40, %34 : vector<2x128xf32>
    %43 = arith.addf %32, %42 : vector<2x128xf32>
    %44 = math.tanh %43 : vector<2x128xf32>
    %cst_21 = arith.constant 1.000000e+00 : f32
    %45 = vector.broadcast %cst_21 : f32 to vector<2x128xf32>
    %46 = arith.subf %45, %41 : vector<2x128xf32>
    %47 = arith.mulf %46, %44 : vector<2x128xf32>
    %48 = arith.mulf %41, %24 : vector<2x128xf32>
    %49 = arith.addf %47, %48 : vector<2x128xf32>
    %50 = tpu.concatenate %49, %25 in 1 : vector<2x128xf32>, vector<2x128xf32> -> vector<2x256xf32>
    %cst_22 = arith.constant dense<0.000000e+00> : vector<2x512xf32>
    %51 = tpu.matmul %50, %23, %cst_22 {dimension_numbers = #tpu.dot_dimension_numbers<[1], [0], [0], [1], [0, 0, 1, 1], [], []>} : vector<2x256xf32>, vector<256x512xf32>, vector<2x512xf32> -> vector<2x512xf32>
    %52 = vector.extract_strided_slice %51 {offsets = [0, 0], sizes = [2, 256], strides = [1, 1]} : vector<2x512xf32> to vector<2x256xf32>
    %53 = arith.addf %52, %15 : vector<2x256xf32>
    %54 = vector.extract_strided_slice %51 {offsets = [0, 256], sizes = [2, 128], strides = [1, 1]} : vector<2x512xf32> to vector<2x128xf32>
    %55 = arith.addf %54, %18 : vector<2x128xf32>
    %56 = vector.extract_strided_slice %51 {offsets = [0, 384], sizes = [2, 128], strides = [1, 1]} : vector<2x512xf32> to vector<2x128xf32>
    %57 = arith.addf %56, %21 : vector<2x128xf32>
    %58 = arith.negf %53 : vector<2x256xf32>
    %59 = math.exp %58 : vector<2x256xf32>
    %cst_23 = arith.constant 1.000000e+00 : f32
    %60 = vector.broadcast %cst_23 : f32 to vector<2x256xf32>
    %61 = arith.addf %60, %59 : vector<2x256xf32>
    %62 = arith.divf %60, %61 : vector<2x256xf32>
    %63 = vector.extract_strided_slice %62 {offsets = [0, 0], sizes = [2, 128], strides = [1, 1]} : vector<2x256xf32> to vector<2x128xf32>
    %64 = vector.extract_strided_slice %62 {offsets = [0, 128], sizes = [2, 128], strides = [1, 1]} : vector<2x256xf32> to vector<2x128xf32>
    %65 = arith.mulf %63, %57 : vector<2x128xf32>
    %66 = arith.addf %55, %65 : vector<2x128xf32>
    %67 = math.tanh %66 : vector<2x128xf32>
    %cst_24 = arith.constant 1.000000e+00 : f32
    %68 = vector.broadcast %cst_24 : f32 to vector<2x128xf32>
    %69 = arith.subf %68, %64 : vector<2x128xf32>
    %70 = arith.mulf %69, %67 : vector<2x128xf32>
    %71 = arith.mulf %64, %25 : vector<2x128xf32>
    %72 = arith.addf %70, %71 : vector<2x128xf32>
    %73 = vector.extract_strided_slice %9 {offsets = [1, 0, 0], sizes = [1, 2, 384], strides = [1, 1, 1]} : vector<8x2x384xf32> to vector<1x2x384xf32>
    %74 = vector.shape_cast %73 : vector<1x2x384xf32> to vector<2x384xf32>
    %cst_25 = arith.constant dense<0.000000e+00> : vector<2x384xf32>
    %75 = tpu.matmul %49, %22, %cst_25 {dimension_numbers = #tpu.dot_dimension_numbers<[1], [0], [0], [1], [0, 0, 1, 1], [], []>} : vector<2x128xf32>, vector<128x384xf32>, vector<2x384xf32> -> vector<2x384xf32>
    %76 = vector.extract_strided_slice %74 {offsets = [0, 0], sizes = [2, 256], strides = [1, 1]} : vector<2x384xf32> to vector<2x256xf32>
    %77 = vector.extract_strided_slice %75 {offsets = [0, 0], sizes = [2, 256], strides = [1, 1]} : vector<2x384xf32> to vector<2x256xf32>
    %78 = arith.addf %76, %77 : vector<2x256xf32>
    %79 = vector.extract_strided_slice %74 {offsets = [0, 256], sizes = [2, 128], strides = [1, 1]} : vector<2x384xf32> to vector<2x128xf32>
    %80 = vector.extract_strided_slice %75 {offsets = [0, 256], sizes = [2, 128], strides = [1, 1]} : vector<2x384xf32> to vector<2x128xf32>
    %81 = arith.addf %80, %12 : vector<2x128xf32>
    %82 = arith.negf %78 : vector<2x256xf32>
    %83 = math.exp %82 : vector<2x256xf32>
    %cst_26 = arith.constant 1.000000e+00 : f32
    %84 = vector.broadcast %cst_26 : f32 to vector<2x256xf32>
    %85 = arith.addf %84, %83 : vector<2x256xf32>
    %86 = arith.divf %84, %85 : vector<2x256xf32>
    %87 = vector.extract_strided_slice %86 {offsets = [0, 0], sizes = [2, 128], strides = [1, 1]} : vector<2x256xf32> to vector<2x128xf32>
    %88 = vector.extract_strided_slice %86 {offsets = [0, 128], sizes = [2, 128], strides = [1, 1]} : vector<2x256xf32> to vector<2x128xf32>
    %89 = arith.mulf %87, %81 : vector<2x128xf32>
    %90 = arith.addf %79, %89 : vector<2x128xf32>
    %91 = math.tanh %90 : vector<2x128xf32>
    %cst_27 = arith.constant 1.000000e+00 : f32
    %92 = vector.broadcast %cst_27 : f32 to vector<2x128xf32>
    %93 = arith.subf %92, %88 : vector<2x128xf32>
    %94 = arith.mulf %93, %91 : vector<2x128xf32>
    %95 = arith.mulf %88, %49 : vector<2x128xf32>
    %96 = arith.addf %94, %95 : vector<2x128xf32>
    %97 = tpu.concatenate %96, %72 in 1 : vector<2x128xf32>, vector<2x128xf32> -> vector<2x256xf32>
    %cst_28 = arith.constant dense<0.000000e+00> : vector<2x512xf32>
    %98 = tpu.matmul %97, %23, %cst_28 {dimension_numbers = #tpu.dot_dimension_numbers<[1], [0], [0], [1], [0, 0, 1, 1], [], []>} : vector<2x256xf32>, vector<256x512xf32>, vector<2x512xf32> -> vector<2x512xf32>
    %99 = vector.extract_strided_slice %98 {offsets = [0, 0], sizes = [2, 256], strides = [1, 1]} : vector<2x512xf32> to vector<2x256xf32>
    %100 = arith.addf %99, %15 : vector<2x256xf32>
    %101 = vector.extract_strided_slice %98 {offsets = [0, 256], sizes = [2, 128], strides = [1, 1]} : vector<2x512xf32> to vector<2x128xf32>
    %102 = arith.addf %101, %18 : vector<2x128xf32>
    %103 = vector.extract_strided_slice %98 {offsets = [0, 384], sizes = [2, 128], strides = [1, 1]} : vector<2x512xf32> to vector<2x128xf32>
    %104 = arith.addf %103, %21 : vector<2x128xf32>
    %105 = arith.negf %100 : vector<2x256xf32>
    %106 = math.exp %105 : vector<2x256xf32>
    %cst_29 = arith.constant 1.000000e+00 : f32
    %107 = vector.broadcast %cst_29 : f32 to vector<2x256xf32>
    %108 = arith.addf %107, %106 : vector<2x256xf32>
    %109 = arith.divf %107, %108 : vector<2x256xf32>
    %110 = vector.extract_strided_slice %109 {offsets = [0, 0], sizes = [2, 128], strides = [1, 1]} : vector<2x256xf32> to vector<2x128xf32>
    %111 = vector.extract_strided_slice %109 {offsets = [0, 128], sizes = [2, 128], strides = [1, 1]} : vector<2x256xf32> to vector<2x128xf32>
    %112 = arith.mulf %110, %104 : vector<2x128xf32>
    %113 = arith.addf %102, %112 : vector<2x128xf32>
    %114 = math.tanh %113 : vector<2x128xf32>
    %cst_30 = arith.constant 1.000000e+00 : f32
    %115 = vector.broadcast %cst_30 : f32 to vector<2x128xf32>
    %116 = arith.subf %115, %111 : vector<2x128xf32>
    %117 = arith.mulf %116, %114 : vector<2x128xf32>
    %118 = arith.mulf %111, %72 : vector<2x128xf32>
    %119 = arith.addf %117, %118 : vector<2x128xf32>
    %120 = vector.extract_strided_slice %9 {offsets = [2, 0, 0], sizes = [1, 2, 384], strides = [1, 1, 1]} : vector<8x2x384xf32> to vector<1x2x384xf32>
    %121 = vector.shape_cast %120 : vector<1x2x384xf32> to vector<2x384xf32>
    %cst_31 = arith.constant dense<0.000000e+00> : vector<2x384xf32>
    %122 = tpu.matmul %96, %22, %cst_31 {dimension_numbers = #tpu.dot_dimension_numbers<[1], [0], [0], [1], [0, 0, 1, 1], [], []>} : vector<2x128xf32>, vector<128x384xf32>, vector<2x384xf32> -> vector<2x384xf32>
    %123 = vector.extract_strided_slice %121 {offsets = [0, 0], sizes = [2, 256], strides = [1, 1]} : vector<2x384xf32> to vector<2x256xf32>
    %124 = vector.extract_strided_slice %122 {offsets = [0, 0], sizes = [2, 256], strides = [1, 1]} : vector<2x384xf32> to vector<2x256xf32>
    %125 = arith.addf %123, %124 : vector<2x256xf32>
    %126 = vector.extract_strided_slice %121 {offsets = [0, 256], sizes = [2, 128], strides = [1, 1]} : vector<2x384xf32> to vector<2x128xf32>
    %127 = vector.extract_strided_slice %122 {offsets = [0, 256], sizes = [2, 128], strides = [1, 1]} : vector<2x384xf32> to vector<2x128xf32>
    %128 = arith.addf %127, %12 : vector<2x128xf32>
    %129 = arith.negf %125 : vector<2x256xf32>
    %130 = math.exp %129 : vector<2x256xf32>
    %cst_32 = arith.constant 1.000000e+00 : f32
    %131 = vector.broadcast %cst_32 : f32 to vector<2x256xf32>
    %132 = arith.addf %131, %130 : vector<2x256xf32>
    %133 = arith.divf %131, %132 : vector<2x256xf32>
    %134 = vector.extract_strided_slice %133 {offsets = [0, 0], sizes = [2, 128], strides = [1, 1]} : vector<2x256xf32> to vector<2x128xf32>
    %135 = vector.extract_strided_slice %133 {offsets = [0, 128], sizes = [2, 128], strides = [1, 1]} : vector<2x256xf32> to vector<2x128xf32>
    %136 = arith.mulf %134, %128 : vector<2x128xf32>
    %137 = arith.addf %126, %136 : vector<2x128xf32>
    %138 = math.tanh %137 : vector<2x128xf32>
    %cst_33 = arith.constant 1.000000e+00 : f32
    %139 = vector.broadcast %cst_33 : f32 to vector<2x128xf32>
    %140 = arith.subf %139, %135 : vector<2x128xf32>
    %141 = arith.mulf %140, %138 : vector<2x128xf32>
    %142 = arith.mulf %135, %96 : vector<2x128xf32>
    %143 = arith.addf %141, %142 : vector<2x128xf32>
    %144 = tpu.concatenate %143, %119 in 1 : vector<2x128xf32>, vector<2x128xf32> -> vector<2x256xf32>
    %cst_34 = arith.constant dense<0.000000e+00> : vector<2x512xf32>
    %145 = tpu.matmul %144, %23, %cst_34 {dimension_numbers = #tpu.dot_dimension_numbers<[1], [0], [0], [1], [0, 0, 1, 1], [], []>} : vector<2x256xf32>, vector<256x512xf32>, vector<2x512xf32> -> vector<2x512xf32>
    %146 = vector.extract_strided_slice %145 {offsets = [0, 0], sizes = [2, 256], strides = [1, 1]} : vector<2x512xf32> to vector<2x256xf32>
    %147 = arith.addf %146, %15 : vector<2x256xf32>
    %148 = vector.extract_strided_slice %145 {offsets = [0, 256], sizes = [2, 128], strides = [1, 1]} : vector<2x512xf32> to vector<2x128xf32>
    %149 = arith.addf %148, %18 : vector<2x128xf32>
    %150 = vector.extract_strided_slice %145 {offsets = [0, 384], sizes = [2, 128], strides = [1, 1]} : vector<2x512xf32> to vector<2x128xf32>
    %151 = arith.addf %150, %21 : vector<2x128xf32>
    %152 = arith.negf %147 : vector<2x256xf32>
    %153 = math.exp %152 : vector<2x256xf32>
    %cst_35 = arith.constant 1.000000e+00 : f32
    %154 = vector.broadcast %cst_35 : f32 to vector<2x256xf32>
    %155 = arith.addf %154, %153 : vector<2x256xf32>
    %156 = arith.divf %154, %155 : vector<2x256xf32>
    %157 = vector.extract_strided_slice %156 {offsets = [0, 0], sizes = [2, 128], strides = [1, 1]} : vector<2x256xf32> to vector<2x128xf32>
    %158 = vector.extract_strided_slice %156 {offsets = [0, 128], sizes = [2, 128], strides = [1, 1]} : vector<2x256xf32> to vector<2x128xf32>
    %159 = arith.mulf %157, %151 : vector<2x128xf32>
    %160 = arith.addf %149, %159 : vector<2x128xf32>
    %161 = math.tanh %160 : vector<2x128xf32>
    %cst_36 = arith.constant 1.000000e+00 : f32
    %162 = vector.broadcast %cst_36 : f32 to vector<2x128xf32>
    %163 = arith.subf %162, %158 : vector<2x128xf32>
    %164 = arith.mulf %163, %161 : vector<2x128xf32>
    %165 = arith.mulf %158, %119 : vector<2x128xf32>
    %166 = arith.addf %164, %165 : vector<2x128xf32>
    %167 = vector.extract_strided_slice %9 {offsets = [3, 0, 0], sizes = [1, 2, 384], strides = [1, 1, 1]} : vector<8x2x384xf32> to vector<1x2x384xf32>
    %168 = vector.shape_cast %167 : vector<1x2x384xf32> to vector<2x384xf32>
    %cst_37 = arith.constant dense<0.000000e+00> : vector<2x384xf32>
    %169 = tpu.matmul %143, %22, %cst_37 {dimension_numbers = #tpu.dot_dimension_numbers<[1], [0], [0], [1], [0, 0, 1, 1], [], []>} : vector<2x128xf32>, vector<128x384xf32>, vector<2x384xf32> -> vector<2x384xf32>
    %170 = vector.extract_strided_slice %168 {offsets = [0, 0], sizes = [2, 256], strides = [1, 1]} : vector<2x384xf32> to vector<2x256xf32>
    %171 = vector.extract_strided_slice %169 {offsets = [0, 0], sizes = [2, 256], strides = [1, 1]} : vector<2x384xf32> to vector<2x256xf32>
    %172 = arith.addf %170, %171 : vector<2x256xf32>
    %173 = vector.extract_strided_slice %168 {offsets = [0, 256], sizes = [2, 128], strides = [1, 1]} : vector<2x384xf32> to vector<2x128xf32>
    %174 = vector.extract_strided_slice %169 {offsets = [0, 256], sizes = [2, 128], strides = [1, 1]} : vector<2x384xf32> to vector<2x128xf32>
    %175 = arith.addf %174, %12 : vector<2x128xf32>
    %176 = arith.negf %172 : vector<2x256xf32>
    %177 = math.exp %176 : vector<2x256xf32>
    %cst_38 = arith.constant 1.000000e+00 : f32
    %178 = vector.broadcast %cst_38 : f32 to vector<2x256xf32>
    %179 = arith.addf %178, %177 : vector<2x256xf32>
    %180 = arith.divf %178, %179 : vector<2x256xf32>
    %181 = vector.extract_strided_slice %180 {offsets = [0, 0], sizes = [2, 128], strides = [1, 1]} : vector<2x256xf32> to vector<2x128xf32>
    %182 = vector.extract_strided_slice %180 {offsets = [0, 128], sizes = [2, 128], strides = [1, 1]} : vector<2x256xf32> to vector<2x128xf32>
    %183 = arith.mulf %181, %175 : vector<2x128xf32>
    %184 = arith.addf %173, %183 : vector<2x128xf32>
    %185 = math.tanh %184 : vector<2x128xf32>
    %cst_39 = arith.constant 1.000000e+00 : f32
    %186 = vector.broadcast %cst_39 : f32 to vector<2x128xf32>
    %187 = arith.subf %186, %182 : vector<2x128xf32>
    %188 = arith.mulf %187, %185 : vector<2x128xf32>
    %189 = arith.mulf %182, %143 : vector<2x128xf32>
    %190 = arith.addf %188, %189 : vector<2x128xf32>
    %191 = tpu.concatenate %190, %166 in 1 : vector<2x128xf32>, vector<2x128xf32> -> vector<2x256xf32>
    %cst_40 = arith.constant dense<0.000000e+00> : vector<2x512xf32>
    %192 = tpu.matmul %191, %23, %cst_40 {dimension_numbers = #tpu.dot_dimension_numbers<[1], [0], [0], [1], [0, 0, 1, 1], [], []>} : vector<2x256xf32>, vector<256x512xf32>, vector<2x512xf32> -> vector<2x512xf32>
    %193 = vector.extract_strided_slice %192 {offsets = [0, 0], sizes = [2, 256], strides = [1, 1]} : vector<2x512xf32> to vector<2x256xf32>
    %194 = arith.addf %193, %15 : vector<2x256xf32>
    %195 = vector.extract_strided_slice %192 {offsets = [0, 256], sizes = [2, 128], strides = [1, 1]} : vector<2x512xf32> to vector<2x128xf32>
    %196 = arith.addf %195, %18 : vector<2x128xf32>
    %197 = vector.extract_strided_slice %192 {offsets = [0, 384], sizes = [2, 128], strides = [1, 1]} : vector<2x512xf32> to vector<2x128xf32>
    %198 = arith.addf %197, %21 : vector<2x128xf32>
    %199 = arith.negf %194 : vector<2x256xf32>
    %200 = math.exp %199 : vector<2x256xf32>
    %cst_41 = arith.constant 1.000000e+00 : f32
    %201 = vector.broadcast %cst_41 : f32 to vector<2x256xf32>
    %202 = arith.addf %201, %200 : vector<2x256xf32>
    %203 = arith.divf %201, %202 : vector<2x256xf32>
    %204 = vector.extract_strided_slice %203 {offsets = [0, 0], sizes = [2, 128], strides = [1, 1]} : vector<2x256xf32> to vector<2x128xf32>
    %205 = vector.extract_strided_slice %203 {offsets = [0, 128], sizes = [2, 128], strides = [1, 1]} : vector<2x256xf32> to vector<2x128xf32>
    %206 = arith.mulf %204, %198 : vector<2x128xf32>
    %207 = arith.addf %196, %206 : vector<2x128xf32>
    %208 = math.tanh %207 : vector<2x128xf32>
    %cst_42 = arith.constant 1.000000e+00 : f32
    %209 = vector.broadcast %cst_42 : f32 to vector<2x128xf32>
    %210 = arith.subf %209, %205 : vector<2x128xf32>
    %211 = arith.mulf %210, %208 : vector<2x128xf32>
    %212 = arith.mulf %205, %166 : vector<2x128xf32>
    %213 = arith.addf %211, %212 : vector<2x128xf32>
    %214 = vector.extract_strided_slice %9 {offsets = [4, 0, 0], sizes = [1, 2, 384], strides = [1, 1, 1]} : vector<8x2x384xf32> to vector<1x2x384xf32>
    %215 = vector.shape_cast %214 : vector<1x2x384xf32> to vector<2x384xf32>
    %cst_43 = arith.constant dense<0.000000e+00> : vector<2x384xf32>
    %216 = tpu.matmul %190, %22, %cst_43 {dimension_numbers = #tpu.dot_dimension_numbers<[1], [0], [0], [1], [0, 0, 1, 1], [], []>} : vector<2x128xf32>, vector<128x384xf32>, vector<2x384xf32> -> vector<2x384xf32>
    %217 = vector.extract_strided_slice %215 {offsets = [0, 0], sizes = [2, 256], strides = [1, 1]} : vector<2x384xf32> to vector<2x256xf32>
    %218 = vector.extract_strided_slice %216 {offsets = [0, 0], sizes = [2, 256], strides = [1, 1]} : vector<2x384xf32> to vector<2x256xf32>
    %219 = arith.addf %217, %218 : vector<2x256xf32>
    %220 = vector.extract_strided_slice %215 {offsets = [0, 256], sizes = [2, 128], strides = [1, 1]} : vector<2x384xf32> to vector<2x128xf32>
    %221 = vector.extract_strided_slice %216 {offsets = [0, 256], sizes = [2, 128], strides = [1, 1]} : vector<2x384xf32> to vector<2x128xf32>
    %222 = arith.addf %221, %12 : vector<2x128xf32>
    %223 = arith.negf %219 : vector<2x256xf32>
    %224 = math.exp %223 : vector<2x256xf32>
    %cst_44 = arith.constant 1.000000e+00 : f32
    %225 = vector.broadcast %cst_44 : f32 to vector<2x256xf32>
    %226 = arith.addf %225, %224 : vector<2x256xf32>
    %227 = arith.divf %225, %226 : vector<2x256xf32>
    %228 = vector.extract_strided_slice %227 {offsets = [0, 0], sizes = [2, 128], strides = [1, 1]} : vector<2x256xf32> to vector<2x128xf32>
    %229 = vector.extract_strided_slice %227 {offsets = [0, 128], sizes = [2, 128], strides = [1, 1]} : vector<2x256xf32> to vector<2x128xf32>
    %230 = arith.mulf %228, %222 : vector<2x128xf32>
    %231 = arith.addf %220, %230 : vector<2x128xf32>
    %232 = math.tanh %231 : vector<2x128xf32>
    %cst_45 = arith.constant 1.000000e+00 : f32
    %233 = vector.broadcast %cst_45 : f32 to vector<2x128xf32>
    %234 = arith.subf %233, %229 : vector<2x128xf32>
    %235 = arith.mulf %234, %232 : vector<2x128xf32>
    %236 = arith.mulf %229, %190 : vector<2x128xf32>
    %237 = arith.addf %235, %236 : vector<2x128xf32>
    %238 = tpu.concatenate %237, %213 in 1 : vector<2x128xf32>, vector<2x128xf32> -> vector<2x256xf32>
    %cst_46 = arith.constant dense<0.000000e+00> : vector<2x512xf32>
    %239 = tpu.matmul %238, %23, %cst_46 {dimension_numbers = #tpu.dot_dimension_numbers<[1], [0], [0], [1], [0, 0, 1, 1], [], []>} : vector<2x256xf32>, vector<256x512xf32>, vector<2x512xf32> -> vector<2x512xf32>
    %240 = vector.extract_strided_slice %239 {offsets = [0, 0], sizes = [2, 256], strides = [1, 1]} : vector<2x512xf32> to vector<2x256xf32>
    %241 = arith.addf %240, %15 : vector<2x256xf32>
    %242 = vector.extract_strided_slice %239 {offsets = [0, 256], sizes = [2, 128], strides = [1, 1]} : vector<2x512xf32> to vector<2x128xf32>
    %243 = arith.addf %242, %18 : vector<2x128xf32>
    %244 = vector.extract_strided_slice %239 {offsets = [0, 384], sizes = [2, 128], strides = [1, 1]} : vector<2x512xf32> to vector<2x128xf32>
    %245 = arith.addf %244, %21 : vector<2x128xf32>
    %246 = arith.negf %241 : vector<2x256xf32>
    %247 = math.exp %246 : vector<2x256xf32>
    %cst_47 = arith.constant 1.000000e+00 : f32
    %248 = vector.broadcast %cst_47 : f32 to vector<2x256xf32>
    %249 = arith.addf %248, %247 : vector<2x256xf32>
    %250 = arith.divf %248, %249 : vector<2x256xf32>
    %251 = vector.extract_strided_slice %250 {offsets = [0, 0], sizes = [2, 128], strides = [1, 1]} : vector<2x256xf32> to vector<2x128xf32>
    %252 = vector.extract_strided_slice %250 {offsets = [0, 128], sizes = [2, 128], strides = [1, 1]} : vector<2x256xf32> to vector<2x128xf32>
    %253 = arith.mulf %251, %245 : vector<2x128xf32>
    %254 = arith.addf %243, %253 : vector<2x128xf32>
    %255 = math.tanh %254 : vector<2x128xf32>
    %cst_48 = arith.constant 1.000000e+00 : f32
    %256 = vector.broadcast %cst_48 : f32 to vector<2x128xf32>
    %257 = arith.subf %256, %252 : vector<2x128xf32>
    %258 = arith.mulf %257, %255 : vector<2x128xf32>
    %259 = arith.mulf %252, %213 : vector<2x128xf32>
    %260 = arith.addf %258, %259 : vector<2x128xf32>
    %261 = vector.extract_strided_slice %9 {offsets = [5, 0, 0], sizes = [1, 2, 384], strides = [1, 1, 1]} : vector<8x2x384xf32> to vector<1x2x384xf32>
    %262 = vector.shape_cast %261 : vector<1x2x384xf32> to vector<2x384xf32>
    %cst_49 = arith.constant dense<0.000000e+00> : vector<2x384xf32>
    %263 = tpu.matmul %237, %22, %cst_49 {dimension_numbers = #tpu.dot_dimension_numbers<[1], [0], [0], [1], [0, 0, 1, 1], [], []>} : vector<2x128xf32>, vector<128x384xf32>, vector<2x384xf32> -> vector<2x384xf32>
    %264 = vector.extract_strided_slice %262 {offsets = [0, 0], sizes = [2, 256], strides = [1, 1]} : vector<2x384xf32> to vector<2x256xf32>
    %265 = vector.extract_strided_slice %263 {offsets = [0, 0], sizes = [2, 256], strides = [1, 1]} : vector<2x384xf32> to vector<2x256xf32>
    %266 = arith.addf %264, %265 : vector<2x256xf32>
    %267 = vector.extract_strided_slice %262 {offsets = [0, 256], sizes = [2, 128], strides = [1, 1]} : vector<2x384xf32> to vector<2x128xf32>
    %268 = vector.extract_strided_slice %263 {offsets = [0, 256], sizes = [2, 128], strides = [1, 1]} : vector<2x384xf32> to vector<2x128xf32>
    %269 = arith.addf %268, %12 : vector<2x128xf32>
    %270 = arith.negf %266 : vector<2x256xf32>
    %271 = math.exp %270 : vector<2x256xf32>
    %cst_50 = arith.constant 1.000000e+00 : f32
    %272 = vector.broadcast %cst_50 : f32 to vector<2x256xf32>
    %273 = arith.addf %272, %271 : vector<2x256xf32>
    %274 = arith.divf %272, %273 : vector<2x256xf32>
    %275 = vector.extract_strided_slice %274 {offsets = [0, 0], sizes = [2, 128], strides = [1, 1]} : vector<2x256xf32> to vector<2x128xf32>
    %276 = vector.extract_strided_slice %274 {offsets = [0, 128], sizes = [2, 128], strides = [1, 1]} : vector<2x256xf32> to vector<2x128xf32>
    %277 = arith.mulf %275, %269 : vector<2x128xf32>
    %278 = arith.addf %267, %277 : vector<2x128xf32>
    %279 = math.tanh %278 : vector<2x128xf32>
    %cst_51 = arith.constant 1.000000e+00 : f32
    %280 = vector.broadcast %cst_51 : f32 to vector<2x128xf32>
    %281 = arith.subf %280, %276 : vector<2x128xf32>
    %282 = arith.mulf %281, %279 : vector<2x128xf32>
    %283 = arith.mulf %276, %237 : vector<2x128xf32>
    %284 = arith.addf %282, %283 : vector<2x128xf32>
    %285 = tpu.concatenate %284, %260 in 1 : vector<2x128xf32>, vector<2x128xf32> -> vector<2x256xf32>
    %cst_52 = arith.constant dense<0.000000e+00> : vector<2x512xf32>
    %286 = tpu.matmul %285, %23, %cst_52 {dimension_numbers = #tpu.dot_dimension_numbers<[1], [0], [0], [1], [0, 0, 1, 1], [], []>} : vector<2x256xf32>, vector<256x512xf32>, vector<2x512xf32> -> vector<2x512xf32>
    %287 = vector.extract_strided_slice %286 {offsets = [0, 0], sizes = [2, 256], strides = [1, 1]} : vector<2x512xf32> to vector<2x256xf32>
    %288 = arith.addf %287, %15 : vector<2x256xf32>
    %289 = vector.extract_strided_slice %286 {offsets = [0, 256], sizes = [2, 128], strides = [1, 1]} : vector<2x512xf32> to vector<2x128xf32>
    %290 = arith.addf %289, %18 : vector<2x128xf32>
    %291 = vector.extract_strided_slice %286 {offsets = [0, 384], sizes = [2, 128], strides = [1, 1]} : vector<2x512xf32> to vector<2x128xf32>
    %292 = arith.addf %291, %21 : vector<2x128xf32>
    %293 = arith.negf %288 : vector<2x256xf32>
    %294 = math.exp %293 : vector<2x256xf32>
    %cst_53 = arith.constant 1.000000e+00 : f32
    %295 = vector.broadcast %cst_53 : f32 to vector<2x256xf32>
    %296 = arith.addf %295, %294 : vector<2x256xf32>
    %297 = arith.divf %295, %296 : vector<2x256xf32>
    %298 = vector.extract_strided_slice %297 {offsets = [0, 0], sizes = [2, 128], strides = [1, 1]} : vector<2x256xf32> to vector<2x128xf32>
    %299 = vector.extract_strided_slice %297 {offsets = [0, 128], sizes = [2, 128], strides = [1, 1]} : vector<2x256xf32> to vector<2x128xf32>
    %300 = arith.mulf %298, %292 : vector<2x128xf32>
    %301 = arith.addf %290, %300 : vector<2x128xf32>
    %302 = math.tanh %301 : vector<2x128xf32>
    %cst_54 = arith.constant 1.000000e+00 : f32
    %303 = vector.broadcast %cst_54 : f32 to vector<2x128xf32>
    %304 = arith.subf %303, %299 : vector<2x128xf32>
    %305 = arith.mulf %304, %302 : vector<2x128xf32>
    %306 = arith.mulf %299, %260 : vector<2x128xf32>
    %307 = arith.addf %305, %306 : vector<2x128xf32>
    %308 = vector.extract_strided_slice %9 {offsets = [6, 0, 0], sizes = [1, 2, 384], strides = [1, 1, 1]} : vector<8x2x384xf32> to vector<1x2x384xf32>
    %309 = vector.shape_cast %308 : vector<1x2x384xf32> to vector<2x384xf32>
    %cst_55 = arith.constant dense<0.000000e+00> : vector<2x384xf32>
    %310 = tpu.matmul %284, %22, %cst_55 {dimension_numbers = #tpu.dot_dimension_numbers<[1], [0], [0], [1], [0, 0, 1, 1], [], []>} : vector<2x128xf32>, vector<128x384xf32>, vector<2x384xf32> -> vector<2x384xf32>
    %311 = vector.extract_strided_slice %309 {offsets = [0, 0], sizes = [2, 256], strides = [1, 1]} : vector<2x384xf32> to vector<2x256xf32>
    %312 = vector.extract_strided_slice %310 {offsets = [0, 0], sizes = [2, 256], strides = [1, 1]} : vector<2x384xf32> to vector<2x256xf32>
    %313 = arith.addf %311, %312 : vector<2x256xf32>
    %314 = vector.extract_strided_slice %309 {offsets = [0, 256], sizes = [2, 128], strides = [1, 1]} : vector<2x384xf32> to vector<2x128xf32>
    %315 = vector.extract_strided_slice %310 {offsets = [0, 256], sizes = [2, 128], strides = [1, 1]} : vector<2x384xf32> to vector<2x128xf32>
    %316 = arith.addf %315, %12 : vector<2x128xf32>
    %317 = arith.negf %313 : vector<2x256xf32>
    %318 = math.exp %317 : vector<2x256xf32>
    %cst_56 = arith.constant 1.000000e+00 : f32
    %319 = vector.broadcast %cst_56 : f32 to vector<2x256xf32>
    %320 = arith.addf %319, %318 : vector<2x256xf32>
    %321 = arith.divf %319, %320 : vector<2x256xf32>
    %322 = vector.extract_strided_slice %321 {offsets = [0, 0], sizes = [2, 128], strides = [1, 1]} : vector<2x256xf32> to vector<2x128xf32>
    %323 = vector.extract_strided_slice %321 {offsets = [0, 128], sizes = [2, 128], strides = [1, 1]} : vector<2x256xf32> to vector<2x128xf32>
    %324 = arith.mulf %322, %316 : vector<2x128xf32>
    %325 = arith.addf %314, %324 : vector<2x128xf32>
    %326 = math.tanh %325 : vector<2x128xf32>
    %cst_57 = arith.constant 1.000000e+00 : f32
    %327 = vector.broadcast %cst_57 : f32 to vector<2x128xf32>
    %328 = arith.subf %327, %323 : vector<2x128xf32>
    %329 = arith.mulf %328, %326 : vector<2x128xf32>
    %330 = arith.mulf %323, %284 : vector<2x128xf32>
    %331 = arith.addf %329, %330 : vector<2x128xf32>
    %332 = tpu.concatenate %331, %307 in 1 : vector<2x128xf32>, vector<2x128xf32> -> vector<2x256xf32>
    %cst_58 = arith.constant dense<0.000000e+00> : vector<2x512xf32>
    %333 = tpu.matmul %332, %23, %cst_58 {dimension_numbers = #tpu.dot_dimension_numbers<[1], [0], [0], [1], [0, 0, 1, 1], [], []>} : vector<2x256xf32>, vector<256x512xf32>, vector<2x512xf32> -> vector<2x512xf32>
    %334 = vector.extract_strided_slice %333 {offsets = [0, 0], sizes = [2, 256], strides = [1, 1]} : vector<2x512xf32> to vector<2x256xf32>
    %335 = arith.addf %334, %15 : vector<2x256xf32>
    %336 = vector.extract_strided_slice %333 {offsets = [0, 256], sizes = [2, 128], strides = [1, 1]} : vector<2x512xf32> to vector<2x128xf32>
    %337 = arith.addf %336, %18 : vector<2x128xf32>
    %338 = vector.extract_strided_slice %333 {offsets = [0, 384], sizes = [2, 128], strides = [1, 1]} : vector<2x512xf32> to vector<2x128xf32>
    %339 = arith.addf %338, %21 : vector<2x128xf32>
    %340 = arith.negf %335 : vector<2x256xf32>
    %341 = math.exp %340 : vector<2x256xf32>
    %cst_59 = arith.constant 1.000000e+00 : f32
    %342 = vector.broadcast %cst_59 : f32 to vector<2x256xf32>
    %343 = arith.addf %342, %341 : vector<2x256xf32>
    %344 = arith.divf %342, %343 : vector<2x256xf32>
    %345 = vector.extract_strided_slice %344 {offsets = [0, 0], sizes = [2, 128], strides = [1, 1]} : vector<2x256xf32> to vector<2x128xf32>
    %346 = vector.extract_strided_slice %344 {offsets = [0, 128], sizes = [2, 128], strides = [1, 1]} : vector<2x256xf32> to vector<2x128xf32>
    %347 = arith.mulf %345, %339 : vector<2x128xf32>
    %348 = arith.addf %337, %347 : vector<2x128xf32>
    %349 = math.tanh %348 : vector<2x128xf32>
    %cst_60 = arith.constant 1.000000e+00 : f32
    %350 = vector.broadcast %cst_60 : f32 to vector<2x128xf32>
    %351 = arith.subf %350, %346 : vector<2x128xf32>
    %352 = arith.mulf %351, %349 : vector<2x128xf32>
    %353 = arith.mulf %346, %307 : vector<2x128xf32>
    %354 = arith.addf %352, %353 : vector<2x128xf32>
    %355 = vector.extract_strided_slice %9 {offsets = [7, 0, 0], sizes = [1, 2, 384], strides = [1, 1, 1]} : vector<8x2x384xf32> to vector<1x2x384xf32>
    %356 = vector.shape_cast %355 : vector<1x2x384xf32> to vector<2x384xf32>
    %cst_61 = arith.constant dense<0.000000e+00> : vector<2x384xf32>
    %357 = tpu.matmul %331, %22, %cst_61 {dimension_numbers = #tpu.dot_dimension_numbers<[1], [0], [0], [1], [0, 0, 1, 1], [], []>} : vector<2x128xf32>, vector<128x384xf32>, vector<2x384xf32> -> vector<2x384xf32>
    %358 = vector.extract_strided_slice %356 {offsets = [0, 0], sizes = [2, 256], strides = [1, 1]} : vector<2x384xf32> to vector<2x256xf32>
    %359 = vector.extract_strided_slice %357 {offsets = [0, 0], sizes = [2, 256], strides = [1, 1]} : vector<2x384xf32> to vector<2x256xf32>
    %360 = arith.addf %358, %359 : vector<2x256xf32>
    %361 = vector.extract_strided_slice %356 {offsets = [0, 256], sizes = [2, 128], strides = [1, 1]} : vector<2x384xf32> to vector<2x128xf32>
    %362 = vector.extract_strided_slice %357 {offsets = [0, 256], sizes = [2, 128], strides = [1, 1]} : vector<2x384xf32> to vector<2x128xf32>
    %363 = arith.addf %362, %12 : vector<2x128xf32>
    %364 = arith.negf %360 : vector<2x256xf32>
    %365 = math.exp %364 : vector<2x256xf32>
    %cst_62 = arith.constant 1.000000e+00 : f32
    %366 = vector.broadcast %cst_62 : f32 to vector<2x256xf32>
    %367 = arith.addf %366, %365 : vector<2x256xf32>
    %368 = arith.divf %366, %367 : vector<2x256xf32>
    %369 = vector.extract_strided_slice %368 {offsets = [0, 0], sizes = [2, 128], strides = [1, 1]} : vector<2x256xf32> to vector<2x128xf32>
    %370 = vector.extract_strided_slice %368 {offsets = [0, 128], sizes = [2, 128], strides = [1, 1]} : vector<2x256xf32> to vector<2x128xf32>
    %371 = arith.mulf %369, %363 : vector<2x128xf32>
    %372 = arith.addf %361, %371 : vector<2x128xf32>
    %373 = math.tanh %372 : vector<2x128xf32>
    %cst_63 = arith.constant 1.000000e+00 : f32
    %374 = vector.broadcast %cst_63 : f32 to vector<2x128xf32>
    %375 = arith.subf %374, %370 : vector<2x128xf32>
    %376 = arith.mulf %375, %373 : vector<2x128xf32>
    %377 = arith.mulf %370, %331 : vector<2x128xf32>
    %378 = arith.addf %376, %377 : vector<2x128xf32>
    %379 = tpu.concatenate %378, %354 in 1 : vector<2x128xf32>, vector<2x128xf32> -> vector<2x256xf32>
    %cst_64 = arith.constant dense<0.000000e+00> : vector<2x512xf32>
    %380 = tpu.matmul %379, %23, %cst_64 {dimension_numbers = #tpu.dot_dimension_numbers<[1], [0], [0], [1], [0, 0, 1, 1], [], []>} : vector<2x256xf32>, vector<256x512xf32>, vector<2x512xf32> -> vector<2x512xf32>
    %381 = vector.extract_strided_slice %380 {offsets = [0, 0], sizes = [2, 256], strides = [1, 1]} : vector<2x512xf32> to vector<2x256xf32>
    %382 = arith.addf %381, %15 : vector<2x256xf32>
    %383 = vector.extract_strided_slice %380 {offsets = [0, 256], sizes = [2, 128], strides = [1, 1]} : vector<2x512xf32> to vector<2x128xf32>
    %384 = arith.addf %383, %18 : vector<2x128xf32>
    %385 = vector.extract_strided_slice %380 {offsets = [0, 384], sizes = [2, 128], strides = [1, 1]} : vector<2x512xf32> to vector<2x128xf32>
    %386 = arith.addf %385, %21 : vector<2x128xf32>
    %387 = arith.negf %382 : vector<2x256xf32>
    %388 = math.exp %387 : vector<2x256xf32>
    %cst_65 = arith.constant 1.000000e+00 : f32
    %389 = vector.broadcast %cst_65 : f32 to vector<2x256xf32>
    %390 = arith.addf %389, %388 : vector<2x256xf32>
    %391 = arith.divf %389, %390 : vector<2x256xf32>
    %392 = vector.extract_strided_slice %391 {offsets = [0, 0], sizes = [2, 128], strides = [1, 1]} : vector<2x256xf32> to vector<2x128xf32>
    %393 = vector.extract_strided_slice %391 {offsets = [0, 128], sizes = [2, 128], strides = [1, 1]} : vector<2x256xf32> to vector<2x128xf32>
    %394 = arith.mulf %392, %386 : vector<2x128xf32>
    %395 = arith.addf %384, %394 : vector<2x128xf32>
    %396 = math.tanh %395 : vector<2x128xf32>
    %cst_66 = arith.constant 1.000000e+00 : f32
    %397 = vector.broadcast %cst_66 : f32 to vector<2x128xf32>
    %398 = arith.subf %397, %393 : vector<2x128xf32>
    %399 = arith.mulf %398, %396 : vector<2x128xf32>
    %400 = arith.mulf %393, %354 : vector<2x128xf32>
    %401 = arith.addf %399, %400 : vector<2x128xf32>
    %c0_67 = arith.constant 0 : index
    %c0_68 = arith.constant 0 : index
    %402 = vector.load %arg9[%c0_67, %c0_68] : memref<128x128xf32, #tpu.memory_space<vmem>>, vector<128x128xf32>
    %cst_69 = arith.constant dense<0.000000e+00> : vector<2x128xf32>
    %403 = tpu.matmul %401, %402, %cst_69 {dimension_numbers = #tpu.dot_dimension_numbers<[1], [0], [0], [1], [0, 0, 1, 1], [], []>} : vector<2x128xf32>, vector<128x128xf32>, vector<2x128xf32> -> vector<2x128xf32>
    %c0_70 = arith.constant 0 : index
    %c0_71 = arith.constant 0 : index
    %404 = vector.load %arg10[%c0_70, %c0_71] : memref<1x128xf32, #tpu.memory_space<vmem>>, vector<1x128xf32>
    %405 = vector.broadcast %404 : vector<1x128xf32> to vector<2x128xf32>
    %406 = arith.addf %403, %405 : vector<2x128xf32>
    %c0_72 = arith.constant 0 : index
    %c0_73 = arith.constant 0 : index
    %407 = vector.load %arg11[%c0_72, %c0_73] : memref<2x128xf32, #tpu.memory_space<vmem>>, vector<2x128xf32>
    tpu.vector_store %arg11[%c0_72, %c0_73], %406 {strides = array<i32>} : memref<2x128xf32, #tpu.memory_space<vmem>>, vector<2x128xf32>,
    return
  }
}

</mosaic_0001>

<llo_original>
// kernel: tpu_custom_call.1
$region0: #{tpu_custom_call.1}
  #allocation0 [shape = 'u32[]', space=smem, size = 0x4, offset = 0x4, fixed_abs, tag = 'smem constant byte address 0x4 - core index']
  #allocation1 [shape = 'u32[144,128]{1,0:T(1,128)}', space=vmem, size = 0x12000, scoped, tag = 'internal scratch']
  %s0 = inlined_call_operand.vmem [shape: f32[8,2,1], index: 0, kind: input, shape index: {}]
  %s1 = inlined_call_operand.vmem [shape: f32[1,384], index: 1, kind: input, shape index: {}]
  %s2 = inlined_call_operand.hbm [shape: f32[128,384], index: 2, kind: input, shape index: {}]
  %s3 = inlined_call_operand.vmem [shape: f32[1,384], index: 3, kind: input, shape index: {}]
  %s4 = inlined_call_operand.vmem [shape: f32[1,128], index: 4, kind: input, shape index: {}]
  %s5 = inlined_call_operand.hbm [shape: f32[256,512], index: 5, kind: input, shape index: {}]
  %s6 = inlined_call_operand.vmem [shape: f32[1,256], index: 6, kind: input, shape index: {}]
  %s7 = inlined_call_operand.vmem [shape: f32[1,128], index: 7, kind: input, shape index: {}]
  %s8 = inlined_call_operand.vmem [shape: f32[1,128], index: 8, kind: input, shape index: {}]
  %s9 = inlined_call_operand.hbm [shape: f32[128,128], index: 9, kind: input, shape index: {}]
  %s10 = inlined_call_operand.vmem [shape: f32[1,128], index: 10, kind: input, shape index: {}]
  %s11 = inlined_call_operand.hbm [shape: f32[2,128], index: 11, kind: output, shape index: {}]
  %s12 = sld [smem:[#allocation0]]
  $region66: #{tpu_custom_call.1} parent=0
    _
  %s14 = ssub.s32 1, %s12
  %s15 = scalar_select 0, %s14, %s12
  $region1: #{tpu_custom_call.1} parent=0
    #allocation2 [shape = 'u8[196608]{0}', space=vmem, size = 0x30000, scoped, tag = 'input window, operand 2, single buffered']
    #allocation3 [shape = 's32[1]{0}', space=sflag, size = 0x4, scoped, tag = 'scoped memory for tpu_custom_call.1']
    #allocation4 [shape = 's32[1]{0}', space=sflag, size = 0x4, scoped, tag = 'scoped memory for tpu_custom_call.1']
    #allocation5 [shape = 'u8[524288]{0}', space=vmem, size = 0x80000, scoped, tag = 'input window, operand 5, single buffered']
    #allocation6 [shape = 's32[1]{0}', space=sflag, size = 0x4, scoped, tag = 'scoped memory for tpu_custom_call.1']
    #allocation7 [shape = 'u8[65536]{0}', space=vmem, size = 0x10000, scoped, tag = 'input window, operand 9, single buffered']
    #allocation8 [shape = 'u8[1024]{0}', space=vmem, size = 0x400, scoped, tag = 'output window, operand 0, single buffered']
    %16 = vsyncpa [#allocation3], 0
    %17 = vsyncpa [#allocation6], 0
    %18 = vsyncpa [#allocation4], 0
    // Predicated region
    $region2: #{tpu_custom_call.1} parent=1 // pred_check
      _
    $region3: #{tpu_custom_call.1} parent=1 // pred_check_branch
      %20 = sbr.rel (0) target = $region5
    $region4: #{tpu_custom_call.1} parent=1 // pred_region
      _
    $region5: #{tpu_custom_call.1} parent=1 // pred_fallthru
      _
    // Predicated region
    $region6: #{tpu_custom_call.1} parent=1 // pred_check
      _
    $region7: #{tpu_custom_call.1} parent=1 // pred_check_branch
      %22 = sbr.rel (0) target = $region9
    $region8: #{tpu_custom_call.1} parent=1 // pred_region
      _
    $region9: #{tpu_custom_call.1} parent=1 // pred_fallthru
      _
    // Predicated region
    $region10: #{tpu_custom_call.1} parent=1 // pred_check
      _
    $region11: #{tpu_custom_call.1} parent=1 // pred_check_branch
      %24 = sbr.rel (0) target = $region13
    $region12: #{tpu_custom_call.1} parent=1 // pred_region
      %s26 = ssub.s32 6144, 6144
      %27 = vsyncadd [#allocation3], %s26
      %s28 = sshll.u32 [#allocation2], 4
      %s29 = int_to_ptr.vmem [resolvable:$true] %s28
      %34 = dma.hbm_to_vmem [thread:$0]  %s2, 6144, %s29, [#allocation3], 384, 384, 24
    $region13: #{tpu_custom_call.1} parent=1 // pred_fallthru
      _
    // Predicated region
    $region14: #{tpu_custom_call.1} parent=1 // pred_check
      _
    $region15: #{tpu_custom_call.1} parent=1 // pred_check_branch
      %36 = sbr.rel (0) target = $region17
    $region16: #{tpu_custom_call.1} parent=1 // pred_region
      _
    $region17: #{tpu_custom_call.1} parent=1 // pred_fallthru
      _
    // Predicated region
    $region18: #{tpu_custom_call.1} parent=1 // pred_check
      _
    $region19: #{tpu_custom_call.1} parent=1 // pred_check_branch
      %38 = sbr.rel (0) target = $region21
    $region20: #{tpu_custom_call.1} parent=1 // pred_region
      _
    $region21: #{tpu_custom_call.1} parent=1 // pred_fallthru
      _
    // Predicated region
    $region22: #{tpu_custom_call.1} parent=1 // pred_check
      _
    $region23: #{tpu_custom_call.1} parent=1 // pred_check_branch
      %40 = sbr.rel (0) target = $region25
    $region24: #{tpu_custom_call.1} parent=1 // pred_region
      %s42 = ssub.s32 16384, 16384
      %43 = vsyncadd [#allocation6], %s42
      %s44 = sshll.u32 [#allocation5], 4
      %s45 = int_to_ptr.vmem [resolvable:$true] %s44
      %50 = dma.hbm_to_vmem [thread:$0]  %s5, 16384, %s45, [#allocation6], 512, 512, 32
    $region25: #{tpu_custom_call.1} parent=1 // pred_fallthru
      _
    // Predicated region
    $region26: #{tpu_custom_call.1} parent=1 // pred_check
      _
    $region27: #{tpu_custom_call.1} parent=1 // pred_check_branch
      %52 = sbr.rel (0) target = $region29
    $region28: #{tpu_custom_call.1} parent=1 // pred_region
      _
    $region29: #{tpu_custom_call.1} parent=1 // pred_fallthru
      _
    // Predicated region
    $region30: #{tpu_custom_call.1} parent=1 // pred_check
      _
    $region31: #{tpu_custom_call.1} parent=1 // pred_check_branch
      %54 = sbr.rel (0) target = $region33
    $region32: #{tpu_custom_call.1} parent=1 // pred_region
      _
    $region33: #{tpu_custom_call.1} parent=1 // pred_fallthru
      _
    // Predicated region
    $region34: #{tpu_custom_call.1} parent=1 // pred_check
      _
    $region35: #{tpu_custom_call.1} parent=1 // pred_check_branch
      %56 = sbr.rel (0) target = $region37
    $region36: #{tpu_custom_call.1} parent=1 // pred_region
      _
    $region37: #{tpu_custom_call.1} parent=1 // pred_fallthru
      _
    // Predicated region
    $region38: #{tpu_custom_call.1} parent=1 // pred_check
      _
    $region39: #{tpu_custom_call.1} parent=1 // pred_check_branch
      %58 = sbr.rel (0) target = $region41
    $region40: #{tpu_custom_call.1} parent=1 // pred_region
      %s60 = ssub.s32 2048, 2048
      %61 = vsyncadd [#allocation6], %s60
      %s62 = sshll.u32 [#allocation7], 4
      %s63 = int_to_ptr.vmem [resolvable:$true] %s62
      %68 = dma.hbm_to_vmem [thread:$0]  %s9, 2048, %s63, [#allocation6], 128, 128, 8
    $region41: #{tpu_custom_call.1} parent=1 // pred_fallthru
      _
    // Predicated region
    $region42: #{tpu_custom_call.1} parent=1 // pred_check
      _
    $region43: #{tpu_custom_call.1} parent=1 // pred_check_branch
      %70 = sbr.rel (0) target = $region45
    $region44: #{tpu_custom_call.1} parent=1 // pred_region
      _
    $region45: #{tpu_custom_call.1} parent=1 // pred_fallthru
      _
    // Predicated region
    $region46: #{tpu_custom_call.1} parent=1 // pred_check
      _
    $region47: #{tpu_custom_call.1} parent=1 // pred_check_branch
      %72 = sbr.rel (0) target = $region49
    $region48: #{tpu_custom_call.1} parent=1 // pred_region
      %73 = dma.done [#allocation3], 6144
    $region49: #{tpu_custom_call.1} parent=1 // pred_fallthru
      _
    // Predicated region
    $region50: #{tpu_custom_call.1} parent=1 // pred_check
      _
    $region51: #{tpu_custom_call.1} parent=1 // pred_check_branch
      %75 = sbr.rel (0) target = $region53
    $region52: #{tpu_custom_call.1} parent=1 // pred_region
      %76 = dma.done [#allocation6], 16384
    $region53: #{tpu_custom_call.1} parent=1 // pred_fallthru
      _
    // Predicated region
    $region54: #{tpu_custom_call.1} parent=1 // pred_check
      _
    $region55: #{tpu_custom_call.1} parent=1 // pred_check_branch
      %78 = sbr.rel (0) target = $region57
    $region56: #{tpu_custom_call.1} parent=1 // pred_region
      %79 = dma.done [#allocation6], 2048
    $region57: #{tpu_custom_call.1} parent=1 // pred_fallthru
      _
    %v80 = vld [vmem:[%s0] sm:$0x3]
    %v81 = vld [vmem:[%s0 + $0x2] sm:$0x3]
    %v82 = vld [vmem:[%s0 + $0x4] sm:$0x3]
    %v83 = vld [vmem:[%s0 + $0x6] sm:$0x3]
    %v84 = vld [vmem:[%s0 + $0x8] sm:$0x3]
    %v85 = vld [vmem:[%s0 + $0xa] sm:$0x3]
    %v86 = vld [vmem:[%s0 + $0xc] sm:$0x3]
    %v87 = vld [vmem:[%s0 + $0xe] sm:$0x3]
    %v88 = vld [vmem:[%s1] sm:$0x7]
    %90 = vset.pattern.permute.xlu0 0
    %91 = vperm.xlu0 %90, %v80
    %v92 = vpop.permute.xlu0 %91
    %95 = vset.pattern.permute.xlu0 0
    %96 = vperm.xlu0 %95, %v81
    %v97 = vpop.permute.xlu0 %96
    %100 = vset.pattern.permute.xlu0 0
    %101 = vperm.xlu0 %100, %v82
    %v102 = vpop.permute.xlu0 %101
    %105 = vset.pattern.permute.xlu0 0
    %106 = vperm.xlu0 %105, %v83
    %v107 = vpop.permute.xlu0 %106
    %110 = vset.pattern.permute.xlu0 0
    %111 = vperm.xlu0 %110, %v84
    %v112 = vpop.permute.xlu0 %111
    %115 = vset.pattern.permute.xlu0 0
    %116 = vperm.xlu0 %115, %v85
    %v117 = vpop.permute.xlu0 %116
    %120 = vset.pattern.permute.xlu0 0
    %121 = vperm.xlu0 %120, %v86
    %v122 = vpop.permute.xlu0 %121
    %125 = vset.pattern.permute.xlu0 0
    %126 = vperm.xlu0 %125, %v87
    %v127 = vpop.permute.xlu0 %126
    %v130 = vlaneseq
    %v131 = vshrl.u32 %v130, 7
    %v132 = vsub.s32 0, %v131
    %v133 = vrot.slane %v88, %v132
    %v134 = vlaneseq
    %v135 = vshrl.u32 %v134, 7
    %v136 = vsub.s32 1, %v135
    %v137 = vrot.slane %v88, %v136
    %v138 = vlaneseq
    %v139 = vshrl.u32 %v138, 7
    %v140 = vsub.s32 2, %v139
    %v141 = vrot.slane %v88, %v140
    %v145 = vmul.f32 %v92, %v133
    %v146 = vmul.f32 %v92, %v137
    %v147 = vmul.f32 %v92, %v141
    %v148 = vmul.f32 %v97, %v133
    %v149 = vmul.f32 %v97, %v137
    %v150 = vmul.f32 %v97, %v141
    %v151 = vmul.f32 %v102, %v133
    %v152 = vmul.f32 %v102, %v137
    %v153 = vmul.f32 %v102, %v141
    %v154 = vmul.f32 %v107, %v133
    %v155 = vmul.f32 %v107, %v137
    %v156 = vmul.f32 %v107, %v141
    %v157 = vmul.f32 %v112, %v133
    %v158 = vmul.f32 %v112, %v137
    %v159 = vmul.f32 %v112, %v141
    %v160 = vmul.f32 %v117, %v133
    %v161 = vmul.f32 %v117, %v137
    %v162 = vmul.f32 %v117, %v141
    %v163 = vmul.f32 %v122, %v133
    %v164 = vmul.f32 %v122, %v137
    %v165 = vmul.f32 %v122, %v141
    %v166 = vmul.f32 %v127, %v133
    %v167 = vmul.f32 %v127, %v137
    %v168 = vmul.f32 %v127, %v141
    %v169 = vld [vmem:[%s3] sm:$0x7]
    %v171 = vlaneseq
    %v172 = vshrl.u32 %v171, 7
    %v173 = vsub.s32 0, %v172
    %v174 = vrot.slane %v169, %v173
    %v175 = vlaneseq
    %v176 = vshrl.u32 %v175, 7
    %v177 = vsub.s32 1, %v176
    %v178 = vrot.slane %v169, %v177
    %v179 = vlaneseq
    %v180 = vshrl.u32 %v179, 7
    %v181 = vsub.s32 2, %v180
    %v182 = vrot.slane %v169, %v181
    %v186 = vadd.f32 %v145, %v174
    %v187 = vadd.f32 %v146, %v178
    %v188 = vadd.f32 %v147, %v182
    %v189 = vadd.f32 %v148, %v174
    %v190 = vadd.f32 %v149, %v178
    %v191 = vadd.f32 %v150, %v182
    %v192 = vadd.f32 %v151, %v174
    %v193 = vadd.f32 %v152, %v178
    %v194 = vadd.f32 %v153, %v182
    %v195 = vadd.f32 %v154, %v174
    %v196 = vadd.f32 %v155, %v178
    %v197 = vadd.f32 %v156, %v182
    %v198 = vadd.f32 %v157, %v174
    %v199 = vadd.f32 %v158, %v178
    %v200 = vadd.f32 %v159, %v182
    %v201 = vadd.f32 %v160, %v174
    %v202 = vadd.f32 %v161, %v178
    %v203 = vadd.f32 %v162, %v182
    %v204 = vadd.f32 %v163, %v174
    %v205 = vadd.f32 %v164, %v178
    %v206 = vadd.f32 %v165, %v182
    %v207 = vadd.f32 %v166, %v174
    %v208 = vadd.f32 %v167, %v178
    %v209 = vadd.f32 %v168, %v182
    %v210 = vld [vmem:[%s4] sm:$0x1]
    %v212 = vlaneseq
    %v213 = vshrl.u32 %v212, 7
    %v214 = vsub.s32 0, %v213
    %v215 = vrot.slane %v210, %v214
    %v217 = vld [vmem:[%s6] sm:$0x3]
    %v219 = vlaneseq
    %v220 = vshrl.u32 %v219, 7
    %v221 = vsub.s32 0, %v220
    %v222 = vrot.slane %v217, %v221
    %v223 = vlaneseq
    %v224 = vshrl.u32 %v223, 7
    %v225 = vsub.s32 1, %v224
    %v226 = vrot.slane %v217, %v225
    %v229 = vld [vmem:[%s7] sm:$0x1]
    %v231 = vlaneseq
    %v232 = vshrl.u32 %v231, 7
    %v233 = vsub.s32 0, %v232
    %v234 = vrot.slane %v229, %v233
    %v236 = vld [vmem:[%s8] sm:$0x1]
    %v238 = vlaneseq
    %v239 = vshrl.u32 %v238, 7
    %v240 = vsub.s32 0, %v239
    %v241 = vrot.slane %v236, %v240
    %v243 = vld [vmem:[#allocation2] sm:$0xff]
    %v244 = vld [vmem:[#allocation2 + $0x8] sm:$0xff]
    %v245 = vld [vmem:[#allocation2 + $0x10] sm:$0xff]
    %v246 = vld [vmem:[#allocation2 + $0x18] sm:$0xff]
    %v247 = vld [vmem:[#allocation2 + $0x20] sm:$0xff]
    %v248 = vld [vmem:[#allocation2 + $0x28] sm:$0xff]
    %v249 = vld [vmem:[#allocation2 + $0x30] sm:$0xff]
    %v250 = vld [vmem:[#allocation2 + $0x38] sm:$0xff]
    %v251 = vld [vmem:[#allocation2 + $0x40] sm:$0xff]
    %v252 = vld [vmem:[#allocation2 + $0x48] sm:$0xff]
    %v253 = vld [vmem:[#allocation2 + $0x50] sm:$0xff]
    %v254 = vld [vmem:[#allocation2 + $0x58] sm:$0xff]
    %v255 = vld [vmem:[#allocation2 + $0x60] sm:$0xff]
    %v256 = vld [vmem:[#allocation2 + $0x68] sm:$0xff]
    %v257 = vld [vmem:[#allocation2 + $0x70] sm:$0xff]
    %v258 = vld [vmem:[#allocation2 + $0x78] sm:$0xff]
    %v259 = vld [vmem:[#allocation2 + $0x80] sm:$0xff]
    %v260 = vld [vmem:[#allocation2 + $0x88] sm:$0xff]
    %v261 = vld [vmem:[#allocation2 + $0x90] sm:$0xff]
    %v262 = vld [vmem:[#allocation2 + $0x98] sm:$0xff]
    %v263 = vld [vmem:[#allocation2 + $0xa0] sm:$0xff]
    %v264 = vld [vmem:[#allocation2 + $0xa8] sm:$0xff]
    %v265 = vld [vmem:[#allocation2 + $0xb0] sm:$0xff]
    %v266 = vld [vmem:[#allocation2 + $0xb8] sm:$0xff]
    %v267 = vld [vmem:[#allocation2 + $0xc0] sm:$0xff]
    %v268 = vld [vmem:[#allocation2 + $0xc8] sm:$0xff]
    %v269 = vld [vmem:[#allocation2 + $0xd0] sm:$0xff]
    %v270 = vld [vmem:[#allocation2 + $0xd8] sm:$0xff]
    %v271 = vld [vmem:[#allocation2 + $0xe0] sm:$0xff]
    %v272 = vld [vmem:[#allocation2 + $0xe8] sm:$0xff]
    %v273 = vld [vmem:[#allocation2 + $0xf0] sm:$0xff]
    %v274 = vld [vmem:[#allocation2 + $0xf8] sm:$0xff]
    %v275 = vld [vmem:[#allocation2 + $0x100] sm:$0xff]
    %v276 = vld [vmem:[#allocation2 + $0x108] sm:$0xff]
    %v277 = vld [vmem:[#allocation2 + $0x110] sm:$0xff]
    %v278 = vld [vmem:[#allocation2 + $0x118] sm:$0xff]
    %v279 = vld [vmem:[#allocation2 + $0x120] sm:$0xff]
    %v280 = vld [vmem:[#allocation2 + $0x128] sm:$0xff]
    %v281 = vld [vmem:[#allocation2 + $0x130] sm:$0xff]
    %v282 = vld [vmem:[#allocation2 + $0x138] sm:$0xff]
    %v283 = vld [vmem:[#allocation2 + $0x140] sm:$0xff]
    %v284 = vld [vmem:[#allocation2 + $0x148] sm:$0xff]
    %v285 = vld [vmem:[#allocation2 + $0x150] sm:$0xff]
    %v286 = vld [vmem:[#allocation2 + $0x158] sm:$0xff]
    %v287 = vld [vmem:[#allocation2 + $0x160] sm:$0xff]
    %v288 = vld [vmem:[#allocation2 + $0x168] sm:$0xff]
    %v289 = vld [vmem:[#allocation2 + $0x170] sm:$0xff]
    %v290 = vld [vmem:[#allocation2 + $0x178] sm:$0xff]
    %v291 = vld [vmem:[#allocation5] sm:$0xff]
    %v292 = vld [vmem:[#allocation5 + $0x8] sm:$0xff]
    %v293 = vld [vmem:[#allocation5 + $0x10] sm:$0xff]
    %v294 = vld [vmem:[#allocation5 + $0x18] sm:$0xff]
    %v295 = vld [vmem:[#allocation5 + $0x20] sm:$0xff]
    %v296 = vld [vmem:[#allocation5 + $0x28] sm:$0xff]
    %v297 = vld [vmem:[#allocation5 + $0x30] sm:$0xff]
    %v298 = vld [vmem:[#allocation5 + $0x38] sm:$0xff]
    %v299 = vld [vmem:[#allocation5 + $0x40] sm:$0xff]
    %v300 = vld [vmem:[#allocation5 + $0x48] sm:$0xff]
    %v301 = vld [vmem:[#allocation5 + $0x50] sm:$0xff]
    %v302 = vld [vmem:[#allocation5 + $0x58] sm:$0xff]
    %v303 = vld [vmem:[#allocation5 + $0x60] sm:$0xff]
    %v304 = vld [vmem:[#allocation5 + $0x68] sm:$0xff]
    %v305 = vld [vmem:[#allocation5 + $0x70] sm:$0xff]
    %v306 = vld [vmem:[#allocation5 + $0x78] sm:$0xff]
    %v307 = vld [vmem:[#allocation5 + $0x80] sm:$0xff]
    %v308 = vld [vmem:[#allocation5 + $0x88] sm:$0xff]
    %v309 = vld [vmem:[#allocation5 + $0x90] sm:$0xff]
    %v310 = vld [vmem:[#allocation5 + $0x98] sm:$0xff]
    %v311 = vld [vmem:[#allocation5 + $0xa0] sm:$0xff]
    %v312 = vld [vmem:[#allocation5 + $0xa8] sm:$0xff]
    %v313 = vld [vmem:[#allocation5 + $0xb0] sm:$0xff]
    %v314 = vld [vmem:[#allocation5 + $0xb8] sm:$0xff]
    %v315 = vld [vmem:[#allocation5 + $0xc0] sm:$0xff]
    %v316 = vld [vmem:[#allocation5 + $0xc8] sm:$0xff]
    %v317 = vld [vmem:[#allocation5 + $0xd0] sm:$0xff]
    %v318 = vld [vmem:[#allocation5 + $0xd8] sm:$0xff]
    %v319 = vld [vmem:[#allocation5 + $0xe0] sm:$0xff]
    %v320 = vld [vmem:[#allocation5 + $0xe8] sm:$0xff]
    %v321 = vld [vmem:[#allocation5 + $0xf0] sm:$0xff]
    %v322 = vld [vmem:[#allocation5 + $0xf8] sm:$0xff]
    %v323 = vld [vmem:[#allocation5 + $0x100] sm:$0xff]
    %v324 = vld [vmem:[#allocation5 + $0x108] sm:$0xff]
    %v325 = vld [vmem:[#allocation5 + $0x110] sm:$0xff]
    %v326 = vld [vmem:[#allocation5 + $0x118] sm:$0xff]
    %v327 = vld [vmem:[#allocation5 + $0x120] sm:$0xff]
    %v328 = vld [vmem:[#allocation5 + $0x128] sm:$0xff]
    %v329 = vld [vmem:[#allocation5 + $0x130] sm:$0xff]
    %v330 = vld [vmem:[#allocation5 + $0x138] sm:$0xff]
    %v331 = vld [vmem:[#allocation5 + $0x140] sm:$0xff]
    %v332 = vld [vmem:[#allocation5 + $0x148] sm:$0xff]
    %v333 = vld [vmem:[#allocation5 + $0x150] sm:$0xff]
    %v334 = vld [vmem:[#allocation5 + $0x158] sm:$0xff]
    %v335 = vld [vmem:[#allocation5 + $0x160] sm:$0xff]
    %v336 = vld [vmem:[#allocation5 + $0x168] sm:$0xff]
    %v337 = vld [vmem:[#allocation5 + $0x170] sm:$0xff]
    %v338 = vld [vmem:[#allocation5 + $0x178] sm:$0xff]
    %v339 = vld [vmem:[#allocation5 + $0x180] sm:$0xff]
    %v340 = vld [vmem:[#allocation5 + $0x188] sm:$0xff]
    %v341 = vld [vmem:[#allocation5 + $0x190] sm:$0xff]
    %v342 = vld [vmem:[#allocation5 + $0x198] sm:$0xff]
    %v343 = vld [vmem:[#allocation5 + $0x1a0] sm:$0xff]
    %v344 = vld [vmem:[#allocation5 + $0x1a8] sm:$0xff]
    %v345 = vld [vmem:[#allocation5 + $0x1b0] sm:$0xff]
    %v346 = vld [vmem:[#allocation5 + $0x1b8] sm:$0xff]
    %v347 = vld [vmem:[#allocation5 + $0x1c0] sm:$0xff]
    %v348 = vld [vmem:[#allocation5 + $0x1c8] sm:$0xff]
    %v349 = vld [vmem:[#allocation5 + $0x1d0] sm:$0xff]
    %v350 = vld [vmem:[#allocation5 + $0x1d8] sm:$0xff]
    %v351 = vld [vmem:[#allocation5 + $0x1e0] sm:$0xff]
    %v352 = vld [vmem:[#allocation5 + $0x1e8] sm:$0xff]
    %v353 = vld [vmem:[#allocation5 + $0x1f0] sm:$0xff]
    %v354 = vld [vmem:[#allocation5 + $0x1f8] sm:$0xff]
    %v355 = vld [vmem:[#allocation5 + $0x200] sm:$0xff]
    %v356 = vld [vmem:[#allocation5 + $0x208] sm:$0xff]
    %v357 = vld [vmem:[#allocation5 + $0x210] sm:$0xff]
    %v358 = vld [vmem:[#allocation5 + $0x218] sm:$0xff]
    %v359 = vld [vmem:[#allocation5 + $0x220] sm:$0xff]
    %v360 = vld [vmem:[#allocation5 + $0x228] sm:$0xff]
    %v361 = vld [vmem:[#allocation5 + $0x230] sm:$0xff]
    %v362 = vld [vmem:[#allocation5 + $0x238] sm:$0xff]
    %v363 = vld [vmem:[#allocation5 + $0x240] sm:$0xff]
    %v364 = vld [vmem:[#allocation5 + $0x248] sm:$0xff]
    %v365 = vld [vmem:[#allocation5 + $0x250] sm:$0xff]
    %v366 = vld [vmem:[#allocation5 + $0x258] sm:$0xff]
    %v367 = vld [vmem:[#allocation5 + $0x260] sm:$0xff]
    %v368 = vld [vmem:[#allocation5 + $0x268] sm:$0xff]
    %v369 = vld [vmem:[#allocation5 + $0x270] sm:$0xff]
    %v370 = vld [vmem:[#allocation5 + $0x278] sm:$0xff]
    %v371 = vld [vmem:[#allocation5 + $0x280] sm:$0xff]
    %v372 = vld [vmem:[#allocation5 + $0x288] sm:$0xff]
    %v373 = vld [vmem:[#allocation5 + $0x290] sm:$0xff]
    %v374 = vld [vmem:[#allocation5 + $0x298] sm:$0xff]
    %v375 = vld [vmem:[#allocation5 + $0x2a0] sm:$0xff]
    %v376 = vld [vmem:[#allocation5 + $0x2a8] sm:$0xff]
    %v377 = vld [vmem:[#allocation5 + $0x2b0] sm:$0xff]
    %v378 = vld [vmem:[#allocation5 + $0x2b8] sm:$0xff]
    %v379 = vld [vmem:[#allocation5 + $0x2c0] sm:$0xff]
    %v380 = vld [vmem:[#allocation5 + $0x2c8] sm:$0xff]
    %v381 = vld [vmem:[#allocation5 + $0x2d0] sm:$0xff]
    %v382 = vld [vmem:[#allocation5 + $0x2d8] sm:$0xff]
    %v383 = vld [vmem:[#allocation5 + $0x2e0] sm:$0xff]
    %v384 = vld [vmem:[#allocation5 + $0x2e8] sm:$0xff]
    %v385 = vld [vmem:[#allocation5 + $0x2f0] sm:$0xff]
    %v386 = vld [vmem:[#allocation5 + $0x2f8] sm:$0xff]
    %v387 = vld [vmem:[#allocation5 + $0x300] sm:$0xff]
    %v388 = vld [vmem:[#allocation5 + $0x308] sm:$0xff]
    %v389 = vld [vmem:[#allocation5 + $0x310] sm:$0xff]
    %v390 = vld [vmem:[#allocation5 + $0x318] sm:$0xff]
    %v391 = vld [vmem:[#allocation5 + $0x320] sm:$0xff]
    %v392 = vld [vmem:[#allocation5 + $0x328] sm:$0xff]
    %v393 = vld [vmem:[#allocation5 + $0x330] sm:$0xff]
    %v394 = vld [vmem:[#allocation5 + $0x338] sm:$0xff]
    %v395 = vld [vmem:[#allocation5 + $0x340] sm:$0xff]
    %v396 = vld [vmem:[#allocation5 + $0x348] sm:$0xff]
    %v397 = vld [vmem:[#allocation5 + $0x350] sm:$0xff]
    %v398 = vld [vmem:[#allocation5 + $0x358] sm:$0xff]
    %v399 = vld [vmem:[#allocation5 + $0x360] sm:$0xff]
    %v400 = vld [vmem:[#allocation5 + $0x368] sm:$0xff]
    %v401 = vld [vmem:[#allocation5 + $0x370] sm:$0xff]
    %v402 = vld [vmem:[#allocation5 + $0x378] sm:$0xff]
    %v403 = vld [vmem:[#allocation5 + $0x380] sm:$0xff]
    %v404 = vld [vmem:[#allocation5 + $0x388] sm:$0xff]
    %v405 = vld [vmem:[#allocation5 + $0x390] sm:$0xff]
    %v406 = vld [vmem:[#allocation5 + $0x398] sm:$0xff]
    %v407 = vld [vmem:[#allocation5 + $0x3a0] sm:$0xff]
    %v408 = vld [vmem:[#allocation5 + $0x3a8] sm:$0xff]
    %v409 = vld [vmem:[#allocation5 + $0x3b0] sm:$0xff]
    %v410 = vld [vmem:[#allocation5 + $0x3b8] sm:$0xff]
    %v411 = vld [vmem:[#allocation5 + $0x3c0] sm:$0xff]
    %v412 = vld [vmem:[#allocation5 + $0x3c8] sm:$0xff]
    %v413 = vld [vmem:[#allocation5 + $0x3d0] sm:$0xff]
    %v414 = vld [vmem:[#allocation5 + $0x3d8] sm:$0xff]
    %v415 = vld [vmem:[#allocation5 + $0x3e0] sm:$0xff]
    %v416 = vld [vmem:[#allocation5 + $0x3e8] sm:$0xff]
    %v417 = vld [vmem:[#allocation5 + $0x3f0] sm:$0xff]
    %v418 = vld [vmem:[#allocation5 + $0x3f8] sm:$0xff]
    %419 = vmatprep.subr.mxu0 %v289
    %420 = vmatpush1.msra.mxu0 %v288
    %421 = vmatprep.subr.mxu0 %v286
    %422 = vmatpush1.msra.mxu0 %v285
    %423 = vmatprep.subr.mxu0 %v283
    %424 = vmatpush1.msra.mxu0 %v282
    %425 = vmatprep.subr.mxu0 %v280
    %426 = vmatpush1.msra.mxu0 %v279
    %427 = vmatprep.subr.mxu0 %v277
    %428 = vmatpush1.msra.mxu0 %v276
    %429 = vmatprep.subr.mxu0 %v274
    %430 = vmatpush1.msra.mxu0 %v273
    %431 = vmatprep.subr.mxu0 %v271
    %432 = vmatpush1.msra.mxu0 %v270
    %433 = vmatprep.subr.mxu0 %v268
    %434 = vmatpush1.msra.mxu0 %v267
    %435 = vmatprep.subr.mxu0 %v265
    %436 = vmatpush1.msra.mxu0 %v264
    %437 = vmatprep.subr.mxu0 %v262
    %438 = vmatpush1.msra.mxu0 %v261
    %439 = vmatprep.subr.mxu0 %v259
    %440 = vmatpush1.msra.mxu0 %v258
    %441 = vmatprep.subr.mxu0 %v256
    %442 = vmatpush1.msra.mxu0 %v255
    %443 = vmatprep.subr.mxu0 %v253
    %444 = vmatpush1.msra.mxu0 %v252
    %445 = vmatprep.subr.mxu0 %v250
    %446 = vmatpush1.msra.mxu0 %v249
    %447 = vmatprep.subr.mxu0 %v247
    %448 = vmatpush1.msra.mxu0 %v246
    %449 = vmatprep.subr.mxu0 %v244
    %450 = vmatpush1.msra.mxu0 %v243
    %451 = vmatprep.subr.mxu0 0.0
    %452 = vmatpush2.msra.mxu0 0.0
    %453 = vmatprep.subr.mxu0 0.0
    %454 = vmatpush2.msra.mxu0 0.0
    %455 = vmatprep.subr.mxu0 0.0
    %456 = vmatpush2.msra.mxu0 0.0
    %457 = vmatprep.subr.mxu0 0.0
    %458 = vmatpush2.msra.mxu0 0.0
    %459 = vmatprep.subr.mxu0 0.0
    %460 = vmatpush2.msra.mxu0 0.0
    %461 = vmatprep.subr.mxu0 0.0
    %462 = vmatpush2.msra.mxu0 0.0
    %463 = vmatprep.subr.mxu0 0.0
    %464 = vmatpush2.msra.mxu0 0.0
    %465 = vmatprep.subr.mxu0 0.0
    %466 = vmatpush2.msra.mxu0 0.0
    %467 = vmatprep.subr.mxu0 0.0
    %468 = vmatpush2.msra.mxu0 0.0
    %469 = vmatprep.subr.mxu0 0.0
    %470 = vmatpush2.msra.mxu0 0.0
    %471 = vmatprep.subr.mxu0 0.0
    %472 = vmatpush2.msra.mxu0 0.0
    %473 = vmatprep.subr.mxu0 0.0
    %474 = vmatpush2.msra.mxu0 0.0
    %475 = vmatprep.subr.mxu0 0.0
    %476 = vmatpush2.msra.mxu0 0.0
    %477 = vmatprep.subr.mxu0 0.0
    %478 = vmatpush2.msra.mxu0 0.0
    %479 = vmatprep.subr.mxu0 0.0
    %480 = vmatpush2.msra.mxu0 0.0
    %481 = vmatprep.subr.mxu0 0.0
    %482 = vmatpush2.msra.mxu0 0.0
    %483 = vmatprep.mubr.f32.mxu0 0.0
    %484 = vmatmul.mubr.f32.gmra.mxu0 0.0
    %v485 = vpop.f32.mrf.mxu0
    %v486 = vadd.f32 0.0, %v485
    %v487 = vpop.f32.mrf.mxu0
    %v488 = vadd.f32 0.0, %v487
    %489 = vdwg.mxu0
    %490 = vmatprep.subr.mxu0 0.0
    %491 = vmatpush1.msra.mxu0 %v290
    %492 = vmatprep.subr.mxu0 0.0
    %493 = vmatpush1.msra.mxu0 %v287
    %494 = vmatprep.subr.mxu0 0.0
    %495 = vmatpush1.msra.mxu0 %v284
    %496 = vmatprep.subr.mxu0 0.0
    %497 = vmatpush1.msra.mxu0 %v281
    %498 = vmatprep.subr.mxu0 0.0
    %499 = vmatpush1.msra.mxu0 %v278
    %500 = vmatprep.subr.mxu0 0.0
    %501 = vmatpush1.msra.mxu0 %v275
    %502 = vmatprep.subr.mxu0 0.0
    %503 = vmatpush1.msra.mxu0 %v272
    %504 = vmatprep.subr.mxu0 0.0
    %505 = vmatpush1.msra.mxu0 %v269
    %506 = vmatprep.subr.mxu0 0.0
    %507 = vmatpush1.msra.mxu0 %v266
    %508 = vmatprep.subr.mxu0 0.0
    %509 = vmatpush1.msra.mxu0 %v263
    %510 = vmatprep.subr.mxu0 0.0
    %511 = vmatpush1.msra.mxu0 %v260
    %512 = vmatprep.subr.mxu0 0.0
    %513 = vmatpush1.msra.mxu0 %v257
    %514 = vmatprep.subr.mxu0 0.0
    %515 = vmatpush1.msra.mxu0 %v254
    %516 = vmatprep.subr.mxu0 0.0
    %517 = vmatpush1.msra.mxu0 %v251
    %518 = vmatprep.subr.mxu0 0.0
    %519 = vmatpush1.msra.mxu0 %v248
    %520 = vmatprep.subr.mxu0 0.0
    %521 = vmatpush1.msra.mxu0 %v245
    %522 = vmatprep.subr.mxu0 0.0
    %523 = vmatpush2.msra.mxu0 0.0
    %524 = vmatprep.subr.mxu0 0.0
    %525 = vmatpush2.msra.mxu0 0.0
    %526 = vmatprep.subr.mxu0 0.0
    %527 = vmatpush2.msra.mxu0 0.0
    %528 = vmatprep.subr.mxu0 0.0
    %529 = vmatpush2.msra.mxu0 0.0
    %530 = vmatprep.subr.mxu0 0.0
    %531 = vmatpush2.msra.mxu0 0.0
    %532 = vmatprep.subr.mxu0 0.0
    %533 = vmatpush2.msra.mxu0 0.0
    %534 = vmatprep.subr.mxu0 0.0
    %535 = vmatpush2.msra.mxu0 0.0
    %536 = vmatprep.subr.mxu0 0.0
    %537 = vmatpush2.msra.mxu0 0.0
    %538 = vmatprep.subr.mxu0 0.0
    %539 = vmatpush2.msra.mxu0 0.0
    %540 = vmatprep.subr.mxu0 0.0
    %541 = vmatpush2.msra.mxu0 0.0
    %542 = vmatprep.subr.mxu0 0.0
    %543 = vmatpush2.msra.mxu0 0.0
    %544 = vmatprep.subr.mxu0 0.0
    %545 = vmatpush2.msra.mxu0 0.0
    %546 = vmatprep.subr.mxu0 0.0
    %547 = vmatpush2.msra.mxu0 0.0
    %548 = vmatprep.subr.mxu0 0.0
    %549 = vmatpush2.msra.mxu0 0.0
    %550 = vmatprep.subr.mxu0 0.0
    %551 = vmatpush2.msra.mxu0 0.0
    %552 = vmatprep.subr.mxu0 0.0
    %553 = vmatpush2.msra.mxu0 0.0
    %554 = vmatprep.mubr.f32.mxu0 0.0
    %555 = vmatmul.mubr.f32.gmra.mxu0 0.0
    %v556 = vpop.f32.mrf.mxu0
    %v557 = vadd.f32 0.0, %v556
    %v558 = vpop.f32.mrf.mxu0
    %559 = vdwg.mxu0
    %v560 = vadd.f32 %v186, %v486
    %v561 = vadd.f32 %v187, %v488
    %v562 = vadd.f32 %v557, %v215
    %v563 = vxor.u32 %v560, 2147483648
    %v564 = vxor.u32 %v561, 2147483648
    %v565 = vmul.f32 %v563, 1.442695
    %v566 = vpow.pop %v565
    %v567 = vmul.f32 %v564, 1.442695
    %v568 = vpow.pop %v567
    %v569 = vadd.f32 %v566, 1.0
    %v570 = vadd.f32 %v568, 1.0
    %v571 = vrcp.pop %v569
    %v572 = vmul.f32 1.0, %v571
    %v573 = vrcp.pop %v570
    %v574 = vmul.f32 1.0, %v573
    %v575 = vmul.f32 %v572, %v562
    %v576 = vadd.f32 %v188, %v575
    %v577 = vtanh.pop %v576
    %v578 = vsub.f32 1.0, %v574
    %v579 = vmul.f32 %v578, %v577
    %v580 = vmul.f32 %v574, 0.0
    %v581 = vadd.f32 %v579, %v580
    %582 = vmatprep.subr.mxu0 %v352
    %583 = vmatpush1.msra.mxu0 %v351
    %584 = vmatprep.subr.mxu0 %v348
    %585 = vmatpush1.msra.mxu0 %v347
    %586 = vmatprep.subr.mxu0 %v344
    %587 = vmatpush1.msra.mxu0 %v343
    %588 = vmatprep.subr.mxu0 %v340
    %589 = vmatpush1.msra.mxu0 %v339
    %590 = vmatprep.subr.mxu0 %v336
    %591 = vmatpush1.msra.mxu0 %v335
    %592 = vmatprep.subr.mxu0 %v332
    %593 = vmatpush1.msra.mxu0 %v331
    %594 = vmatprep.subr.mxu0 %v328
    %595 = vmatpush1.msra.mxu0 %v327
    %596 = vmatprep.subr.mxu0 %v324
    %597 = vmatpush1.msra.mxu0 %v323
    %598 = vmatprep.subr.mxu0 %v320
    %599 = vmatpush1.msra.mxu0 %v319
    %600 = vmatprep.subr.mxu0 %v316
    %601 = vmatpush1.msra.mxu0 %v315
    %602 = vmatprep.subr.mxu0 %v312
    %603 = vmatpush1.msra.mxu0 %v311
    %604 = vmatprep.subr.mxu0 %v308
    %605 = vmatpush1.msra.mxu0 %v307
    %606 = vmatprep.subr.mxu0 %v304
    %607 = vmatpush1.msra.mxu0 %v303
    %608 = vmatprep.subr.mxu0 %v300
    %609 = vmatpush1.msra.mxu0 %v299
    %610 = vmatprep.subr.mxu0 %v296
    %611 = vmatpush1.msra.mxu0 %v295
    %612 = vmatprep.subr.mxu0 %v292
    %613 = vmatpush1.msra.mxu0 %v291
    %614 = vmatprep.subr.mxu0 %v416
    %615 = vmatpush2.msra.mxu0 %v415
    %616 = vmatprep.subr.mxu0 %v412
    %617 = vmatpush2.msra.mxu0 %v411
    %618 = vmatprep.subr.mxu0 %v408
    %619 = vmatpush2.msra.mxu0 %v407
    %620 = vmatprep.subr.mxu0 %v404
    %621 = vmatpush2.msra.mxu0 %v403
    %622 = vmatprep.subr.mxu0 %v400
    %623 = vmatpush2.msra.mxu0 %v399
    %624 = vmatprep.subr.mxu0 %v396
    %625 = vmatpush2.msra.mxu0 %v395
    %626 = vmatprep.subr.mxu0 %v392
    %627 = vmatpush2.msra.mxu0 %v391
    %628 = vmatprep.subr.mxu0 %v388
    %629 = vmatpush2.msra.mxu0 %v387
    %630 = vmatprep.subr.mxu0 %v384
    %631 = vmatpush2.msra.mxu0 %v383
    %632 = vmatprep.subr.mxu0 %v380
    %633 = vmatpush2.msra.mxu0 %v379
    %634 = vmatprep.subr.mxu0 %v376
    %635 = vmatpush2.msra.mxu0 %v375
    %636 = vmatprep.subr.mxu0 %v372
    %637 = vmatpush2.msra.mxu0 %v371
    %638 = vmatprep.subr.mxu0 %v368
    %639 = vmatpush2.msra.mxu0 %v367
    %640 = vmatprep.subr.mxu0 %v364
    %641 = vmatpush2.msra.mxu0 %v363
    %642 = vmatprep.subr.mxu0 %v360
    %643 = vmatpush2.msra.mxu0 %v359
    %644 = vmatprep.subr.mxu0 %v356
    %645 = vmatpush2.msra.mxu0 %v355
    %646 = vmatprep.mubr.f32.mxu0 0.0
    %647 = vmatmul.mubr.f32.gmra.mxu0 %v581
    %v648 = vpop.f32.mrf.mxu0
    %v649 = vadd.f32 0.0, %v648
    %v650 = vpop.f32.mrf.mxu0
    %v651 = vadd.f32 0.0, %v650
    %652 = vdwg.mxu0
    %653 = vmatprep.subr.mxu0 %v354
    %654 = vmatpush1.msra.mxu0 %v353
    %655 = vmatprep.subr.mxu0 %v350
    %656 = vmatpush1.msra.mxu0 %v349
    %657 = vmatprep.subr.mxu0 %v346
    %658 = vmatpush1.msra.mxu0 %v345
    %659 = vmatprep.subr.mxu0 %v342
    %660 = vmatpush1.msra.mxu0 %v341
    %661 = vmatprep.subr.mxu0 %v338
    %662 = vmatpush1.msra.mxu0 %v337
    %663 = vmatprep.subr.mxu0 %v334
    %664 = vmatpush1.msra.mxu0 %v333
    %665 = vmatprep.subr.mxu0 %v330
    %666 = vmatpush1.msra.mxu0 %v329
    %667 = vmatprep.subr.mxu0 %v326
    %668 = vmatpush1.msra.mxu0 %v325
    %669 = vmatprep.subr.mxu0 %v322
    %670 = vmatpush1.msra.mxu0 %v321
    %671 = vmatprep.subr.mxu0 %v318
    %672 = vmatpush1.msra.mxu0 %v317
    %673 = vmatprep.subr.mxu0 %v314
    %674 = vmatpush1.msra.mxu0 %v313
    %675 = vmatprep.subr.mxu0 %v310
    %676 = vmatpush1.msra.mxu0 %v309
    %677 = vmatprep.subr.mxu0 %v306
    %678 = vmatpush1.msra.mxu0 %v305
    %679 = vmatprep.subr.mxu0 %v302
    %680 = vmatpush1.msra.mxu0 %v301
    %681 = vmatprep.subr.mxu0 %v298
    %682 = vmatpush1.msra.mxu0 %v297
    %683 = vmatprep.subr.mxu0 %v294
    %684 = vmatpush1.msra.mxu0 %v293
    %685 = vmatprep.subr.mxu0 %v418
    %686 = vmatpush2.msra.mxu0 %v417
    %687 = vmatprep.subr.mxu0 %v414
    %688 = vmatpush2.msra.mxu0 %v413
    %689 = vmatprep.subr.mxu0 %v410
    %690 = vmatpush2.msra.mxu0 %v409
    %691 = vmatprep.subr.mxu0 %v406
    %692 = vmatpush2.msra.mxu0 %v405
    %693 = vmatprep.subr.mxu0 %v402
    %694 = vmatpush2.msra.mxu0 %v401
    %695 = vmatprep.subr.mxu0 %v398
    %696 = vmatpush2.msra.mxu0 %v397
    %697 = vmatprep.subr.mxu0 %v394
    %698 = vmatpush2.msra.mxu0 %v393
    %699 = vmatprep.subr.mxu0 %v390
    %700 = vmatpush2.msra.mxu0 %v389
    %701 = vmatprep.subr.mxu0 %v386
    %702 = vmatpush2.msra.mxu0 %v385
    %703 = vmatprep.subr.mxu0 %v382
    %704 = vmatpush2.msra.mxu0 %v381
    %705 = vmatprep.subr.mxu0 %v378
    %706 = vmatpush2.msra.mxu0 %v377
    %707 = vmatprep.subr.mxu0 %v374
    %708 = vmatpush2.msra.mxu0 %v373
    %709 = vmatprep.subr.mxu0 %v370
    %710 = vmatpush2.msra.mxu0 %v369
    %711 = vmatprep.subr.mxu0 %v366
    %712 = vmatpush2.msra.mxu0 %v365
    %713 = vmatprep.subr.mxu0 %v362
    %714 = vmatpush2.msra.mxu0 %v361
    %715 = vmatprep.subr.mxu0 %v358
    %716 = vmatpush2.msra.mxu0 %v357
    %717 = vmatprep.mubr.f32.mxu0 0.0
    %718 = vmatmul.mubr.f32.gmra.mxu0 %v581
    %v719 = vpop.f32.mrf.mxu0
    %v720 = vadd.f32 0.0, %v719
    %v721 = vpop.f32.mrf.mxu0
    %v722 = vadd.f32 0.0, %v721
    %723 = vdwg.mxu0
    %v724 = vadd.f32 %v649, %v222
    %v725 = vadd.f32 %v651, %v226
    %v726 = vadd.f32 %v720, %v234
    %v727 = vadd.f32 %v722, %v241
    %v728 = vxor.u32 %v724, 2147483648
    %v729 = vxor.u32 %v725, 2147483648
    %v730 = vmul.f32 %v728, 1.442695
    %v731 = vpow.pop %v730
    %v732 = vmul.f32 %v729, 1.442695
    %v733 = vpow.pop %v732
    %v734 = vadd.f32 %v731, 1.0
    %v735 = vadd.f32 %v733, 1.0
    %v736 = vrcp.pop %v734
    %v737 = vmul.f32 1.0, %v736
    %v738 = vrcp.pop %v735
    %v739 = vmul.f32 1.0, %v738
    %v740 = vmul.f32 %v737, %v727
    %v741 = vadd.f32 %v726, %v740
    %v742 = vtanh.pop %v741
    %v743 = vsub.f32 1.0, %v739
    %v744 = vmul.f32 %v743, %v742
    %v745 = vmul.f32 %v739, 0.0
    %v746 = vadd.f32 %v744, %v745
    %747 = vmatprep.subr.mxu0 %v289
    %748 = vmatpush1.msra.mxu0 %v288
    %749 = vmatprep.subr.mxu0 %v286
    %750 = vmatpush1.msra.mxu0 %v285
    %751 = vmatprep.subr.mxu0 %v283
    %752 = vmatpush1.msra.mxu0 %v282
    %753 = vmatprep.subr.mxu0 %v280
    %754 = vmatpush1.msra.mxu0 %v279
    %755 = vmatprep.subr.mxu0 %v277
    %756 = vmatpush1.msra.mxu0 %v276
    %757 = vmatprep.subr.mxu0 %v274
    %758 = vmatpush1.msra.mxu0 %v273
    %759 = vmatprep.subr.mxu0 %v271
    %760 = vmatpush1.msra.mxu0 %v270
    %761 = vmatprep.subr.mxu0 %v268
    %762 = vmatpush1.msra.mxu0 %v267
    %763 = vmatprep.subr.mxu0 %v265
    %764 = vmatpush1.msra.mxu0 %v264
    %765 = vmatprep.subr.mxu0 %v262
    %766 = vmatpush1.msra.mxu0 %v261
    %767 = vmatprep.subr.mxu0 %v259
    %768 = vmatpush1.msra.mxu0 %v258
    %769 = vmatprep.subr.mxu0 %v256
    %770 = vmatpush1.msra.mxu0 %v255
    %771 = vmatprep.subr.mxu0 %v253
    %772 = vmatpush1.msra.mxu0 %v252
    %773 = vmatprep.subr.mxu0 %v250
    %774 = vmatpush1.msra.mxu0 %v249
    %775 = vmatprep.subr.mxu0 %v247
    %776 = vmatpush1.msra.mxu0 %v246
    %777 = vmatprep.subr.mxu0 %v244
    %778 = vmatpush1.msra.mxu0 %v243
    %779 = vmatprep.subr.mxu0 0.0
    %780 = vmatpush2.msra.mxu0 0.0
    %781 = vmatprep.subr.mxu0 0.0
    %782 = vmatpush2.msra.mxu0 0.0
    %783 = vmatprep.subr.mxu0 0.0
    %784 = vmatpush2.msra.mxu0 0.0
    %785 = vmatprep.subr.mxu0 0.0
    %786 = vmatpush2.msra.mxu0 0.0
    %787 = vmatprep.subr.mxu0 0.0
    %788 = vmatpush2.msra.mxu0 0.0
    %789 = vmatprep.subr.mxu0 0.0
    %790 = vmatpush2.msra.mxu0 0.0
    %791 = vmatprep.subr.mxu0 0.0
    %792 = vmatpush2.msra.mxu0 0.0
    %793 = vmatprep.subr.mxu0 0.0
    %794 = vmatpush2.msra.mxu0 0.0
    %795 = vmatprep.subr.mxu0 0.0
    %796 = vmatpush2.msra.mxu0 0.0
    %797 = vmatprep.subr.mxu0 0.0
    %798 = vmatpush2.msra.mxu0 0.0
    %799 = vmatprep.subr.mxu0 0.0
    %800 = vmatpush2.msra.mxu0 0.0
    %801 = vmatprep.subr.mxu0 0.0
    %802 = vmatpush2.msra.mxu0 0.0
    %803 = vmatprep.subr.mxu0 0.0
    %804 = vmatpush2.msra.mxu0 0.0
    %805 = vmatprep.subr.mxu0 0.0
    %806 = vmatpush2.msra.mxu0 0.0
    %807 = vmatprep.subr.mxu0 0.0
    %808 = vmatpush2.msra.mxu0 0.0
    %809 = vmatprep.subr.mxu0 0.0
    %810 = vmatpush2.msra.mxu0 0.0
    %811 = vmatprep.mubr.f32.mxu0 0.0
    %812 = vmatmul.mubr.f32.gmra.mxu0 %v581
    %v813 = vpop.f32.mrf.mxu0
    %v814 = vadd.f32 0.0, %v813
    %v815 = vpop.f32.mrf.mxu0
    %v816 = vadd.f32 0.0, %v815
    %817 = vdwg.mxu0
    %818 = vmatprep.subr.mxu0 0.0
    %819 = vmatpush1.msra.mxu0 %v290
    %820 = vmatprep.subr.mxu0 0.0
    %821 = vmatpush1.msra.mxu0 %v287
    %822 = vmatprep.subr.mxu0 0.0
    %823 = vmatpush1.msra.mxu0 %v284
    %824 = vmatprep.subr.mxu0 0.0
    %825 = vmatpush1.msra.mxu0 %v281
    %826 = vmatprep.subr.mxu0 0.0
    %827 = vmatpush1.msra.mxu0 %v278
    %828 = vmatprep.subr.mxu0 0.0
    %829 = vmatpush1.msra.mxu0 %v275
    %830 = vmatprep.subr.mxu0 0.0
    %831 = vmatpush1.msra.mxu0 %v272
    %832 = vmatprep.subr.mxu0 0.0
    %833 = vmatpush1.msra.mxu0 %v269
    %834 = vmatprep.subr.mxu0 0.0
    %835 = vmatpush1.msra.mxu0 %v266
    %836 = vmatprep.subr.mxu0 0.0
    %837 = vmatpush1.msra.mxu0 %v263
    %838 = vmatprep.subr.mxu0 0.0
    %839 = vmatpush1.msra.mxu0 %v260
    %840 = vmatprep.subr.mxu0 0.0
    %841 = vmatpush1.msra.mxu0 %v257
    %842 = vmatprep.subr.mxu0 0.0
    %843 = vmatpush1.msra.mxu0 %v254
    %844 = vmatprep.subr.mxu0 0.0
    %845 = vmatpush1.msra.mxu0 %v251
    %846 = vmatprep.subr.mxu0 0.0
    %847 = vmatpush1.msra.mxu0 %v248
    %848 = vmatprep.subr.mxu0 0.0
    %849 = vmatpush1.msra.mxu0 %v245
    %850 = vmatprep.subr.mxu0 0.0
    %851 = vmatpush2.msra.mxu0 0.0
    %852 = vmatprep.subr.mxu0 0.0
    %853 = vmatpush2.msra.mxu0 0.0
    %854 = vmatprep.subr.mxu0 0.0
    %855 = vmatpush2.msra.mxu0 0.0
    %856 = vmatprep.subr.mxu0 0.0
    %857 = vmatpush2.msra.mxu0 0.0
    %858 = vmatprep.subr.mxu0 0.0
    %859 = vmatpush2.msra.mxu0 0.0
    %860 = vmatprep.subr.mxu0 0.0
    %861 = vmatpush2.msra.mxu0 0.0
    %862 = vmatprep.subr.mxu0 0.0
    %863 = vmatpush2.msra.mxu0 0.0
    %864 = vmatprep.subr.mxu0 0.0
    %865 = vmatpush2.msra.mxu0 0.0
    %866 = vmatprep.subr.mxu0 0.0
    %867 = vmatpush2.msra.mxu0 0.0
    %868 = vmatprep.subr.mxu0 0.0
    %869 = vmatpush2.msra.mxu0 0.0
    %870 = vmatprep.subr.mxu0 0.0
    %871 = vmatpush2.msra.mxu0 0.0
    %872 = vmatprep.subr.mxu0 0.0
    %873 = vmatpush2.msra.mxu0 0.0
    %874 = vmatprep.subr.mxu0 0.0
    %875 = vmatpush2.msra.mxu0 0.0
    %876 = vmatprep.subr.mxu0 0.0
    %877 = vmatpush2.msra.mxu0 0.0
    %878 = vmatprep.subr.mxu0 0.0
    %879 = vmatpush2.msra.mxu0 0.0
    %880 = vmatprep.subr.mxu0 0.0
    %881 = vmatpush2.msra.mxu0 0.0
    %882 = vmatprep.mubr.f32.mxu0 0.0
    %883 = vmatmul.mubr.f32.gmra.mxu0 %v581
    %v884 = vpop.f32.mrf.mxu0
    %v885 = vadd.f32 0.0, %v884
    %v886 = vpop.f32.mrf.mxu0
    %887 = vdwg.mxu0
    %v888 = vadd.f32 %v189, %v814
    %v889 = vadd.f32 %v190, %v816
    %v890 = vadd.f32 %v885, %v215
    %v891 = vxor.u32 %v888, 2147483648
    %v892 = vxor.u32 %v889, 2147483648
    %v893 = vmul.f32 %v891, 1.442695
    %v894 = vpow.pop %v893
    %v895 = vmul.f32 %v892, 1.442695
    %v896 = vpow.pop %v895
    %v897 = vadd.f32 %v894, 1.0
    %v898 = vadd.f32 %v896, 1.0
    %v899 = vrcp.pop %v897
    %v900 = vmul.f32 1.0, %v899
    %v901 = vrcp.pop %v898
    %v902 = vmul.f32 1.0, %v901
    %v903 = vmul.f32 %v900, %v890
    %v904 = vadd.f32 %v191, %v903
    %v905 = vtanh.pop %v904
    %v906 = vsub.f32 1.0, %v902
    %v907 = vmul.f32 %v906, %v905
    %v908 = vmul.f32 %v902, %v581
    %v909 = vadd.f32 %v907, %v908
    %910 = vmatprep.subr.mxu0 %v352
    %911 = vmatpush1.msra.mxu0 %v351
    %912 = vmatprep.subr.mxu0 %v348
    %913 = vmatpush1.msra.mxu0 %v347
    %914 = vmatprep.subr.mxu0 %v344
    %915 = vmatpush1.msra.mxu0 %v343
    %916 = vmatprep.subr.mxu0 %v340
    %917 = vmatpush1.msra.mxu0 %v339
    %918 = vmatprep.subr.mxu0 %v336
    %919 = vmatpush1.msra.mxu0 %v335
    %920 = vmatprep.subr.mxu0 %v332
    %921 = vmatpush1.msra.mxu0 %v331
    %922 = vmatprep.subr.mxu0 %v328
    %923 = vmatpush1.msra.mxu0 %v327
    %924 = vmatprep.subr.mxu0 %v324
    %925 = vmatpush1.msra.mxu0 %v323
    %926 = vmatprep.subr.mxu0 %v320
    %927 = vmatpush1.msra.mxu0 %v319
    %928 = vmatprep.subr.mxu0 %v316
    %929 = vmatpush1.msra.mxu0 %v315
    %930 = vmatprep.subr.mxu0 %v312
    %931 = vmatpush1.msra.mxu0 %v311
    %932 = vmatprep.subr.mxu0 %v308
    %933 = vmatpush1.msra.mxu0 %v307
    %934 = vmatprep.subr.mxu0 %v304
    %935 = vmatpush1.msra.mxu0 %v303
    %936 = vmatprep.subr.mxu0 %v300
    %937 = vmatpush1.msra.mxu0 %v299
    %938 = vmatprep.subr.mxu0 %v296
    %939 = vmatpush1.msra.mxu0 %v295
    %940 = vmatprep.subr.mxu0 %v292
    %941 = vmatpush1.msra.mxu0 %v291
    %942 = vmatprep.subr.mxu0 %v416
    %943 = vmatpush2.msra.mxu0 %v415
    %944 = vmatprep.subr.mxu0 %v412
    %945 = vmatpush2.msra.mxu0 %v411
    %946 = vmatprep.subr.mxu0 %v408
    %947 = vmatpush2.msra.mxu0 %v407
    %948 = vmatprep.subr.mxu0 %v404
    %949 = vmatpush2.msra.mxu0 %v403
    %950 = vmatprep.subr.mxu0 %v400
    %951 = vmatpush2.msra.mxu0 %v399
    %952 = vmatprep.subr.mxu0 %v396
    %953 = vmatpush2.msra.mxu0 %v395
    %954 = vmatprep.subr.mxu0 %v392
    %955 = vmatpush2.msra.mxu0 %v391
    %956 = vmatprep.subr.mxu0 %v388
    %957 = vmatpush2.msra.mxu0 %v387
    %958 = vmatprep.subr.mxu0 %v384
    %959 = vmatpush2.msra.mxu0 %v383
    %960 = vmatprep.subr.mxu0 %v380
    %961 = vmatpush2.msra.mxu0 %v379
    %962 = vmatprep.subr.mxu0 %v376
    %963 = vmatpush2.msra.mxu0 %v375
    %964 = vmatprep.subr.mxu0 %v372
    %965 = vmatpush2.msra.mxu0 %v371
    %966 = vmatprep.subr.mxu0 %v368
    %967 = vmatpush2.msra.mxu0 %v367
    %968 = vmatprep.subr.mxu0 %v364
    %969 = vmatpush2.msra.mxu0 %v363
    %970 = vmatprep.subr.mxu0 %v360
    %971 = vmatpush2.msra.mxu0 %v359
    %972 = vmatprep.subr.mxu0 %v356
    %973 = vmatpush2.msra.mxu0 %v355
    %974 = vmatprep.mubr.f32.mxu0 %v746
    %975 = vmatmul.mubr.f32.gmra.mxu0 %v909
    %v976 = vpop.f32.mrf.mxu0
    %v977 = vadd.f32 0.0, %v976
    %v978 = vpop.f32.mrf.mxu0
    %v979 = vadd.f32 0.0, %v978
    %980 = vdwg.mxu0
    %981 = vmatprep.subr.mxu0 %v354
    %982 = vmatpush1.msra.mxu0 %v353
    %983 = vmatprep.subr.mxu0 %v350
    %984 = vmatpush1.msra.mxu0 %v349
    %985 = vmatprep.subr.mxu0 %v346
    %986 = vmatpush1.msra.mxu0 %v345
    %987 = vmatprep.subr.mxu0 %v342
    %988 = vmatpush1.msra.mxu0 %v341
    %989 = vmatprep.subr.mxu0 %v338
    %990 = vmatpush1.msra.mxu0 %v337
    %991 = vmatprep.subr.mxu0 %v334
    %992 = vmatpush1.msra.mxu0 %v333
    %993 = vmatprep.subr.mxu0 %v330
    %994 = vmatpush1.msra.mxu0 %v329
    %995 = vmatprep.subr.mxu0 %v326
    %996 = vmatpush1.msra.mxu0 %v325
    %997 = vmatprep.subr.mxu0 %v322
    %998 = vmatpush1.msra.mxu0 %v321
    %999 = vmatprep.subr.mxu0 %v318
    %1000 = vmatpush1.msra.mxu0 %v317
    %1001 = vmatprep.subr.mxu0 %v314
    %1002 = vmatpush1.msra.mxu0 %v313
    %1003 = vmatprep.subr.mxu0 %v310
    %1004 = vmatpush1.msra.mxu0 %v309
    %1005 = vmatprep.subr.mxu0 %v306
    %1006 = vmatpush1.msra.mxu0 %v305
    %1007 = vmatprep.subr.mxu0 %v302
    %1008 = vmatpush1.msra.mxu0 %v301
    %1009 = vmatprep.subr.mxu0 %v298
    %1010 = vmatpush1.msra.mxu0 %v297
    %1011 = vmatprep.subr.mxu0 %v294
    %1012 = vmatpush1.msra.mxu0 %v293
    %1013 = vmatprep.subr.mxu0 %v418
    %1014 = vmatpush2.msra.mxu0 %v417
    %1015 = vmatprep.subr.mxu0 %v414
    %1016 = vmatpush2.msra.mxu0 %v413
    %1017 = vmatprep.subr.mxu0 %v410
    %1018 = vmatpush2.msra.mxu0 %v409
    %1019 = vmatprep.subr.mxu0 %v406
    %1020 = vmatpush2.msra.mxu0 %v405
    %1021 = vmatprep.subr.mxu0 %v402
    %1022 = vmatpush2.msra.mxu0 %v401
    %1023 = vmatprep.subr.mxu0 %v398
    %1024 = vmatpush2.msra.mxu0 %v397
    %1025 = vmatprep.subr.mxu0 %v394
    %1026 = vmatpush2.msra.mxu0 %v393
    %1027 = vmatprep.subr.mxu0 %v390
    %1028 = vmatpush2.msra.mxu0 %v389
    %1029 = vmatprep.subr.mxu0 %v386
    %1030 = vmatpush2.msra.mxu0 %v385
    %1031 = vmatprep.subr.mxu0 %v382
    %1032 = vmatpush2.msra.mxu0 %v381
    %1033 = vmatprep.subr.mxu0 %v378
    %1034 = vmatpush2.msra.mxu0 %v377
    %1035 = vmatprep.subr.mxu0 %v374
    %1036 = vmatpush2.msra.mxu0 %v373
    %1037 = vmatprep.subr.mxu0 %v370
    %1038 = vmatpush2.msra.mxu0 %v369
    %1039 = vmatprep.subr.mxu0 %v366
    %1040 = vmatpush2.msra.mxu0 %v365
    %1041 = vmatprep.subr.mxu0 %v362
    %1042 = vmatpush2.msra.mxu0 %v361
    %1043 = vmatprep.subr.mxu0 %v358
    %1044 = vmatpush2.msra.mxu0 %v357
    %1045 = vmatprep.mubr.f32.mxu0 %v746
    %1046 = vmatmul.mubr.f32.gmra.mxu0 %v909
    %v1047 = vpop.f32.mrf.mxu0
    %v1048 = vadd.f32 0.0, %v1047
    %v1049 = vpop.f32.mrf.mxu0
    %v1050 = vadd.f32 0.0, %v1049
    %1051 = vdwg.mxu0
    %v1052 = vadd.f32 %v977, %v222
    %v1053 = vadd.f32 %v979, %v226
    %v1054 = vadd.f32 %v1048, %v234
    %v1055 = vadd.f32 %v1050, %v241
    %v1056 = vxor.u32 %v1052, 2147483648
    %v1057 = vxor.u32 %v1053, 2147483648
    %v1058 = vmul.f32 %v1056, 1.442695
    %v1059 = vpow.pop %v1058
    %v1060 = vmul.f32 %v1057, 1.442695
    %v1061 = vpow.pop %v1060
    %v1062 = vadd.f32 %v1059, 1.0
    %v1063 = vadd.f32 %v1061, 1.0
    %v1064 = vrcp.pop %v1062
    %v1065 = vmul.f32 1.0, %v1064
    %v1066 = vrcp.pop %v1063
    %v1067 = vmul.f32 1.0, %v1066
    %v1068 = vmul.f32 %v1065, %v1055
    %v1069 = vadd.f32 %v1054, %v1068
    %v1070 = vtanh.pop %v1069
    %v1071 = vsub.f32 1.0, %v1067
    %v1072 = vmul.f32 %v1071, %v1070
    %v1073 = vmul.f32 %v1067, %v746
    %v1074 = vadd.f32 %v1072, %v1073
    %1075 = vmatprep.subr.mxu0 %v289
    %1076 = vmatpush1.msra.mxu0 %v288
    %1077 = vmatprep.subr.mxu0 %v286
    %1078 = vmatpush1.msra.mxu0 %v285
    %1079 = vmatprep.subr.mxu0 %v283
    %1080 = vmatpush1.msra.mxu0 %v282
    %1081 = vmatprep.subr.mxu0 %v280
    %1082 = vmatpush1.msra.mxu0 %v279
    %1083 = vmatprep.subr.mxu0 %v277
    %1084 = vmatpush1.msra.mxu0 %v276
    %1085 = vmatprep.subr.mxu0 %v274
    %1086 = vmatpush1.msra.mxu0 %v273
    %1087 = vmatprep.subr.mxu0 %v271
    %1088 = vmatpush1.msra.mxu0 %v270
    %1089 = vmatprep.subr.mxu0 %v268
    %1090 = vmatpush1.msra.mxu0 %v267
    %1091 = vmatprep.subr.mxu0 %v265
    %1092 = vmatpush1.msra.mxu0 %v264
    %1093 = vmatprep.subr.mxu0 %v262
    %1094 = vmatpush1.msra.mxu0 %v261
    %1095 = vmatprep.subr.mxu0 %v259
    %1096 = vmatpush1.msra.mxu0 %v258
    %1097 = vmatprep.subr.mxu0 %v256
    %1098 = vmatpush1.msra.mxu0 %v255
    %1099 = vmatprep.subr.mxu0 %v253
    %1100 = vmatpush1.msra.mxu0 %v252
    %1101 = vmatprep.subr.mxu0 %v250
    %1102 = vmatpush1.msra.mxu0 %v249
    %1103 = vmatprep.subr.mxu0 %v247
    %1104 = vmatpush1.msra.mxu0 %v246
    %1105 = vmatprep.subr.mxu0 %v244
    %1106 = vmatpush1.msra.mxu0 %v243
    %1107 = vmatprep.subr.mxu0 0.0
    %1108 = vmatpush2.msra.mxu0 0.0
    %1109 = vmatprep.subr.mxu0 0.0
    %1110 = vmatpush2.msra.mxu0 0.0
    %1111 = vmatprep.subr.mxu0 0.0
    %1112 = vmatpush2.msra.mxu0 0.0
    %1113 = vmatprep.subr.mxu0 0.0
    %1114 = vmatpush2.msra.mxu0 0.0
    %1115 = vmatprep.subr.mxu0 0.0
    %1116 = vmatpush2.msra.mxu0 0.0
    %1117 = vmatprep.subr.mxu0 0.0
    %1118 = vmatpush2.msra.mxu0 0.0
    %1119 = vmatprep.subr.mxu0 0.0
    %1120 = vmatpush2.msra.mxu0 0.0
    %1121 = vmatprep.subr.mxu0 0.0
    %1122 = vmatpush2.msra.mxu0 0.0
    %1123 = vmatprep.subr.mxu0 0.0
    %1124 = vmatpush2.msra.mxu0 0.0
    %1125 = vmatprep.subr.mxu0 0.0
    %1126 = vmatpush2.msra.mxu0 0.0
    %1127 = vmatprep.subr.mxu0 0.0
    %1128 = vmatpush2.msra.mxu0 0.0
    %1129 = vmatprep.subr.mxu0 0.0
    %1130 = vmatpush2.msra.mxu0 0.0
    %1131 = vmatprep.subr.mxu0 0.0
    %1132 = vmatpush2.msra.mxu0 0.0
    %1133 = vmatprep.subr.mxu0 0.0
    %1134 = vmatpush2.msra.mxu0 0.0
    %1135 = vmatprep.subr.mxu0 0.0
    %1136 = vmatpush2.msra.mxu0 0.0
    %1137 = vmatprep.subr.mxu0 0.0
    %1138 = vmatpush2.msra.mxu0 0.0
    %1139 = vmatprep.mubr.f32.mxu0 0.0
    %1140 = vmatmul.mubr.f32.gmra.mxu0 %v909
    %v1141 = vpop.f32.mrf.mxu0
    %v1142 = vadd.f32 0.0, %v1141
    %v1143 = vpop.f32.mrf.mxu0
    %v1144 = vadd.f32 0.0, %v1143
    %1145 = vdwg.mxu0
    %1146 = vmatprep.subr.mxu0 0.0
    %1147 = vmatpush1.msra.mxu0 %v290
    %1148 = vmatprep.subr.mxu0 0.0
    %1149 = vmatpush1.msra.mxu0 %v287
    %1150 = vmatprep.subr.mxu0 0.0
    %1151 = vmatpush1.msra.mxu0 %v284
    %1152 = vmatprep.subr.mxu0 0.0
    %1153 = vmatpush1.msra.mxu0 %v281
    %1154 = vmatprep.subr.mxu0 0.0
    %1155 = vmatpush1.msra.mxu0 %v278
    %1156 = vmatprep.subr.mxu0 0.0
    %1157 = vmatpush1.msra.mxu0 %v275
    %1158 = vmatprep.subr.mxu0 0.0
    %1159 = vmatpush1.msra.mxu0 %v272
    %1160 = vmatprep.subr.mxu0 0.0
    %1161 = vmatpush1.msra.mxu0 %v269
    %1162 = vmatprep.subr.mxu0 0.0
    %1163 = vmatpush1.msra.mxu0 %v266
    %1164 = vmatprep.subr.mxu0 0.0
    %1165 = vmatpush1.msra.mxu0 %v263
    %1166 = vmatprep.subr.mxu0 0.0
    %1167 = vmatpush1.msra.mxu0 %v260
    %1168 = vmatprep.subr.mxu0 0.0
    %1169 = vmatpush1.msra.mxu0 %v257
    %1170 = vmatprep.subr.mxu0 0.0
    %1171 = vmatpush1.msra.mxu0 %v254
    %1172 = vmatprep.subr.mxu0 0.0
    %1173 = vmatpush1.msra.mxu0 %v251
    %1174 = vmatprep.subr.mxu0 0.0
    %1175 = vmatpush1.msra.mxu0 %v248
    %1176 = vmatprep.subr.mxu0 0.0
    %1177 = vmatpush1.msra.mxu0 %v245
    %1178 = vmatprep.subr.mxu0 0.0
    %1179 = vmatpush2.msra.mxu0 0.0
    %1180 = vmatprep.subr.mxu0 0.0
    %1181 = vmatpush2.msra.mxu0 0.0
    %1182 = vmatprep.subr.mxu0 0.0
    %1183 = vmatpush2.msra.mxu0 0.0
    %1184 = vmatprep.subr.mxu0 0.0
    %1185 = vmatpush2.msra.mxu0 0.0
    %1186 = vmatprep.subr.mxu0 0.0
    %1187 = vmatpush2.msra.mxu0 0.0
    %1188 = vmatprep.subr.mxu0 0.0
    %1189 = vmatpush2.msra.mxu0 0.0
    %1190 = vmatprep.subr.mxu0 0.0
    %1191 = vmatpush2.msra.mxu0 0.0
    %1192 = vmatprep.subr.mxu0 0.0
    %1193 = vmatpush2.msra.mxu0 0.0
    %1194 = vmatprep.subr.mxu0 0.0
    %1195 = vmatpush2.msra.mxu0 0.0
    %1196 = vmatprep.subr.mxu0 0.0
    %1197 = vmatpush2.msra.mxu0 0.0
    %1198 = vmatprep.subr.mxu0 0.0
    %1199 = vmatpush2.msra.mxu0 0.0
    %1200 = vmatprep.subr.mxu0 0.0
    %1201 = vmatpush2.msra.mxu0 0.0
    %1202 = vmatprep.subr.mxu0 0.0
    %1203 = vmatpush2.msra.mxu0 0.0
    %1204 = vmatprep.subr.mxu0 0.0
    %1205 = vmatpush2.msra.mxu0 0.0
    %1206 = vmatprep.subr.mxu0 0.0
    %1207 = vmatpush2.msra.mxu0 0.0
    %1208 = vmatprep.subr.mxu0 0.0
    %1209 = vmatpush2.msra.mxu0 0.0
    %1210 = vmatprep.mubr.f32.mxu0 0.0
    %1211 = vmatmul.mubr.f32.gmra.mxu0 %v909
    %v1212 = vpop.f32.mrf.mxu0
    %v1213 = vadd.f32 0.0, %v1212
    %v1214 = vpop.f32.mrf.mxu0
    %1215 = vdwg.mxu0
    %v1216 = vadd.f32 %v192, %v1142
    %v1217 = vadd.f32 %v193, %v1144
    %v1218 = vadd.f32 %v1213, %v215
    %v1219 = vxor.u32 %v1216, 2147483648
    %v1220 = vxor.u32 %v1217, 2147483648
    %v1221 = vmul.f32 %v1219, 1.442695
    %v1222 = vpow.pop %v1221
    %v1223 = vmul.f32 %v1220, 1.442695
    %v1224 = vpow.pop %v1223
    %v1225 = vadd.f32 %v1222, 1.0
    %v1226 = vadd.f32 %v1224, 1.0
    %v1227 = vrcp.pop %v1225
    %v1228 = vmul.f32 1.0, %v1227
    %v1229 = vrcp.pop %v1226
    %v1230 = vmul.f32 1.0, %v1229
    %v1231 = vmul.f32 %v1228, %v1218
    %v1232 = vadd.f32 %v194, %v1231
    %v1233 = vtanh.pop %v1232
    %v1234 = vsub.f32 1.0, %v1230
    %v1235 = vmul.f32 %v1234, %v1233
    %v1236 = vmul.f32 %v1230, %v909
    %v1237 = vadd.f32 %v1235, %v1236
    %1238 = vmatprep.subr.mxu0 %v352
    %1239 = vmatpush1.msra.mxu0 %v351
    %1240 = vmatprep.subr.mxu0 %v348
    %1241 = vmatpush1.msra.mxu0 %v347
    %1242 = vmatprep.subr.mxu0 %v344
    %1243 = vmatpush1.msra.mxu0 %v343
    %1244 = vmatprep.subr.mxu0 %v340
    %1245 = vmatpush1.msra.mxu0 %v339
    %1246 = vmatprep.subr.mxu0 %v336
    %1247 = vmatpush1.msra.mxu0 %v335
    %1248 = vmatprep.subr.mxu0 %v332
    %1249 = vmatpush1.msra.mxu0 %v331
    %1250 = vmatprep.subr.mxu0 %v328
    %1251 = vmatpush1.msra.mxu0 %v327
    %1252 = vmatprep.subr.mxu0 %v324
    %1253 = vmatpush1.msra.mxu0 %v323
    %1254 = vmatprep.subr.mxu0 %v320
    %1255 = vmatpush1.msra.mxu0 %v319
    %1256 = vmatprep.subr.mxu0 %v316
    %1257 = vmatpush1.msra.mxu0 %v315
    %1258 = vmatprep.subr.mxu0 %v312
    %1259 = vmatpush1.msra.mxu0 %v311
    %1260 = vmatprep.subr.mxu0 %v308
    %1261 = vmatpush1.msra.mxu0 %v307
    %1262 = vmatprep.subr.mxu0 %v304
    %1263 = vmatpush1.msra.mxu0 %v303
    %1264 = vmatprep.subr.mxu0 %v300
    %1265 = vmatpush1.msra.mxu0 %v299
    %1266 = vmatprep.subr.mxu0 %v296
    %1267 = vmatpush1.msra.mxu0 %v295
    %1268 = vmatprep.subr.mxu0 %v292
    %1269 = vmatpush1.msra.mxu0 %v291
    %1270 = vmatprep.subr.mxu0 %v416
    %1271 = vmatpush2.msra.mxu0 %v415
    %1272 = vmatprep.subr.mxu0 %v412
    %1273 = vmatpush2.msra.mxu0 %v411
    %1274 = vmatprep.subr.mxu0 %v408
    %1275 = vmatpush2.msra.mxu0 %v407
    %1276 = vmatprep.subr.mxu0 %v404
    %1277 = vmatpush2.msra.mxu0 %v403
    %1278 = vmatprep.subr.mxu0 %v400
    %1279 = vmatpush2.msra.mxu0 %v399
    %1280 = vmatprep.subr.mxu0 %v396
    %1281 = vmatpush2.msra.mxu0 %v395
    %1282 = vmatprep.subr.mxu0 %v392
    %1283 = vmatpush2.msra.mxu0 %v391
    %1284 = vmatprep.subr.mxu0 %v388
    %1285 = vmatpush2.msra.mxu0 %v387
    %1286 = vmatprep.subr.mxu0 %v384
    %1287 = vmatpush2.msra.mxu0 %v383
    %1288 = vmatprep.subr.mxu0 %v380
    %1289 = vmatpush2.msra.mxu0 %v379
    %1290 = vmatprep.subr.mxu0 %v376
    %1291 = vmatpush2.msra.mxu0 %v375
    %1292 = vmatprep.subr.mxu0 %v372
    %1293 = vmatpush2.msra.mxu0 %v371
    %1294 = vmatprep.subr.mxu0 %v368
    %1295 = vmatpush2.msra.mxu0 %v367
    %1296 = vmatprep.subr.mxu0 %v364
    %1297 = vmatpush2.msra.mxu0 %v363
    %1298 = vmatprep.subr.mxu0 %v360
    %1299 = vmatpush2.msra.mxu0 %v359
    %1300 = vmatprep.subr.mxu0 %v356
    %1301 = vmatpush2.msra.mxu0 %v355
    %1302 = vmatprep.mubr.f32.mxu0 %v1074
    %1303 = vmatmul.mubr.f32.gmra.mxu0 %v1237
    %v1304 = vpop.f32.mrf.mxu0
    %v1305 = vadd.f32 0.0, %v1304
    %v1306 = vpop.f32.mrf.mxu0
    %v1307 = vadd.f32 0.0, %v1306
    %1308 = vdwg.mxu0
    %1309 = vmatprep.subr.mxu0 %v354
    %1310 = vmatpush1.msra.mxu0 %v353
    %1311 = vmatprep.subr.mxu0 %v350
    %1312 = vmatpush1.msra.mxu0 %v349
    %1313 = vmatprep.subr.mxu0 %v346
    %1314 = vmatpush1.msra.mxu0 %v345
    %1315 = vmatprep.subr.mxu0 %v342
    %1316 = vmatpush1.msra.mxu0 %v341
    %1317 = vmatprep.subr.mxu0 %v338
    %1318 = vmatpush1.msra.mxu0 %v337
    %1319 = vmatprep.subr.mxu0 %v334
    %1320 = vmatpush1.msra.mxu0 %v333
    %1321 = vmatprep.subr.mxu0 %v330
    %1322 = vmatpush1.msra.mxu0 %v329
    %1323 = vmatprep.subr.mxu0 %v326
    %1324 = vmatpush1.msra.mxu0 %v325
    %1325 = vmatprep.subr.mxu0 %v322
    %1326 = vmatpush1.msra.mxu0 %v321
    %1327 = vmatprep.subr.mxu0 %v318
    %1328 = vmatpush1.msra.mxu0 %v317
    %1329 = vmatprep.subr.mxu0 %v314
    %1330 = vmatpush1.msra.mxu0 %v313
    %1331 = vmatprep.subr.mxu0 %v310
    %1332 = vmatpush1.msra.mxu0 %v309
    %1333 = vmatprep.subr.mxu0 %v306
    %1334 = vmatpush1.msra.mxu0 %v305
    %1335 = vmatprep.subr.mxu0 %v302
    %1336 = vmatpush1.msra.mxu0 %v301
    %1337 = vmatprep.subr.mxu0 %v298
    %1338 = vmatpush1.msra.mxu0 %v297
    %1339 = vmatprep.subr.mxu0 %v294
    %1340 = vmatpush1.msra.mxu0 %v293
    %1341 = vmatprep.subr.mxu0 %v418
    %1342 = vmatpush2.msra.mxu0 %v417
    %1343 = vmatprep.subr.mxu0 %v414
    %1344 = vmatpush2.msra.mxu0 %v413
    %1345 = vmatprep.subr.mxu0 %v410
    %1346 = vmatpush2.msra.mxu0 %v409
    %1347 = vmatprep.subr.mxu0 %v406
    %1348 = vmatpush2.msra.mxu0 %v405
    %1349 = vmatprep.subr.mxu0 %v402
    %1350 = vmatpush2.msra.mxu0 %v401
    %1351 = vmatprep.subr.mxu0 %v398
    %1352 = vmatpush2.msra.mxu0 %v397
    %1353 = vmatprep.subr.mxu0 %v394
    %1354 = vmatpush2.msra.mxu0 %v393
    %1355 = vmatprep.subr.mxu0 %v390
    %1356 = vmatpush2.msra.mxu0 %v389
    %1357 = vmatprep.subr.mxu0 %v386
    %1358 = vmatpush2.msra.mxu0 %v385
    %1359 = vmatprep.subr.mxu0 %v382
    %1360 = vmatpush2.msra.mxu0 %v381
    %1361 = vmatprep.subr.mxu0 %v378
    %1362 = vmatpush2.msra.mxu0 %v377
    %1363 = vmatprep.subr.mxu0 %v374
    %1364 = vmatpush2.msra.mxu0 %v373
    %1365 = vmatprep.subr.mxu0 %v370
    %1366 = vmatpush2.msra.mxu0 %v369
    %1367 = vmatprep.subr.mxu0 %v366
    %1368 = vmatpush2.msra.mxu0 %v365
    %1369 = vmatprep.subr.mxu0 %v362
    %1370 = vmatpush2.msra.mxu0 %v361
    %1371 = vmatprep.subr.mxu0 %v358
    %1372 = vmatpush2.msra.mxu0 %v357
    %1373 = vmatprep.mubr.f32.mxu0 %v1074
    %1374 = vmatmul.mubr.f32.gmra.mxu0 %v1237
    %v1375 = vpop.f32.mrf.mxu0
    %v1376 = vadd.f32 0.0, %v1375
    %v1377 = vpop.f32.mrf.mxu0
    %v1378 = vadd.f32 0.0, %v1377
    %1379 = vdwg.mxu0
    %v1380 = vadd.f32 %v1305, %v222
    %v1381 = vadd.f32 %v1307, %v226
    %v1382 = vadd.f32 %v1376, %v234
    %v1383 = vadd.f32 %v1378, %v241
    %v1384 = vxor.u32 %v1380, 2147483648
    %v1385 = vxor.u32 %v1381, 2147483648
    %v1386 = vmul.f32 %v1384, 1.442695
    %v1387 = vpow.pop %v1386
    %v1388 = vmul.f32 %v1385, 1.442695
    %v1389 = vpow.pop %v1388
    %v1390 = vadd.f32 %v1387, 1.0
    %v1391 = vadd.f32 %v1389, 1.0
    %v1392 = vrcp.pop %v1390
    %v1393 = vmul.f32 1.0, %v1392
    %v1394 = vrcp.pop %v1391
    %v1395 = vmul.f32 1.0, %v1394
    %v1396 = vmul.f32 %v1393, %v1383
    %v1397 = vadd.f32 %v1382, %v1396
    %v1398 = vtanh.pop %v1397
    %v1399 = vsub.f32 1.0, %v1395
    %v1400 = vmul.f32 %v1399, %v1398
    %v1401 = vmul.f32 %v1395, %v1074
    %v1402 = vadd.f32 %v1400, %v1401
    %1403 = vmatprep.subr.mxu0 %v289
    %1404 = vmatpush1.msra.mxu0 %v288
    %1405 = vmatprep.subr.mxu0 %v286
    %1406 = vmatpush1.msra.mxu0 %v285
    %1407 = vmatprep.subr.mxu0 %v283
    %1408 = vmatpush1.msra.mxu0 %v282
    %1409 = vmatprep.subr.mxu0 %v280
    %1410 = vmatpush1.msra.mxu0 %v279
    %1411 = vmatprep.subr.mxu0 %v277
    %1412 = vmatpush1.msra.mxu0 %v276
    %1413 = vmatprep.subr.mxu0 %v274
    %1414 = vmatpush1.msra.mxu0 %v273
    %1415 = vmatprep.subr.mxu0 %v271
    %1416 = vmatpush1.msra.mxu0 %v270
    %1417 = vmatprep.subr.mxu0 %v268
    %1418 = vmatpush1.msra.mxu0 %v267
    %1419 = vmatprep.subr.mxu0 %v265
    %1420 = vmatpush1.msra.mxu0 %v264
    %1421 = vmatprep.subr.mxu0 %v262
    %1422 = vmatpush1.msra.mxu0 %v261
    %1423 = vmatprep.subr.mxu0 %v259
    %1424 = vmatpush1.msra.mxu0 %v258
    %1425 = vmatprep.subr.mxu0 %v256
    %1426 = vmatpush1.msra.mxu0 %v255
    %1427 = vmatprep.subr.mxu0 %v253
    %1428 = vmatpush1.msra.mxu0 %v252
    %1429 = vmatprep.subr.mxu0 %v250
    %1430 = vmatpush1.msra.mxu0 %v249
    %1431 = vmatprep.subr.mxu0 %v247
    %1432 = vmatpush1.msra.mxu0 %v246
    %1433 = vmatprep.subr.mxu0 %v244
    %1434 = vmatpush1.msra.mxu0 %v243
    %1435 = vmatprep.subr.mxu0 0.0
    %1436 = vmatpush2.msra.mxu0 0.0
    %1437 = vmatprep.subr.mxu0 0.0
    %1438 = vmatpush2.msra.mxu0 0.0
    %1439 = vmatprep.subr.mxu0 0.0
    %1440 = vmatpush2.msra.mxu0 0.0
    %1441 = vmatprep.subr.mxu0 0.0
    %1442 = vmatpush2.msra.mxu0 0.0
    %1443 = vmatprep.subr.mxu0 0.0
    %1444 = vmatpush2.msra.mxu0 0.0
    %1445 = vmatprep.subr.mxu0 0.0
    %1446 = vmatpush2.msra.mxu0 0.0
    %1447 = vmatprep.subr.mxu0 0.0
    %1448 = vmatpush2.msra.mxu0 0.0
    %1449 = vmatprep.subr.mxu0 0.0
    %1450 = vmatpush2.msra.mxu0 0.0
    %1451 = vmatprep.subr.mxu0 0.0
    %1452 = vmatpush2.msra.mxu0 0.0
    %1453 = vmatprep.subr.mxu0 0.0
    %1454 = vmatpush2.msra.mxu0 0.0
    %1455 = vmatprep.subr.mxu0 0.0
    %1456 = vmatpush2.msra.mxu0 0.0
    %1457 = vmatprep.subr.mxu0 0.0
    %1458 = vmatpush2.msra.mxu0 0.0
    %1459 = vmatprep.subr.mxu0 0.0
    %1460 = vmatpush2.msra.mxu0 0.0
    %1461 = vmatprep.subr.mxu0 0.0
    %1462 = vmatpush2.msra.mxu0 0.0
    %1463 = vmatprep.subr.mxu0 0.0
    %1464 = vmatpush2.msra.mxu0 0.0
    %1465 = vmatprep.subr.mxu0 0.0
    %1466 = vmatpush2.msra.mxu0 0.0
    %1467 = vmatprep.mubr.f32.mxu0 0.0
    %1468 = vmatmul.mubr.f32.gmra.mxu0 %v1237
    %v1469 = vpop.f32.mrf.mxu0
    %v1470 = vadd.f32 0.0, %v1469
    %v1471 = vpop.f32.mrf.mxu0
    %v1472 = vadd.f32 0.0, %v1471
    %1473 = vdwg.mxu0
    %1474 = vmatprep.subr.mxu0 0.0
    %1475 = vmatpush1.msra.mxu0 %v290
    %1476 = vmatprep.subr.mxu0 0.0
    %1477 = vmatpush1.msra.mxu0 %v287
    %1478 = vmatprep.subr.mxu0 0.0
    %1479 = vmatpush1.msra.mxu0 %v284
    %1480 = vmatprep.subr.mxu0 0.0
    %1481 = vmatpush1.msra.mxu0 %v281
    %1482 = vmatprep.subr.mxu0 0.0
    %1483 = vmatpush1.msra.mxu0 %v278
    %1484 = vmatprep.subr.mxu0 0.0
    %1485 = vmatpush1.msra.mxu0 %v275
    %1486 = vmatprep.subr.mxu0 0.0
    %1487 = vmatpush1.msra.mxu0 %v272
    %1488 = vmatprep.subr.mxu0 0.0
    %1489 = vmatpush1.msra.mxu0 %v269
    %1490 = vmatprep.subr.mxu0 0.0
    %1491 = vmatpush1.msra.mxu0 %v266
    %1492 = vmatprep.subr.mxu0 0.0
    %1493 = vmatpush1.msra.mxu0 %v263
    %1494 = vmatprep.subr.mxu0 0.0
    %1495 = vmatpush1.msra.mxu0 %v260
    %1496 = vmatprep.subr.mxu0 0.0
    %1497 = vmatpush1.msra.mxu0 %v257
    %1498 = vmatprep.subr.mxu0 0.0
    %1499 = vmatpush1.msra.mxu0 %v254
    %1500 = vmatprep.subr.mxu0 0.0
    %1501 = vmatpush1.msra.mxu0 %v251
    %1502 = vmatprep.subr.mxu0 0.0
    %1503 = vmatpush1.msra.mxu0 %v248
    %1504 = vmatprep.subr.mxu0 0.0
    %1505 = vmatpush1.msra.mxu0 %v245
    %1506 = vmatprep.subr.mxu0 0.0
    %1507 = vmatpush2.msra.mxu0 0.0
    %1508 = vmatprep.subr.mxu0 0.0
    %1509 = vmatpush2.msra.mxu0 0.0
    %1510 = vmatprep.subr.mxu0 0.0
    %1511 = vmatpush2.msra.mxu0 0.0
    %1512 = vmatprep.subr.mxu0 0.0
    %1513 = vmatpush2.msra.mxu0 0.0
    %1514 = vmatprep.subr.mxu0 0.0
    %1515 = vmatpush2.msra.mxu0 0.0
    %1516 = vmatprep.subr.mxu0 0.0
    %1517 = vmatpush2.msra.mxu0 0.0
    %1518 = vmatprep.subr.mxu0 0.0
    %1519 = vmatpush2.msra.mxu0 0.0
    %1520 = vmatprep.subr.mxu0 0.0
    %1521 = vmatpush2.msra.mxu0 0.0
    %1522 = vmatprep.subr.mxu0 0.0
    %1523 = vmatpush2.msra.mxu0 0.0
    %1524 = vmatprep.subr.mxu0 0.0
    %1525 = vmatpush2.msra.mxu0 0.0
    %1526 = vmatprep.subr.mxu0 0.0
    %1527 = vmatpush2.msra.mxu0 0.0
    %1528 = vmatprep.subr.mxu0 0.0
    %1529 = vmatpush2.msra.mxu0 0.0
    %1530 = vmatprep.subr.mxu0 0.0
    %1531 = vmatpush2.msra.mxu0 0.0
    %1532 = vmatprep.subr.mxu0 0.0
    %1533 = vmatpush2.msra.mxu0 0.0
    %1534 = vmatprep.subr.mxu0 0.0
    %1535 = vmatpush2.msra.mxu0 0.0
    %1536 = vmatprep.subr.mxu0 0.0
    %1537 = vmatpush2.msra.mxu0 0.0
    %1538 = vmatprep.mubr.f32.mxu0 0.0
    %1539 = vmatmul.mubr.f32.gmra.mxu0 %v1237
    %v1540 = vpop.f32.mrf.mxu0
    %v1541 = vadd.f32 0.0, %v1540
    %v1542 = vpop.f32.mrf.mxu0
    %1543 = vdwg.mxu0
    %v1544 = vadd.f32 %v195, %v1470
    %v1545 = vadd.f32 %v196, %v1472
    %v1546 = vadd.f32 %v1541, %v215
    %v1547 = vxor.u32 %v1544, 2147483648
    %v1548 = vxor.u32 %v1545, 2147483648
    %v1549 = vmul.f32 %v1547, 1.442695
    %v1550 = vpow.pop %v1549
    %v1551 = vmul.f32 %v1548, 1.442695
    %v1552 = vpow.pop %v1551
    %v1553 = vadd.f32 %v1550, 1.0
    %v1554 = vadd.f32 %v1552, 1.0
    %v1555 = vrcp.pop %v1553
    %v1556 = vmul.f32 1.0, %v1555
    %v1557 = vrcp.pop %v1554
    %v1558 = vmul.f32 1.0, %v1557
    %v1559 = vmul.f32 %v1556, %v1546
    %v1560 = vadd.f32 %v197, %v1559
    %v1561 = vtanh.pop %v1560
    %v1562 = vsub.f32 1.0, %v1558
    %v1563 = vmul.f32 %v1562, %v1561
    %v1564 = vmul.f32 %v1558, %v1237
    %v1565 = vadd.f32 %v1563, %v1564
    %1566 = vmatprep.subr.mxu0 %v352
    %1567 = vmatpush1.msra.mxu0 %v351
    %1568 = vmatprep.subr.mxu0 %v348
    %1569 = vmatpush1.msra.mxu0 %v347
    %1570 = vmatprep.subr.mxu0 %v344
    %1571 = vmatpush1.msra.mxu0 %v343
    %1572 = vmatprep.subr.mxu0 %v340
    %1573 = vmatpush1.msra.mxu0 %v339
    %1574 = vmatprep.subr.mxu0 %v336
    %1575 = vmatpush1.msra.mxu0 %v335
    %1576 = vmatprep.subr.mxu0 %v332
    %1577 = vmatpush1.msra.mxu0 %v331
    %1578 = vmatprep.subr.mxu0 %v328
    %1579 = vmatpush1.msra.mxu0 %v327
    %1580 = vmatprep.subr.mxu0 %v324
    %1581 = vmatpush1.msra.mxu0 %v323
    %1582 = vmatprep.subr.mxu0 %v320
    %1583 = vmatpush1.msra.mxu0 %v319
    %1584 = vmatprep.subr.mxu0 %v316
    %1585 = vmatpush1.msra.mxu0 %v315
    %1586 = vmatprep.subr.mxu0 %v312
    %1587 = vmatpush1.msra.mxu0 %v311
    %1588 = vmatprep.subr.mxu0 %v308
    %1589 = vmatpush1.msra.mxu0 %v307
    %1590 = vmatprep.subr.mxu0 %v304
    %1591 = vmatpush1.msra.mxu0 %v303
    %1592 = vmatprep.subr.mxu0 %v300
    %1593 = vmatpush1.msra.mxu0 %v299
    %1594 = vmatprep.subr.mxu0 %v296
    %1595 = vmatpush1.msra.mxu0 %v295
    %1596 = vmatprep.subr.mxu0 %v292
    %1597 = vmatpush1.msra.mxu0 %v291
    %1598 = vmatprep.subr.mxu0 %v416
    %1599 = vmatpush2.msra.mxu0 %v415
    %1600 = vmatprep.subr.mxu0 %v412
    %1601 = vmatpush2.msra.mxu0 %v411
    %1602 = vmatprep.subr.mxu0 %v408
    %1603 = vmatpush2.msra.mxu0 %v407
    %1604 = vmatprep.subr.mxu0 %v404
    %1605 = vmatpush2.msra.mxu0 %v403
    %1606 = vmatprep.subr.mxu0 %v400
    %1607 = vmatpush2.msra.mxu0 %v399
    %1608 = vmatprep.subr.mxu0 %v396
    %1609 = vmatpush2.msra.mxu0 %v395
    %1610 = vmatprep.subr.mxu0 %v392
    %1611 = vmatpush2.msra.mxu0 %v391
    %1612 = vmatprep.subr.mxu0 %v388
    %1613 = vmatpush2.msra.mxu0 %v387
    %1614 = vmatprep.subr.mxu0 %v384
    %1615 = vmatpush2.msra.mxu0 %v383
    %1616 = vmatprep.subr.mxu0 %v380
    %1617 = vmatpush2.msra.mxu0 %v379
    %1618 = vmatprep.subr.mxu0 %v376
    %1619 = vmatpush2.msra.mxu0 %v375
    %1620 = vmatprep.subr.mxu0 %v372
    %1621 = vmatpush2.msra.mxu0 %v371
    %1622 = vmatprep.subr.mxu0 %v368
    %1623 = vmatpush2.msra.mxu0 %v367
    %1624 = vmatprep.subr.mxu0 %v364
    %1625 = vmatpush2.msra.mxu0 %v363
    %1626 = vmatprep.subr.mxu0 %v360
    %1627 = vmatpush2.msra.mxu0 %v359
    %1628 = vmatprep.subr.mxu0 %v356
    %1629 = vmatpush2.msra.mxu0 %v355
    %1630 = vmatprep.mubr.f32.mxu0 %v1402
    %1631 = vmatmul.mubr.f32.gmra.mxu0 %v1565
    %v1632 = vpop.f32.mrf.mxu0
    %v1633 = vadd.f32 0.0, %v1632
    %v1634 = vpop.f32.mrf.mxu0
    %v1635 = vadd.f32 0.0, %v1634
    %1636 = vdwg.mxu0
    %1637 = vmatprep.subr.mxu0 %v354
    %1638 = vmatpush1.msra.mxu0 %v353
    %1639 = vmatprep.subr.mxu0 %v350
    %1640 = vmatpush1.msra.mxu0 %v349
    %1641 = vmatprep.subr.mxu0 %v346
    %1642 = vmatpush1.msra.mxu0 %v345
    %1643 = vmatprep.subr.mxu0 %v342
    %1644 = vmatpush1.msra.mxu0 %v341
    %1645 = vmatprep.subr.mxu0 %v338
    %1646 = vmatpush1.msra.mxu0 %v337
    %1647 = vmatprep.subr.mxu0 %v334
    %1648 = vmatpush1.msra.mxu0 %v333
    %1649 = vmatprep.subr.mxu0 %v330
    %1650 = vmatpush1.msra.mxu0 %v329
    %1651 = vmatprep.subr.mxu0 %v326
    %1652 = vmatpush1.msra.mxu0 %v325
    %1653 = vmatprep.subr.mxu0 %v322
    %1654 = vmatpush1.msra.mxu0 %v321
    %1655 = vmatprep.subr.mxu0 %v318
    %1656 = vmatpush1.msra.mxu0 %v317
    %1657 = vmatprep.subr.mxu0 %v314
    %1658 = vmatpush1.msra.mxu0 %v313
    %1659 = vmatprep.subr.mxu0 %v310
    %1660 = vmatpush1.msra.mxu0 %v309
    %1661 = vmatprep.subr.mxu0 %v306
    %1662 = vmatpush1.msra.mxu0 %v305
    %1663 = vmatprep.subr.mxu0 %v302
    %1664 = vmatpush1.msra.mxu0 %v301
    %1665 = vmatprep.subr.mxu0 %v298
    %1666 = vmatpush1.msra.mxu0 %v297
    %1667 = vmatprep.subr.mxu0 %v294
    %1668 = vmatpush1.msra.mxu0 %v293
    %1669 = vmatprep.subr.mxu0 %v418
    %1670 = vmatpush2.msra.mxu0 %v417
    %1671 = vmatprep.subr.mxu0 %v414
    %1672 = vmatpush2.msra.mxu0 %v413
    %1673 = vmatprep.subr.mxu0 %v410
    %1674 = vmatpush2.msra.mxu0 %v409
    %1675 = vmatprep.subr.mxu0 %v406
    %1676 = vmatpush2.msra.mxu0 %v405
    %1677 = vmatprep.subr.mxu0 %v402
    %1678 = vmatpush2.msra.mxu0 %v401
    %1679 = vmatprep.subr.mxu0 %v398
    %1680 = vmatpush2.msra.mxu0 %v397
    %1681 = vmatprep.subr.mxu0 %v394
    %1682 = vmatpush2.msra.mxu0 %v393
    %1683 = vmatprep.subr.mxu0 %v390
    %1684 = vmatpush2.msra.mxu0 %v389
    %1685 = vmatprep.subr.mxu0 %v386
    %1686 = vmatpush2.msra.mxu0 %v385
    %1687 = vmatprep.subr.mxu0 %v382
    %1688 = vmatpush2.msra.mxu0 %v381
    %1689 = vmatprep.subr.mxu0 %v378
    %1690 = vmatpush2.msra.mxu0 %v377
    %1691 = vmatprep.subr.mxu0 %v374
    %1692 = vmatpush2.msra.mxu0 %v373
    %1693 = vmatprep.subr.mxu0 %v370
    %1694 = vmatpush2.msra.mxu0 %v369
    %1695 = vmatprep.subr.mxu0 %v366
    %1696 = vmatpush2.msra.mxu0 %v365
    %1697 = vmatprep.subr.mxu0 %v362
    %1698 = vmatpush2.msra.mxu0 %v361
    %1699 = vmatprep.subr.mxu0 %v358
    %1700 = vmatpush2.msra.mxu0 %v357
    %1701 = vmatprep.mubr.f32.mxu0 %v1402
    %1702 = vmatmul.mubr.f32.gmra.mxu0 %v1565
    %v1703 = vpop.f32.mrf.mxu0
    %v1704 = vadd.f32 0.0, %v1703
    %v1705 = vpop.f32.mrf.mxu0
    %v1706 = vadd.f32 0.0, %v1705
    %1707 = vdwg.mxu0
    %v1708 = vadd.f32 %v1633, %v222
    %v1709 = vadd.f32 %v1635, %v226
    %v1710 = vadd.f32 %v1704, %v234
    %v1711 = vadd.f32 %v1706, %v241
    %v1712 = vxor.u32 %v1708, 2147483648
    %v1713 = vxor.u32 %v1709, 2147483648
    %v1714 = vmul.f32 %v1712, 1.442695
    %v1715 = vpow.pop %v1714
    %v1716 = vmul.f32 %v1713, 1.442695
    %v1717 = vpow.pop %v1716
    %v1718 = vadd.f32 %v1715, 1.0
    %v1719 = vadd.f32 %v1717, 1.0
    %v1720 = vrcp.pop %v1718
    %v1721 = vmul.f32 1.0, %v1720
    %v1722 = vrcp.pop %v1719
    %v1723 = vmul.f32 1.0, %v1722
    %v1724 = vmul.f32 %v1721, %v1711
    %v1725 = vadd.f32 %v1710, %v1724
    %v1726 = vtanh.pop %v1725
    %v1727 = vsub.f32 1.0, %v1723
    %v1728 = vmul.f32 %v1727, %v1726
    %v1729 = vmul.f32 %v1723, %v1402
    %v1730 = vadd.f32 %v1728, %v1729
    %1731 = vmatprep.subr.mxu0 %v289
    %1732 = vmatpush1.msra.mxu0 %v288
    %1733 = vmatprep.subr.mxu0 %v286
    %1734 = vmatpush1.msra.mxu0 %v285
    %1735 = vmatprep.subr.mxu0 %v283
    %1736 = vmatpush1.msra.mxu0 %v282
    %1737 = vmatprep.subr.mxu0 %v280
    %1738 = vmatpush1.msra.mxu0 %v279
    %1739 = vmatprep.subr.mxu0 %v277
    %1740 = vmatpush1.msra.mxu0 %v276
    %1741 = vmatprep.subr.mxu0 %v274
    %1742 = vmatpush1.msra.mxu0 %v273
    %1743 = vmatprep.subr.mxu0 %v271
    %1744 = vmatpush1.msra.mxu0 %v270
    %1745 = vmatprep.subr.mxu0 %v268
    %1746 = vmatpush1.msra.mxu0 %v267
    %1747 = vmatprep.subr.mxu0 %v265
    %1748 = vmatpush1.msra.mxu0 %v264
    %1749 = vmatprep.subr.mxu0 %v262
    %1750 = vmatpush1.msra.mxu0 %v261
    %1751 = vmatprep.subr.mxu0 %v259
    %1752 = vmatpush1.msra.mxu0 %v258
    %1753 = vmatprep.subr.mxu0 %v256
    %1754 = vmatpush1.msra.mxu0 %v255
    %1755 = vmatprep.subr.mxu0 %v253
    %1756 = vmatpush1.msra.mxu0 %v252
    %1757 = vmatprep.subr.mxu0 %v250
    %1758 = vmatpush1.msra.mxu0 %v249
    %1759 = vmatprep.subr.mxu0 %v247
    %1760 = vmatpush1.msra.mxu0 %v246
    %1761 = vmatprep.subr.mxu0 %v244
    %1762 = vmatpush1.msra.mxu0 %v243
    %1763 = vmatprep.subr.mxu0 0.0
    %1764 = vmatpush2.msra.mxu0 0.0
    %1765 = vmatprep.subr.mxu0 0.0
    %1766 = vmatpush2.msra.mxu0 0.0
    %1767 = vmatprep.subr.mxu0 0.0
    %1768 = vmatpush2.msra.mxu0 0.0
    %1769 = vmatprep.subr.mxu0 0.0
    %1770 = vmatpush2.msra.mxu0 0.0
    %1771 = vmatprep.subr.mxu0 0.0
    %1772 = vmatpush2.msra.mxu0 0.0
    %1773 = vmatprep.subr.mxu0 0.0
    %1774 = vmatpush2.msra.mxu0 0.0
    %1775 = vmatprep.subr.mxu0 0.0
    %1776 = vmatpush2.msra.mxu0 0.0
    %1777 = vmatprep.subr.mxu0 0.0
    %1778 = vmatpush2.msra.mxu0 0.0
    %1779 = vmatprep.subr.mxu0 0.0
    %1780 = vmatpush2.msra.mxu0 0.0
    %1781 = vmatprep.subr.mxu0 0.0
    %1782 = vmatpush2.msra.mxu0 0.0
    %1783 = vmatprep.subr.mxu0 0.0
    %1784 = vmatpush2.msra.mxu0 0.0
    %1785 = vmatprep.subr.mxu0 0.0
    %1786 = vmatpush2.msra.mxu0 0.0
    %1787 = vmatprep.subr.mxu0 0.0
    %1788 = vmatpush2.msra.mxu0 0.0
    %1789 = vmatprep.subr.mxu0 0.0
    %1790 = vmatpush2.msra.mxu0 0.0
    %1791 = vmatprep.subr.mxu0 0.0
    %1792 = vmatpush2.msra.mxu0 0.0
    %1793 = vmatprep.subr.mxu0 0.0
    %1794 = vmatpush2.msra.mxu0 0.0
    %1795 = vmatprep.mubr.f32.mxu0 0.0
    %1796 = vmatmul.mubr.f32.gmra.mxu0 %v1565
    %v1797 = vpop.f32.mrf.mxu0
    %v1798 = vadd.f32 0.0, %v1797
    %v1799 = vpop.f32.mrf.mxu0
    %v1800 = vadd.f32 0.0, %v1799
    %1801 = vdwg.mxu0
    %1802 = vmatprep.subr.mxu0 0.0
    %1803 = vmatpush1.msra.mxu0 %v290
    %1804 = vmatprep.subr.mxu0 0.0
    %1805 = vmatpush1.msra.mxu0 %v287
    %1806 = vmatprep.subr.mxu0 0.0
    %1807 = vmatpush1.msra.mxu0 %v284
    %1808 = vmatprep.subr.mxu0 0.0
    %1809 = vmatpush1.msra.mxu0 %v281
    %1810 = vmatprep.subr.mxu0 0.0
    %1811 = vmatpush1.msra.mxu0 %v278
    %1812 = vmatprep.subr.mxu0 0.0
    %1813 = vmatpush1.msra.mxu0 %v275
    %1814 = vmatprep.subr.mxu0 0.0
    %1815 = vmatpush1.msra.mxu0 %v272
    %1816 = vmatprep.subr.mxu0 0.0
    %1817 = vmatpush1.msra.mxu0 %v269
    %1818 = vmatprep.subr.mxu0 0.0
    %1819 = vmatpush1.msra.mxu0 %v266
    %1820 = vmatprep.subr.mxu0 0.0
    %1821 = vmatpush1.msra.mxu0 %v263
    %1822 = vmatprep.subr.mxu0 0.0
    %1823 = vmatpush1.msra.mxu0 %v260
    %1824 = vmatprep.subr.mxu0 0.0
    %1825 = vmatpush1.msra.mxu0 %v257
    %1826 = vmatprep.subr.mxu0 0.0
    %1827 = vmatpush1.msra.mxu0 %v254
    %1828 = vmatprep.subr.mxu0 0.0
    %1829 = vmatpush1.msra.mxu0 %v251
    %1830 = vmatprep.subr.mxu0 0.0
    %1831 = vmatpush1.msra.mxu0 %v248
    %1832 = vmatprep.subr.mxu0 0.0
    %1833 = vmatpush1.msra.mxu0 %v245
    %1834 = vmatprep.subr.mxu0 0.0
    %1835 = vmatpush2.msra.mxu0 0.0
    %1836 = vmatprep.subr.mxu0 0.0
    %1837 = vmatpush2.msra.mxu0 0.0
    %1838 = vmatprep.subr.mxu0 0.0
    %1839 = vmatpush2.msra.mxu0 0.0
    %1840 = vmatprep.subr.mxu0 0.0
    %1841 = vmatpush2.msra.mxu0 0.0
    %1842 = vmatprep.subr.mxu0 0.0
    %1843 = vmatpush2.msra.mxu0 0.0
    %1844 = vmatprep.subr.mxu0 0.0
    %1845 = vmatpush2.msra.mxu0 0.0
    %1846 = vmatprep.subr.mxu0 0.0
    %1847 = vmatpush2.msra.mxu0 0.0
    %1848 = vmatprep.subr.mxu0 0.0
    %1849 = vmatpush2.msra.mxu0 0.0
    %1850 = vmatprep.subr.mxu0 0.0
    %1851 = vmatpush2.msra.mxu0 0.0
    %1852 = vmatprep.subr.mxu0 0.0
    %1853 = vmatpush2.msra.mxu0 0.0
    %1854 = vmatprep.subr.mxu0 0.0
    %1855 = vmatpush2.msra.mxu0 0.0
    %1856 = vmatprep.subr.mxu0 0.0
    %1857 = vmatpush2.msra.mxu0 0.0
    %1858 = vmatprep.subr.mxu0 0.0
    %1859 = vmatpush2.msra.mxu0 0.0
    %1860 = vmatprep.subr.mxu0 0.0
    %1861 = vmatpush2.msra.mxu0 0.0
    %1862 = vmatprep.subr.mxu0 0.0
    %1863 = vmatpush2.msra.mxu0 0.0
    %1864 = vmatprep.subr.mxu0 0.0
    %1865 = vmatpush2.msra.mxu0 0.0
    %1866 = vmatprep.mubr.f32.mxu0 0.0
    %1867 = vmatmul.mubr.f32.gmra.mxu0 %v1565
    %v1868 = vpop.f32.mrf.mxu0
    %v1869 = vadd.f32 0.0, %v1868
    %v1870 = vpop.f32.mrf.mxu0
    %1871 = vdwg.mxu0
    %v1872 = vadd.f32 %v198, %v1798
    %v1873 = vadd.f32 %v199, %v1800
    %v1874 = vadd.f32 %v1869, %v215
    %v1875 = vxor.u32 %v1872, 2147483648
    %v1876 = vxor.u32 %v1873, 2147483648
    %v1877 = vmul.f32 %v1875, 1.442695
    %v1878 = vpow.pop %v1877
    %v1879 = vmul.f32 %v1876, 1.442695
    %v1880 = vpow.pop %v1879
    %v1881 = vadd.f32 %v1878, 1.0
    %v1882 = vadd.f32 %v1880, 1.0
    %v1883 = vrcp.pop %v1881
    %v1884 = vmul.f32 1.0, %v1883
    %v1885 = vrcp.pop %v1882
    %v1886 = vmul.f32 1.0, %v1885
    %v1887 = vmul.f32 %v1884, %v1874
    %v1888 = vadd.f32 %v200, %v1887
    %v1889 = vtanh.pop %v1888
    %v1890 = vsub.f32 1.0, %v1886
    %v1891 = vmul.f32 %v1890, %v1889
    %v1892 = vmul.f32 %v1886, %v1565
    %v1893 = vadd.f32 %v1891, %v1892
    %1894 = vmatprep.subr.mxu0 %v352
    %1895 = vmatpush1.msra.mxu0 %v351
    %1896 = vmatprep.subr.mxu0 %v348
    %1897 = vmatpush1.msra.mxu0 %v347
    %1898 = vmatprep.subr.mxu0 %v344
    %1899 = vmatpush1.msra.mxu0 %v343
    %1900 = vmatprep.subr.mxu0 %v340
    %1901 = vmatpush1.msra.mxu0 %v339
    %1902 = vmatprep.subr.mxu0 %v336
    %1903 = vmatpush1.msra.mxu0 %v335
    %1904 = vmatprep.subr.mxu0 %v332
    %1905 = vmatpush1.msra.mxu0 %v331
    %1906 = vmatprep.subr.mxu0 %v328
    %1907 = vmatpush1.msra.mxu0 %v327
    %1908 = vmatprep.subr.mxu0 %v324
    %1909 = vmatpush1.msra.mxu0 %v323
    %1910 = vmatprep.subr.mxu0 %v320
    %1911 = vmatpush1.msra.mxu0 %v319
    %1912 = vmatprep.subr.mxu0 %v316
    %1913 = vmatpush1.msra.mxu0 %v315
    %1914 = vmatprep.subr.mxu0 %v312
    %1915 = vmatpush1.msra.mxu0 %v311
    %1916 = vmatprep.subr.mxu0 %v308
    %1917 = vmatpush1.msra.mxu0 %v307
    %1918 = vmatprep.subr.mxu0 %v304
    %1919 = vmatpush1.msra.mxu0 %v303
    %1920 = vmatprep.subr.mxu0 %v300
    %1921 = vmatpush1.msra.mxu0 %v299
    %1922 = vmatprep.subr.mxu0 %v296
    %1923 = vmatpush1.msra.mxu0 %v295
    %1924 = vmatprep.subr.mxu0 %v292
    %1925 = vmatpush1.msra.mxu0 %v291
    %1926 = vmatprep.subr.mxu0 %v416
    %1927 = vmatpush2.msra.mxu0 %v415
    %1928 = vmatprep.subr.mxu0 %v412
    %1929 = vmatpush2.msra.mxu0 %v411
    %1930 = vmatprep.subr.mxu0 %v408
    %1931 = vmatpush2.msra.mxu0 %v407
    %1932 = vmatprep.subr.mxu0 %v404
    %1933 = vmatpush2.msra.mxu0 %v403
    %1934 = vmatprep.subr.mxu0 %v400
    %1935 = vmatpush2.msra.mxu0 %v399
    %1936 = vmatprep.subr.mxu0 %v396
    %1937 = vmatpush2.msra.mxu0 %v395
    %1938 = vmatprep.subr.mxu0 %v392
    %1939 = vmatpush2.msra.mxu0 %v391
    %1940 = vmatprep.subr.mxu0 %v388
    %1941 = vmatpush2.msra.mxu0 %v387
    %1942 = vmatprep.subr.mxu0 %v384
    %1943 = vmatpush2.msra.mxu0 %v383
    %1944 = vmatprep.subr.mxu0 %v380
    %1945 = vmatpush2.msra.mxu0 %v379
    %1946 = vmatprep.subr.mxu0 %v376
    %1947 = vmatpush2.msra.mxu0 %v375
    %1948 = vmatprep.subr.mxu0 %v372
    %1949 = vmatpush2.msra.mxu0 %v371
    %1950 = vmatprep.subr.mxu0 %v368
    %1951 = vmatpush2.msra.mxu0 %v367
    %1952 = vmatprep.subr.mxu0 %v364
    %1953 = vmatpush2.msra.mxu0 %v363
    %1954 = vmatprep.subr.mxu0 %v360
    %1955 = vmatpush2.msra.mxu0 %v359
    %1956 = vmatprep.subr.mxu0 %v356
    %1957 = vmatpush2.msra.mxu0 %v355
    %1958 = vmatprep.mubr.f32.mxu0 %v1730
    %1959 = vmatmul.mubr.f32.gmra.mxu0 %v1893
    %v1960 = vpop.f32.mrf.mxu0
    %v1961 = vadd.f32 0.0, %v1960
    %v1962 = vpop.f32.mrf.mxu0
    %v1963 = vadd.f32 0.0, %v1962
    %1964 = vdwg.mxu0
    %1965 = vmatprep.subr.mxu0 %v354
    %1966 = vmatpush1.msra.mxu0 %v353
    %1967 = vmatprep.subr.mxu0 %v350
    %1968 = vmatpush1.msra.mxu0 %v349
    %1969 = vmatprep.subr.mxu0 %v346
    %1970 = vmatpush1.msra.mxu0 %v345
    %1971 = vmatprep.subr.mxu0 %v342
    %1972 = vmatpush1.msra.mxu0 %v341
    %1973 = vmatprep.subr.mxu0 %v338
    %1974 = vmatpush1.msra.mxu0 %v337
    %1975 = vmatprep.subr.mxu0 %v334
    %1976 = vmatpush1.msra.mxu0 %v333
    %1977 = vmatprep.subr.mxu0 %v330
    %1978 = vmatpush1.msra.mxu0 %v329
    %1979 = vmatprep.subr.mxu0 %v326
    %1980 = vmatpush1.msra.mxu0 %v325
    %1981 = vmatprep.subr.mxu0 %v322
    %1982 = vmatpush1.msra.mxu0 %v321
    %1983 = vmatprep.subr.mxu0 %v318
    %1984 = vmatpush1.msra.mxu0 %v317
    %1985 = vmatprep.subr.mxu0 %v314
    %1986 = vmatpush1.msra.mxu0 %v313
    %1987 = vmatprep.subr.mxu0 %v310
    %1988 = vmatpush1.msra.mxu0 %v309
    %1989 = vmatprep.subr.mxu0 %v306
    %1990 = vmatpush1.msra.mxu0 %v305
    %1991 = vmatprep.subr.mxu0 %v302
    %1992 = vmatpush1.msra.mxu0 %v301
    %1993 = vmatprep.subr.mxu0 %v298
    %1994 = vmatpush1.msra.mxu0 %v297
    %1995 = vmatprep.subr.mxu0 %v294
    %1996 = vmatpush1.msra.mxu0 %v293
    %1997 = vmatprep.subr.mxu0 %v418
    %1998 = vmatpush2.msra.mxu0 %v417
    %1999 = vmatprep.subr.mxu0 %v414
    %2000 = vmatpush2.msra.mxu0 %v413
    %2001 = vmatprep.subr.mxu0 %v410
    %2002 = vmatpush2.msra.mxu0 %v409
    %2003 = vmatprep.subr.mxu0 %v406
    %2004 = vmatpush2.msra.mxu0 %v405
    %2005 = vmatprep.subr.mxu0 %v402
    %2006 = vmatpush2.msra.mxu0 %v401
    %2007 = vmatprep.subr.mxu0 %v398
    %2008 = vmatpush2.msra.mxu0 %v397
    %2009 = vmatprep.subr.mxu0 %v394
    %2010 = vmatpush2.msra.mxu0 %v393
    %2011 = vmatprep.subr.mxu0 %v390
    %2012 = vmatpush2.msra.mxu0 %v389
    %2013 = vmatprep.subr.mxu0 %v386
    %2014 = vmatpush2.msra.mxu0 %v385
    %2015 = vmatprep.subr.mxu0 %v382
    %2016 = vmatpush2.msra.mxu0 %v381
    %2017 = vmatprep.subr.mxu0 %v378
    %2018 = vmatpush2.msra.mxu0 %v377
    %2019 = vmatprep.subr.mxu0 %v374
    %2020 = vmatpush2.msra.mxu0 %v373
    %2021 = vmatprep.subr.mxu0 %v370
    %2022 = vmatpush2.msra.mxu0 %v369
    %2023 = vmatprep.subr.mxu0 %v366
    %2024 = vmatpush2.msra.mxu0 %v365
    %2025 = vmatprep.subr.mxu0 %v362
    %2026 = vmatpush2.msra.mxu0 %v361
    %2027 = vmatprep.subr.mxu0 %v358
    %2028 = vmatpush2.msra.mxu0 %v357
    %2029 = vmatprep.mubr.f32.mxu0 %v1730
    %2030 = vmatmul.mubr.f32.gmra.mxu0 %v1893
    %v2031 = vpop.f32.mrf.mxu0
    %v2032 = vadd.f32 0.0, %v2031
    %v2033 = vpop.f32.mrf.mxu0
    %v2034 = vadd.f32 0.0, %v2033
    %2035 = vdwg.mxu0
    %v2036 = vadd.f32 %v1961, %v222
    %v2037 = vadd.f32 %v1963, %v226
    %v2038 = vadd.f32 %v2032, %v234
    %v2039 = vadd.f32 %v2034, %v241
    %v2040 = vxor.u32 %v2036, 2147483648
    %v2041 = vxor.u32 %v2037, 2147483648
    %v2042 = vmul.f32 %v2040, 1.442695
    %v2043 = vpow.pop %v2042
    %v2044 = vmul.f32 %v2041, 1.442695
    %v2045 = vpow.pop %v2044
    %v2046 = vadd.f32 %v2043, 1.0
    %v2047 = vadd.f32 %v2045, 1.0
    %v2048 = vrcp.pop %v2046
    %v2049 = vmul.f32 1.0, %v2048
    %v2050 = vrcp.pop %v2047
    %v2051 = vmul.f32 1.0, %v2050
    %v2052 = vmul.f32 %v2049, %v2039
    %v2053 = vadd.f32 %v2038, %v2052
    %v2054 = vtanh.pop %v2053
    %v2055 = vsub.f32 1.0, %v2051
    %v2056 = vmul.f32 %v2055, %v2054
    %v2057 = vmul.f32 %v2051, %v1730
    %v2058 = vadd.f32 %v2056, %v2057
    %2059 = vmatprep.subr.mxu0 %v289
    %2060 = vmatpush1.msra.mxu0 %v288
    %2061 = vmatprep.subr.mxu0 %v286
    %2062 = vmatpush1.msra.mxu0 %v285
    %2063 = vmatprep.subr.mxu0 %v283
    %2064 = vmatpush1.msra.mxu0 %v282
    %2065 = vmatprep.subr.mxu0 %v280
    %2066 = vmatpush1.msra.mxu0 %v279
    %2067 = vmatprep.subr.mxu0 %v277
    %2068 = vmatpush1.msra.mxu0 %v276
    %2069 = vmatprep.subr.mxu0 %v274
    %2070 = vmatpush1.msra.mxu0 %v273
    %2071 = vmatprep.subr.mxu0 %v271
    %2072 = vmatpush1.msra.mxu0 %v270
    %2073 = vmatprep.subr.mxu0 %v268
    %2074 = vmatpush1.msra.mxu0 %v267
    %2075 = vmatprep.subr.mxu0 %v265
    %2076 = vmatpush1.msra.mxu0 %v264
    %2077 = vmatprep.subr.mxu0 %v262
    %2078 = vmatpush1.msra.mxu0 %v261
    %2079 = vmatprep.subr.mxu0 %v259
    %2080 = vmatpush1.msra.mxu0 %v258
    %2081 = vmatprep.subr.mxu0 %v256
    %2082 = vmatpush1.msra.mxu0 %v255
    %2083 = vmatprep.subr.mxu0 %v253
    %2084 = vmatpush1.msra.mxu0 %v252
    %2085 = vmatprep.subr.mxu0 %v250
    %2086 = vmatpush1.msra.mxu0 %v249
    %2087 = vmatprep.subr.mxu0 %v247
    %2088 = vmatpush1.msra.mxu0 %v246
    %2089 = vmatprep.subr.mxu0 %v244
    %2090 = vmatpush1.msra.mxu0 %v243
    %2091 = vmatprep.subr.mxu0 0.0
    %2092 = vmatpush2.msra.mxu0 0.0
    %2093 = vmatprep.subr.mxu0 0.0
    %2094 = vmatpush2.msra.mxu0 0.0
    %2095 = vmatprep.subr.mxu0 0.0
    %2096 = vmatpush2.msra.mxu0 0.0
    %2097 = vmatprep.subr.mxu0 0.0
    %2098 = vmatpush2.msra.mxu0 0.0
    %2099 = vmatprep.subr.mxu0 0.0
    %2100 = vmatpush2.msra.mxu0 0.0
    %2101 = vmatprep.subr.mxu0 0.0
    %2102 = vmatpush2.msra.mxu0 0.0
    %2103 = vmatprep.subr.mxu0 0.0
    %2104 = vmatpush2.msra.mxu0 0.0
    %2105 = vmatprep.subr.mxu0 0.0
    %2106 = vmatpush2.msra.mxu0 0.0
    %2107 = vmatprep.subr.mxu0 0.0
    %2108 = vmatpush2.msra.mxu0 0.0
    %2109 = vmatprep.subr.mxu0 0.0
    %2110 = vmatpush2.msra.mxu0 0.0
    %2111 = vmatprep.subr.mxu0 0.0
    %2112 = vmatpush2.msra.mxu0 0.0
    %2113 = vmatprep.subr.mxu0 0.0
    %2114 = vmatpush2.msra.mxu0 0.0
    %2115 = vmatprep.subr.mxu0 0.0
    %2116 = vmatpush2.msra.mxu0 0.0
    %2117 = vmatprep.subr.mxu0 0.0
    %2118 = vmatpush2.msra.mxu0 0.0
    %2119 = vmatprep.subr.mxu0 0.0
    %2120 = vmatpush2.msra.mxu0 0.0
    %2121 = vmatprep.subr.mxu0 0.0
    %2122 = vmatpush2.msra.mxu0 0.0
    %2123 = vmatprep.mubr.f32.mxu0 0.0
    %2124 = vmatmul.mubr.f32.gmra.mxu0 %v1893
    %v2125 = vpop.f32.mrf.mxu0
    %v2126 = vadd.f32 0.0, %v2125
    %v2127 = vpop.f32.mrf.mxu0
    %v2128 = vadd.f32 0.0, %v2127
    %2129 = vdwg.mxu0
    %2130 = vmatprep.subr.mxu0 0.0
    %2131 = vmatpush1.msra.mxu0 %v290
    %2132 = vmatprep.subr.mxu0 0.0
    %2133 = vmatpush1.msra.mxu0 %v287
    %2134 = vmatprep.subr.mxu0 0.0
    %2135 = vmatpush1.msra.mxu0 %v284
    %2136 = vmatprep.subr.mxu0 0.0
    %2137 = vmatpush1.msra.mxu0 %v281
    %2138 = vmatprep.subr.mxu0 0.0
    %2139 = vmatpush1.msra.mxu0 %v278
    %2140 = vmatprep.subr.mxu0 0.0
    %2141 = vmatpush1.msra.mxu0 %v275
    %2142 = vmatprep.subr.mxu0 0.0
    %2143 = vmatpush1.msra.mxu0 %v272
    %2144 = vmatprep.subr.mxu0 0.0
    %2145 = vmatpush1.msra.mxu0 %v269
    %2146 = vmatprep.subr.mxu0 0.0
    %2147 = vmatpush1.msra.mxu0 %v266
    %2148 = vmatprep.subr.mxu0 0.0
    %2149 = vmatpush1.msra.mxu0 %v263
    %2150 = vmatprep.subr.mxu0 0.0
    %2151 = vmatpush1.msra.mxu0 %v260
    %2152 = vmatprep.subr.mxu0 0.0
    %2153 = vmatpush1.msra.mxu0 %v257
    %2154 = vmatprep.subr.mxu0 0.0
    %2155 = vmatpush1.msra.mxu0 %v254
    %2156 = vmatprep.subr.mxu0 0.0
    %2157 = vmatpush1.msra.mxu0 %v251
    %2158 = vmatprep.subr.mxu0 0.0
    %2159 = vmatpush1.msra.mxu0 %v248
    %2160 = vmatprep.subr.mxu0 0.0
    %2161 = vmatpush1.msra.mxu0 %v245
    %2162 = vmatprep.subr.mxu0 0.0
    %2163 = vmatpush2.msra.mxu0 0.0
    %2164 = vmatprep.subr.mxu0 0.0
    %2165 = vmatpush2.msra.mxu0 0.0
    %2166 = vmatprep.subr.mxu0 0.0
    %2167 = vmatpush2.msra.mxu0 0.0
    %2168 = vmatprep.subr.mxu0 0.0
    %2169 = vmatpush2.msra.mxu0 0.0
    %2170 = vmatprep.subr.mxu0 0.0
    %2171 = vmatpush2.msra.mxu0 0.0
    %2172 = vmatprep.subr.mxu0 0.0
    %2173 = vmatpush2.msra.mxu0 0.0
    %2174 = vmatprep.subr.mxu0 0.0
    %2175 = vmatpush2.msra.mxu0 0.0
    %2176 = vmatprep.subr.mxu0 0.0
    %2177 = vmatpush2.msra.mxu0 0.0
    %2178 = vmatprep.subr.mxu0 0.0
    %2179 = vmatpush2.msra.mxu0 0.0
    %2180 = vmatprep.subr.mxu0 0.0
    %2181 = vmatpush2.msra.mxu0 0.0
    %2182 = vmatprep.subr.mxu0 0.0
    %2183 = vmatpush2.msra.mxu0 0.0
    %2184 = vmatprep.subr.mxu0 0.0
    %2185 = vmatpush2.msra.mxu0 0.0
    %2186 = vmatprep.subr.mxu0 0.0
    %2187 = vmatpush2.msra.mxu0 0.0
    %2188 = vmatprep.subr.mxu0 0.0
    %2189 = vmatpush2.msra.mxu0 0.0
    %2190 = vmatprep.subr.mxu0 0.0
    %2191 = vmatpush2.msra.mxu0 0.0
    %2192 = vmatprep.subr.mxu0 0.0
    %2193 = vmatpush2.msra.mxu0 0.0
    %2194 = vmatprep.mubr.f32.mxu0 0.0
    %2195 = vmatmul.mubr.f32.gmra.mxu0 %v1893
    %v2196 = vpop.f32.mrf.mxu0
    %v2197 = vadd.f32 0.0, %v2196
    %v2198 = vpop.f32.mrf.mxu0
    %2199 = vdwg.mxu0
    %v2200 = vadd.f32 %v201, %v2126
    %v2201 = vadd.f32 %v202, %v2128
    %v2202 = vadd.f32 %v2197, %v215
    %v2203 = vxor.u32 %v2200, 2147483648
    %v2204 = vxor.u32 %v2201, 2147483648
    %v2205 = vmul.f32 %v2203, 1.442695
    %v2206 = vpow.pop %v2205
    %v2207 = vmul.f32 %v2204, 1.442695
    %v2208 = vpow.pop %v2207
    %v2209 = vadd.f32 %v2206, 1.0
    %v2210 = vadd.f32 %v2208, 1.0
    %v2211 = vrcp.pop %v2209
    %v2212 = vmul.f32 1.0, %v2211
    %v2213 = vrcp.pop %v2210
    %v2214 = vmul.f32 1.0, %v2213
    %v2215 = vmul.f32 %v2212, %v2202
    %v2216 = vadd.f32 %v203, %v2215
    %v2217 = vtanh.pop %v2216
    %v2218 = vsub.f32 1.0, %v2214
    %v2219 = vmul.f32 %v2218, %v2217
    %v2220 = vmul.f32 %v2214, %v1893
    %v2221 = vadd.f32 %v2219, %v2220
    %2222 = vmatprep.subr.mxu0 %v352
    %2223 = vmatpush1.msra.mxu0 %v351
    %2224 = vmatprep.subr.mxu0 %v348
    %2225 = vmatpush1.msra.mxu0 %v347
    %2226 = vmatprep.subr.mxu0 %v344
    %2227 = vmatpush1.msra.mxu0 %v343
    %2228 = vmatprep.subr.mxu0 %v340
    %2229 = vmatpush1.msra.mxu0 %v339
    %2230 = vmatprep.subr.mxu0 %v336
    %2231 = vmatpush1.msra.mxu0 %v335
    %2232 = vmatprep.subr.mxu0 %v332
    %2233 = vmatpush1.msra.mxu0 %v331
    %2234 = vmatprep.subr.mxu0 %v328
    %2235 = vmatpush1.msra.mxu0 %v327
    %2236 = vmatprep.subr.mxu0 %v324
    %2237 = vmatpush1.msra.mxu0 %v323
    %2238 = vmatprep.subr.mxu0 %v320
    %2239 = vmatpush1.msra.mxu0 %v319
    %2240 = vmatprep.subr.mxu0 %v316
    %2241 = vmatpush1.msra.mxu0 %v315
    %2242 = vmatprep.subr.mxu0 %v312
    %2243 = vmatpush1.msra.mxu0 %v311
    %2244 = vmatprep.subr.mxu0 %v308
    %2245 = vmatpush1.msra.mxu0 %v307
    %2246 = vmatprep.subr.mxu0 %v304
    %2247 = vmatpush1.msra.mxu0 %v303
    %2248 = vmatprep.subr.mxu0 %v300
    %2249 = vmatpush1.msra.mxu0 %v299
    %2250 = vmatprep.subr.mxu0 %v296
    %2251 = vmatpush1.msra.mxu0 %v295
    %2252 = vmatprep.subr.mxu0 %v292
    %2253 = vmatpush1.msra.mxu0 %v291
    %2254 = vmatprep.subr.mxu0 %v416
    %2255 = vmatpush2.msra.mxu0 %v415
    %2256 = vmatprep.subr.mxu0 %v412
    %2257 = vmatpush2.msra.mxu0 %v411
    %2258 = vmatprep.subr.mxu0 %v408
    %2259 = vmatpush2.msra.mxu0 %v407
    %2260 = vmatprep.subr.mxu0 %v404
    %2261 = vmatpush2.msra.mxu0 %v403
    %2262 = vmatprep.subr.mxu0 %v400
    %2263 = vmatpush2.msra.mxu0 %v399
    %2264 = vmatprep.subr.mxu0 %v396
    %2265 = vmatpush2.msra.mxu0 %v395
    %2266 = vmatprep.subr.mxu0 %v392
    %2267 = vmatpush2.msra.mxu0 %v391
    %2268 = vmatprep.subr.mxu0 %v388
    %2269 = vmatpush2.msra.mxu0 %v387
    %2270 = vmatprep.subr.mxu0 %v384
    %2271 = vmatpush2.msra.mxu0 %v383
    %2272 = vmatprep.subr.mxu0 %v380
    %2273 = vmatpush2.msra.mxu0 %v379
    %2274 = vmatprep.subr.mxu0 %v376
    %2275 = vmatpush2.msra.mxu0 %v375
    %2276 = vmatprep.subr.mxu0 %v372
    %2277 = vmatpush2.msra.mxu0 %v371
    %2278 = vmatprep.subr.mxu0 %v368
    %2279 = vmatpush2.msra.mxu0 %v367
    %2280 = vmatprep.subr.mxu0 %v364
    %2281 = vmatpush2.msra.mxu0 %v363
    %2282 = vmatprep.subr.mxu0 %v360
    %2283 = vmatpush2.msra.mxu0 %v359
    %2284 = vmatprep.subr.mxu0 %v356
    %2285 = vmatpush2.msra.mxu0 %v355
    %2286 = vmatprep.mubr.f32.mxu0 %v2058
    %2287 = vmatmul.mubr.f32.gmra.mxu0 %v2221
    %v2288 = vpop.f32.mrf.mxu0
    %v2289 = vadd.f32 0.0, %v2288
    %v2290 = vpop.f32.mrf.mxu0
    %v2291 = vadd.f32 0.0, %v2290
    %2292 = vdwg.mxu0
    %2293 = vmatprep.subr.mxu0 %v354
    %2294 = vmatpush1.msra.mxu0 %v353
    %2295 = vmatprep.subr.mxu0 %v350
    %2296 = vmatpush1.msra.mxu0 %v349
    %2297 = vmatprep.subr.mxu0 %v346
    %2298 = vmatpush1.msra.mxu0 %v345
    %2299 = vmatprep.subr.mxu0 %v342
    %2300 = vmatpush1.msra.mxu0 %v341
    %2301 = vmatprep.subr.mxu0 %v338
    %2302 = vmatpush1.msra.mxu0 %v337
    %2303 = vmatprep.subr.mxu0 %v334
    %2304 = vmatpush1.msra.mxu0 %v333
    %2305 = vmatprep.subr.mxu0 %v330
    %2306 = vmatpush1.msra.mxu0 %v329
    %2307 = vmatprep.subr.mxu0 %v326
    %2308 = vmatpush1.msra.mxu0 %v325
    %2309 = vmatprep.subr.mxu0 %v322
    %2310 = vmatpush1.msra.mxu0 %v321
    %2311 = vmatprep.subr.mxu0 %v318
    %2312 = vmatpush1.msra.mxu0 %v317
    %2313 = vmatprep.subr.mxu0 %v314
    %2314 = vmatpush1.msra.mxu0 %v313
    %2315 = vmatprep.subr.mxu0 %v310
    %2316 = vmatpush1.msra.mxu0 %v309
    %2317 = vmatprep.subr.mxu0 %v306
    %2318 = vmatpush1.msra.mxu0 %v305
    %2319 = vmatprep.subr.mxu0 %v302
    %2320 = vmatpush1.msra.mxu0 %v301
    %2321 = vmatprep.subr.mxu0 %v298
    %2322 = vmatpush1.msra.mxu0 %v297
    %2323 = vmatprep.subr.mxu0 %v294
    %2324 = vmatpush1.msra.mxu0 %v293
    %2325 = vmatprep.subr.mxu0 %v418
    %2326 = vmatpush2.msra.mxu0 %v417
    %2327 = vmatprep.subr.mxu0 %v414
    %2328 = vmatpush2.msra.mxu0 %v413
    %2329 = vmatprep.subr.mxu0 %v410
    %2330 = vmatpush2.msra.mxu0 %v409
    %2331 = vmatprep.subr.mxu0 %v406
    %2332 = vmatpush2.msra.mxu0 %v405
    %2333 = vmatprep.subr.mxu0 %v402
    %2334 = vmatpush2.msra.mxu0 %v401
    %2335 = vmatprep.subr.mxu0 %v398
    %2336 = vmatpush2.msra.mxu0 %v397
    %2337 = vmatprep.subr.mxu0 %v394
    %2338 = vmatpush2.msra.mxu0 %v393
    %2339 = vmatprep.subr.mxu0 %v390
    %2340 = vmatpush2.msra.mxu0 %v389
    %2341 = vmatprep.subr.mxu0 %v386
    %2342 = vmatpush2.msra.mxu0 %v385
    %2343 = vmatprep.subr.mxu0 %v382
    %2344 = vmatpush2.msra.mxu0 %v381
    %2345 = vmatprep.subr.mxu0 %v378
    %2346 = vmatpush2.msra.mxu0 %v377
    %2347 = vmatprep.subr.mxu0 %v374
    %2348 = vmatpush2.msra.mxu0 %v373
    %2349 = vmatprep.subr.mxu0 %v370
    %2350 = vmatpush2.msra.mxu0 %v369
    %2351 = vmatprep.subr.mxu0 %v366
    %2352 = vmatpush2.msra.mxu0 %v365
    %2353 = vmatprep.subr.mxu0 %v362
    %2354 = vmatpush2.msra.mxu0 %v361
    %2355 = vmatprep.subr.mxu0 %v358
    %2356 = vmatpush2.msra.mxu0 %v357
    %2357 = vmatprep.mubr.f32.mxu0 %v2058
    %2358 = vmatmul.mubr.f32.gmra.mxu0 %v2221
    %v2359 = vpop.f32.mrf.mxu0
    %v2360 = vadd.f32 0.0, %v2359
    %v2361 = vpop.f32.mrf.mxu0
    %v2362 = vadd.f32 0.0, %v2361
    %2363 = vdwg.mxu0
    %v2364 = vadd.f32 %v2289, %v222
    %v2365 = vadd.f32 %v2291, %v226
    %v2366 = vadd.f32 %v2360, %v234
    %v2367 = vadd.f32 %v2362, %v241
    %v2368 = vxor.u32 %v2364, 2147483648
    %v2369 = vxor.u32 %v2365, 2147483648
    %v2370 = vmul.f32 %v2368, 1.442695
    %v2371 = vpow.pop %v2370
    %v2372 = vmul.f32 %v2369, 1.442695
    %v2373 = vpow.pop %v2372
    %v2374 = vadd.f32 %v2371, 1.0
    %v2375 = vadd.f32 %v2373, 1.0
    %v2376 = vrcp.pop %v2374
    %v2377 = vmul.f32 1.0, %v2376
    %v2378 = vrcp.pop %v2375
    %v2379 = vmul.f32 1.0, %v2378
    %v2380 = vmul.f32 %v2377, %v2367
    %v2381 = vadd.f32 %v2366, %v2380
    %v2382 = vtanh.pop %v2381
    %v2383 = vsub.f32 1.0, %v2379
    %v2384 = vmul.f32 %v2383, %v2382
    %v2385 = vmul.f32 %v2379, %v2058
    %v2386 = vadd.f32 %v2384, %v2385
    %2387 = vmatprep.subr.mxu0 %v289
    %2388 = vmatpush1.msra.mxu0 %v288
    %2389 = vmatprep.subr.mxu0 %v286
    %2390 = vmatpush1.msra.mxu0 %v285
    %2391 = vmatprep.subr.mxu0 %v283
    %2392 = vmatpush1.msra.mxu0 %v282
    %2393 = vmatprep.subr.mxu0 %v280
    %2394 = vmatpush1.msra.mxu0 %v279
    %2395 = vmatprep.subr.mxu0 %v277
    %2396 = vmatpush1.msra.mxu0 %v276
    %2397 = vmatprep.subr.mxu0 %v274
    %2398 = vmatpush1.msra.mxu0 %v273
    %2399 = vmatprep.subr.mxu0 %v271
    %2400 = vmatpush1.msra.mxu0 %v270
    %2401 = vmatprep.subr.mxu0 %v268
    %2402 = vmatpush1.msra.mxu0 %v267
    %2403 = vmatprep.subr.mxu0 %v265
    %2404 = vmatpush1.msra.mxu0 %v264
    %2405 = vmatprep.subr.mxu0 %v262
    %2406 = vmatpush1.msra.mxu0 %v261
    %2407 = vmatprep.subr.mxu0 %v259
    %2408 = vmatpush1.msra.mxu0 %v258
    %2409 = vmatprep.subr.mxu0 %v256
    %2410 = vmatpush1.msra.mxu0 %v255
    %2411 = vmatprep.subr.mxu0 %v253
    %2412 = vmatpush1.msra.mxu0 %v252
    %2413 = vmatprep.subr.mxu0 %v250
    %2414 = vmatpush1.msra.mxu0 %v249
    %2415 = vmatprep.subr.mxu0 %v247
    %2416 = vmatpush1.msra.mxu0 %v246
    %2417 = vmatprep.subr.mxu0 %v244
    %2418 = vmatpush1.msra.mxu0 %v243
    %2419 = vmatprep.subr.mxu0 0.0
    %2420 = vmatpush2.msra.mxu0 0.0
    %2421 = vmatprep.subr.mxu0 0.0
    %2422 = vmatpush2.msra.mxu0 0.0
    %2423 = vmatprep.subr.mxu0 0.0
    %2424 = vmatpush2.msra.mxu0 0.0
    %2425 = vmatprep.subr.mxu0 0.0
    %2426 = vmatpush2.msra.mxu0 0.0
    %2427 = vmatprep.subr.mxu0 0.0
    %2428 = vmatpush2.msra.mxu0 0.0
    %2429 = vmatprep.subr.mxu0 0.0
    %2430 = vmatpush2.msra.mxu0 0.0
    %2431 = vmatprep.subr.mxu0 0.0
    %2432 = vmatpush2.msra.mxu0 0.0
    %2433 = vmatprep.subr.mxu0 0.0
    %2434 = vmatpush2.msra.mxu0 0.0
    %2435 = vmatprep.subr.mxu0 0.0
    %2436 = vmatpush2.msra.mxu0 0.0
    %2437 = vmatprep.subr.mxu0 0.0
    %2438 = vmatpush2.msra.mxu0 0.0
    %2439 = vmatprep.subr.mxu0 0.0
    %2440 = vmatpush2.msra.mxu0 0.0
    %2441 = vmatprep.subr.mxu0 0.0
    %2442 = vmatpush2.msra.mxu0 0.0
    %2443 = vmatprep.subr.mxu0 0.0
    %2444 = vmatpush2.msra.mxu0 0.0
    %2445 = vmatprep.subr.mxu0 0.0
    %2446 = vmatpush2.msra.mxu0 0.0
    %2447 = vmatprep.subr.mxu0 0.0
    %2448 = vmatpush2.msra.mxu0 0.0
    %2449 = vmatprep.subr.mxu0 0.0
    %2450 = vmatpush2.msra.mxu0 0.0
    %2451 = vmatprep.mubr.f32.mxu0 0.0
    %2452 = vmatmul.mubr.f32.gmra.mxu0 %v2221
    %v2453 = vpop.f32.mrf.mxu0
    %v2454 = vadd.f32 0.0, %v2453
    %v2455 = vpop.f32.mrf.mxu0
    %v2456 = vadd.f32 0.0, %v2455
    %2457 = vdwg.mxu0
    %2458 = vmatprep.subr.mxu0 0.0
    %2459 = vmatpush1.msra.mxu0 %v290
    %2460 = vmatprep.subr.mxu0 0.0
    %2461 = vmatpush1.msra.mxu0 %v287
    %2462 = vmatprep.subr.mxu0 0.0
    %2463 = vmatpush1.msra.mxu0 %v284
    %2464 = vmatprep.subr.mxu0 0.0
    %2465 = vmatpush1.msra.mxu0 %v281
    %2466 = vmatprep.subr.mxu0 0.0
    %2467 = vmatpush1.msra.mxu0 %v278
    %2468 = vmatprep.subr.mxu0 0.0
    %2469 = vmatpush1.msra.mxu0 %v275
    %2470 = vmatprep.subr.mxu0 0.0
    %2471 = vmatpush1.msra.mxu0 %v272
    %2472 = vmatprep.subr.mxu0 0.0
    %2473 = vmatpush1.msra.mxu0 %v269
    %2474 = vmatprep.subr.mxu0 0.0
    %2475 = vmatpush1.msra.mxu0 %v266
    %2476 = vmatprep.subr.mxu0 0.0
    %2477 = vmatpush1.msra.mxu0 %v263
    %2478 = vmatprep.subr.mxu0 0.0
    %2479 = vmatpush1.msra.mxu0 %v260
    %2480 = vmatprep.subr.mxu0 0.0
    %2481 = vmatpush1.msra.mxu0 %v257
    %2482 = vmatprep.subr.mxu0 0.0
    %2483 = vmatpush1.msra.mxu0 %v254
    %2484 = vmatprep.subr.mxu0 0.0
    %2485 = vmatpush1.msra.mxu0 %v251
    %2486 = vmatprep.subr.mxu0 0.0
    %2487 = vmatpush1.msra.mxu0 %v248
    %2488 = vmatprep.subr.mxu0 0.0
    %2489 = vmatpush1.msra.mxu0 %v245
    %2490 = vmatprep.subr.mxu0 0.0
    %2491 = vmatpush2.msra.mxu0 0.0
    %2492 = vmatprep.subr.mxu0 0.0
    %2493 = vmatpush2.msra.mxu0 0.0
    %2494 = vmatprep.subr.mxu0 0.0
    %2495 = vmatpush2.msra.mxu0 0.0
    %2496 = vmatprep.subr.mxu0 0.0
    %2497 = vmatpush2.msra.mxu0 0.0
    %2498 = vmatprep.subr.mxu0 0.0
    %2499 = vmatpush2.msra.mxu0 0.0
    %2500 = vmatprep.subr.mxu0 0.0
    %2501 = vmatpush2.msra.mxu0 0.0
    %2502 = vmatprep.subr.mxu0 0.0
    %2503 = vmatpush2.msra.mxu0 0.0
    %2504 = vmatprep.subr.mxu0 0.0
    %2505 = vmatpush2.msra.mxu0 0.0
    %2506 = vmatprep.subr.mxu0 0.0
    %2507 = vmatpush2.msra.mxu0 0.0
    %2508 = vmatprep.subr.mxu0 0.0
    %2509 = vmatpush2.msra.mxu0 0.0
    %2510 = vmatprep.subr.mxu0 0.0
    %2511 = vmatpush2.msra.mxu0 0.0
    %2512 = vmatprep.subr.mxu0 0.0
    %2513 = vmatpush2.msra.mxu0 0.0
    %2514 = vmatprep.subr.mxu0 0.0
    %2515 = vmatpush2.msra.mxu0 0.0
    %2516 = vmatprep.subr.mxu0 0.0
    %2517 = vmatpush2.msra.mxu0 0.0
    %2518 = vmatprep.subr.mxu0 0.0
    %2519 = vmatpush2.msra.mxu0 0.0
    %2520 = vmatprep.subr.mxu0 0.0
    %2521 = vmatpush2.msra.mxu0 0.0
    %2522 = vmatprep.mubr.f32.mxu0 0.0
    %2523 = vmatmul.mubr.f32.gmra.mxu0 %v2221
    %v2524 = vpop.f32.mrf.mxu0
    %v2525 = vadd.f32 0.0, %v2524
    %v2526 = vpop.f32.mrf.mxu0
    %2527 = vdwg.mxu0
    %v2528 = vadd.f32 %v204, %v2454
    %v2529 = vadd.f32 %v205, %v2456
    %v2530 = vadd.f32 %v2525, %v215
    %v2531 = vxor.u32 %v2528, 2147483648
    %v2532 = vxor.u32 %v2529, 2147483648
    %v2533 = vmul.f32 %v2531, 1.442695
    %v2534 = vpow.pop %v2533
    %v2535 = vmul.f32 %v2532, 1.442695
    %v2536 = vpow.pop %v2535
    %v2537 = vadd.f32 %v2534, 1.0
    %v2538 = vadd.f32 %v2536, 1.0
    %v2539 = vrcp.pop %v2537
    %v2540 = vmul.f32 1.0, %v2539
    %v2541 = vrcp.pop %v2538
    %v2542 = vmul.f32 1.0, %v2541
    %v2543 = vmul.f32 %v2540, %v2530
    %v2544 = vadd.f32 %v206, %v2543
    %v2545 = vtanh.pop %v2544
    %v2546 = vsub.f32 1.0, %v2542
    %v2547 = vmul.f32 %v2546, %v2545
    %v2548 = vmul.f32 %v2542, %v2221
    %v2549 = vadd.f32 %v2547, %v2548
    %2550 = vmatprep.subr.mxu0 %v352
    %2551 = vmatpush1.msra.mxu0 %v351
    %2552 = vmatprep.subr.mxu0 %v348
    %2553 = vmatpush1.msra.mxu0 %v347
    %2554 = vmatprep.subr.mxu0 %v344
    %2555 = vmatpush1.msra.mxu0 %v343
    %2556 = vmatprep.subr.mxu0 %v340
    %2557 = vmatpush1.msra.mxu0 %v339
    %2558 = vmatprep.subr.mxu0 %v336
    %2559 = vmatpush1.msra.mxu0 %v335
    %2560 = vmatprep.subr.mxu0 %v332
    %2561 = vmatpush1.msra.mxu0 %v331
    %2562 = vmatprep.subr.mxu0 %v328
    %2563 = vmatpush1.msra.mxu0 %v327
    %2564 = vmatprep.subr.mxu0 %v324
    %2565 = vmatpush1.msra.mxu0 %v323
    %2566 = vmatprep.subr.mxu0 %v320
    %2567 = vmatpush1.msra.mxu0 %v319
    %2568 = vmatprep.subr.mxu0 %v316
    %2569 = vmatpush1.msra.mxu0 %v315
    %2570 = vmatprep.subr.mxu0 %v312
    %2571 = vmatpush1.msra.mxu0 %v311
    %2572 = vmatprep.subr.mxu0 %v308
    %2573 = vmatpush1.msra.mxu0 %v307
    %2574 = vmatprep.subr.mxu0 %v304
    %2575 = vmatpush1.msra.mxu0 %v303
    %2576 = vmatprep.subr.mxu0 %v300
    %2577 = vmatpush1.msra.mxu0 %v299
    %2578 = vmatprep.subr.mxu0 %v296
    %2579 = vmatpush1.msra.mxu0 %v295
    %2580 = vmatprep.subr.mxu0 %v292
    %2581 = vmatpush1.msra.mxu0 %v291
    %2582 = vmatprep.subr.mxu0 %v416
    %2583 = vmatpush2.msra.mxu0 %v415
    %2584 = vmatprep.subr.mxu0 %v412
    %2585 = vmatpush2.msra.mxu0 %v411
    %2586 = vmatprep.subr.mxu0 %v408
    %2587 = vmatpush2.msra.mxu0 %v407
    %2588 = vmatprep.subr.mxu0 %v404
    %2589 = vmatpush2.msra.mxu0 %v403
    %2590 = vmatprep.subr.mxu0 %v400
    %2591 = vmatpush2.msra.mxu0 %v399
    %2592 = vmatprep.subr.mxu0 %v396
    %2593 = vmatpush2.msra.mxu0 %v395
    %2594 = vmatprep.subr.mxu0 %v392
    %2595 = vmatpush2.msra.mxu0 %v391
    %2596 = vmatprep.subr.mxu0 %v388
    %2597 = vmatpush2.msra.mxu0 %v387
    %2598 = vmatprep.subr.mxu0 %v384
    %2599 = vmatpush2.msra.mxu0 %v383
    %2600 = vmatprep.subr.mxu0 %v380
    %2601 = vmatpush2.msra.mxu0 %v379
    %2602 = vmatprep.subr.mxu0 %v376
    %2603 = vmatpush2.msra.mxu0 %v375
    %2604 = vmatprep.subr.mxu0 %v372
    %2605 = vmatpush2.msra.mxu0 %v371
    %2606 = vmatprep.subr.mxu0 %v368
    %2607 = vmatpush2.msra.mxu0 %v367
    %2608 = vmatprep.subr.mxu0 %v364
    %2609 = vmatpush2.msra.mxu0 %v363
    %2610 = vmatprep.subr.mxu0 %v360
    %2611 = vmatpush2.msra.mxu0 %v359
    %2612 = vmatprep.subr.mxu0 %v356
    %2613 = vmatpush2.msra.mxu0 %v355
    %2614 = vmatprep.mubr.f32.mxu0 %v2386
    %2615 = vmatmul.mubr.f32.gmra.mxu0 %v2549
    %v2616 = vpop.f32.mrf.mxu0
    %v2617 = vadd.f32 0.0, %v2616
    %v2618 = vpop.f32.mrf.mxu0
    %v2619 = vadd.f32 0.0, %v2618
    %2620 = vdwg.mxu0
    %2621 = vmatprep.subr.mxu0 %v354
    %2622 = vmatpush1.msra.mxu0 %v353
    %2623 = vmatprep.subr.mxu0 %v350
    %2624 = vmatpush1.msra.mxu0 %v349
    %2625 = vmatprep.subr.mxu0 %v346
    %2626 = vmatpush1.msra.mxu0 %v345
    %2627 = vmatprep.subr.mxu0 %v342
    %2628 = vmatpush1.msra.mxu0 %v341
    %2629 = vmatprep.subr.mxu0 %v338
    %2630 = vmatpush1.msra.mxu0 %v337
    %2631 = vmatprep.subr.mxu0 %v334
    %2632 = vmatpush1.msra.mxu0 %v333
    %2633 = vmatprep.subr.mxu0 %v330
    %2634 = vmatpush1.msra.mxu0 %v329
    %2635 = vmatprep.subr.mxu0 %v326
    %2636 = vmatpush1.msra.mxu0 %v325
    %2637 = vmatprep.subr.mxu0 %v322
    %2638 = vmatpush1.msra.mxu0 %v321
    %2639 = vmatprep.subr.mxu0 %v318
    %2640 = vmatpush1.msra.mxu0 %v317
    %2641 = vmatprep.subr.mxu0 %v314
    %2642 = vmatpush1.msra.mxu0 %v313
    %2643 = vmatprep.subr.mxu0 %v310
    %2644 = vmatpush1.msra.mxu0 %v309
    %2645 = vmatprep.subr.mxu0 %v306
    %2646 = vmatpush1.msra.mxu0 %v305
    %2647 = vmatprep.subr.mxu0 %v302
    %2648 = vmatpush1.msra.mxu0 %v301
    %2649 = vmatprep.subr.mxu0 %v298
    %2650 = vmatpush1.msra.mxu0 %v297
    %2651 = vmatprep.subr.mxu0 %v294
    %2652 = vmatpush1.msra.mxu0 %v293
    %2653 = vmatprep.subr.mxu0 %v418
    %2654 = vmatpush2.msra.mxu0 %v417
    %2655 = vmatprep.subr.mxu0 %v414
    %2656 = vmatpush2.msra.mxu0 %v413
    %2657 = vmatprep.subr.mxu0 %v410
    %2658 = vmatpush2.msra.mxu0 %v409
    %2659 = vmatprep.subr.mxu0 %v406
    %2660 = vmatpush2.msra.mxu0 %v405
    %2661 = vmatprep.subr.mxu0 %v402
    %2662 = vmatpush2.msra.mxu0 %v401
    %2663 = vmatprep.subr.mxu0 %v398
    %2664 = vmatpush2.msra.mxu0 %v397
    %2665 = vmatprep.subr.mxu0 %v394
    %2666 = vmatpush2.msra.mxu0 %v393
    %2667 = vmatprep.subr.mxu0 %v390
    %2668 = vmatpush2.msra.mxu0 %v389
    %2669 = vmatprep.subr.mxu0 %v386
    %2670 = vmatpush2.msra.mxu0 %v385
    %2671 = vmatprep.subr.mxu0 %v382
    %2672 = vmatpush2.msra.mxu0 %v381
    %2673 = vmatprep.subr.mxu0 %v378
    %2674 = vmatpush2.msra.mxu0 %v377
    %2675 = vmatprep.subr.mxu0 %v374
    %2676 = vmatpush2.msra.mxu0 %v373
    %2677 = vmatprep.subr.mxu0 %v370
    %2678 = vmatpush2.msra.mxu0 %v369
    %2679 = vmatprep.subr.mxu0 %v366
    %2680 = vmatpush2.msra.mxu0 %v365
    %2681 = vmatprep.subr.mxu0 %v362
    %2682 = vmatpush2.msra.mxu0 %v361
    %2683 = vmatprep.subr.mxu0 %v358
    %2684 = vmatpush2.msra.mxu0 %v357
    %2685 = vmatprep.mubr.f32.mxu0 %v2386
    %2686 = vmatmul.mubr.f32.gmra.mxu0 %v2549
    %v2687 = vpop.f32.mrf.mxu0
    %v2688 = vadd.f32 0.0, %v2687
    %v2689 = vpop.f32.mrf.mxu0
    %v2690 = vadd.f32 0.0, %v2689
    %2691 = vdwg.mxu0
    %v2692 = vadd.f32 %v2617, %v222
    %v2693 = vadd.f32 %v2619, %v226
    %v2694 = vadd.f32 %v2688, %v234
    %v2695 = vadd.f32 %v2690, %v241
    %v2696 = vxor.u32 %v2692, 2147483648
    %v2697 = vxor.u32 %v2693, 2147483648
    %v2698 = vmul.f32 %v2696, 1.442695
    %v2699 = vpow.pop %v2698
    %v2700 = vmul.f32 %v2697, 1.442695
    %v2701 = vpow.pop %v2700
    %v2702 = vadd.f32 %v2699, 1.0
    %v2703 = vadd.f32 %v2701, 1.0
    %v2704 = vrcp.pop %v2702
    %v2705 = vmul.f32 1.0, %v2704
    %v2706 = vrcp.pop %v2703
    %v2707 = vmul.f32 1.0, %v2706
    %v2708 = vmul.f32 %v2705, %v2695
    %v2709 = vadd.f32 %v2694, %v2708
    %v2710 = vtanh.pop %v2709
    %v2711 = vsub.f32 1.0, %v2707
    %v2712 = vmul.f32 %v2711, %v2710
    %v2713 = vmul.f32 %v2707, %v2386
    %v2714 = vadd.f32 %v2712, %v2713
    %2715 = vmatprep.subr.mxu0 %v289
    %2716 = vmatpush1.msra.mxu0 %v288
    %2717 = vmatprep.subr.mxu0 %v286
    %2718 = vmatpush1.msra.mxu0 %v285
    %2719 = vmatprep.subr.mxu0 %v283
    %2720 = vmatpush1.msra.mxu0 %v282
    %2721 = vmatprep.subr.mxu0 %v280
    %2722 = vmatpush1.msra.mxu0 %v279
    %2723 = vmatprep.subr.mxu0 %v277
    %2724 = vmatpush1.msra.mxu0 %v276
    %2725 = vmatprep.subr.mxu0 %v274
    %2726 = vmatpush1.msra.mxu0 %v273
    %2727 = vmatprep.subr.mxu0 %v271
    %2728 = vmatpush1.msra.mxu0 %v270
    %2729 = vmatprep.subr.mxu0 %v268
    %2730 = vmatpush1.msra.mxu0 %v267
    %2731 = vmatprep.subr.mxu0 %v265
    %2732 = vmatpush1.msra.mxu0 %v264
    %2733 = vmatprep.subr.mxu0 %v262
    %2734 = vmatpush1.msra.mxu0 %v261
    %2735 = vmatprep.subr.mxu0 %v259
    %2736 = vmatpush1.msra.mxu0 %v258
    %2737 = vmatprep.subr.mxu0 %v256
    %2738 = vmatpush1.msra.mxu0 %v255
    %2739 = vmatprep.subr.mxu0 %v253
    %2740 = vmatpush1.msra.mxu0 %v252
    %2741 = vmatprep.subr.mxu0 %v250
    %2742 = vmatpush1.msra.mxu0 %v249
    %2743 = vmatprep.subr.mxu0 %v247
    %2744 = vmatpush1.msra.mxu0 %v246
    %2745 = vmatprep.subr.mxu0 %v244
    %2746 = vmatpush1.msra.mxu0 %v243
    %2747 = vmatprep.subr.mxu0 0.0
    %2748 = vmatpush2.msra.mxu0 0.0
    %2749 = vmatprep.subr.mxu0 0.0
    %2750 = vmatpush2.msra.mxu0 0.0
    %2751 = vmatprep.subr.mxu0 0.0
    %2752 = vmatpush2.msra.mxu0 0.0
    %2753 = vmatprep.subr.mxu0 0.0
    %2754 = vmatpush2.msra.mxu0 0.0
    %2755 = vmatprep.subr.mxu0 0.0
    %2756 = vmatpush2.msra.mxu0 0.0
    %2757 = vmatprep.subr.mxu0 0.0
    %2758 = vmatpush2.msra.mxu0 0.0
    %2759 = vmatprep.subr.mxu0 0.0
    %2760 = vmatpush2.msra.mxu0 0.0
    %2761 = vmatprep.subr.mxu0 0.0
    %2762 = vmatpush2.msra.mxu0 0.0
    %2763 = vmatprep.subr.mxu0 0.0
    %2764 = vmatpush2.msra.mxu0 0.0
    %2765 = vmatprep.subr.mxu0 0.0
    %2766 = vmatpush2.msra.mxu0 0.0
    %2767 = vmatprep.subr.mxu0 0.0
    %2768 = vmatpush2.msra.mxu0 0.0
    %2769 = vmatprep.subr.mxu0 0.0
    %2770 = vmatpush2.msra.mxu0 0.0
    %2771 = vmatprep.subr.mxu0 0.0
    %2772 = vmatpush2.msra.mxu0 0.0
    %2773 = vmatprep.subr.mxu0 0.0
    %2774 = vmatpush2.msra.mxu0 0.0
    %2775 = vmatprep.subr.mxu0 0.0
    %2776 = vmatpush2.msra.mxu0 0.0
    %2777 = vmatprep.subr.mxu0 0.0
    %2778 = vmatpush2.msra.mxu0 0.0
    %2779 = vmatprep.mubr.f32.mxu0 0.0
    %2780 = vmatmul.mubr.f32.gmra.mxu0 %v2549
    %v2781 = vpop.f32.mrf.mxu0
    %v2782 = vadd.f32 0.0, %v2781
    %v2783 = vpop.f32.mrf.mxu0
    %v2784 = vadd.f32 0.0, %v2783
    %2785 = vdwg.mxu0
    %2786 = vmatprep.subr.mxu0 0.0
    %2787 = vmatpush1.msra.mxu0 %v290
    %2788 = vmatprep.subr.mxu0 0.0
    %2789 = vmatpush1.msra.mxu0 %v287
    %2790 = vmatprep.subr.mxu0 0.0
    %2791 = vmatpush1.msra.mxu0 %v284
    %2792 = vmatprep.subr.mxu0 0.0
    %2793 = vmatpush1.msra.mxu0 %v281
    %2794 = vmatprep.subr.mxu0 0.0
    %2795 = vmatpush1.msra.mxu0 %v278
    %2796 = vmatprep.subr.mxu0 0.0
    %2797 = vmatpush1.msra.mxu0 %v275
    %2798 = vmatprep.subr.mxu0 0.0
    %2799 = vmatpush1.msra.mxu0 %v272
    %2800 = vmatprep.subr.mxu0 0.0
    %2801 = vmatpush1.msra.mxu0 %v269
    %2802 = vmatprep.subr.mxu0 0.0
    %2803 = vmatpush1.msra.mxu0 %v266
    %2804 = vmatprep.subr.mxu0 0.0
    %2805 = vmatpush1.msra.mxu0 %v263
    %2806 = vmatprep.subr.mxu0 0.0
    %2807 = vmatpush1.msra.mxu0 %v260
    %2808 = vmatprep.subr.mxu0 0.0
    %2809 = vmatpush1.msra.mxu0 %v257
    %2810 = vmatprep.subr.mxu0 0.0
    %2811 = vmatpush1.msra.mxu0 %v254
    %2812 = vmatprep.subr.mxu0 0.0
    %2813 = vmatpush1.msra.mxu0 %v251
    %2814 = vmatprep.subr.mxu0 0.0
    %2815 = vmatpush1.msra.mxu0 %v248
    %2816 = vmatprep.subr.mxu0 0.0
    %2817 = vmatpush1.msra.mxu0 %v245
    %2818 = vmatprep.subr.mxu0 0.0
    %2819 = vmatpush2.msra.mxu0 0.0
    %2820 = vmatprep.subr.mxu0 0.0
    %2821 = vmatpush2.msra.mxu0 0.0
    %2822 = vmatprep.subr.mxu0 0.0
    %2823 = vmatpush2.msra.mxu0 0.0
    %2824 = vmatprep.subr.mxu0 0.0
    %2825 = vmatpush2.msra.mxu0 0.0
    %2826 = vmatprep.subr.mxu0 0.0
    %2827 = vmatpush2.msra.mxu0 0.0
    %2828 = vmatprep.subr.mxu0 0.0
    %2829 = vmatpush2.msra.mxu0 0.0
    %2830 = vmatprep.subr.mxu0 0.0
    %2831 = vmatpush2.msra.mxu0 0.0
    %2832 = vmatprep.subr.mxu0 0.0
    %2833 = vmatpush2.msra.mxu0 0.0
    %2834 = vmatprep.subr.mxu0 0.0
    %2835 = vmatpush2.msra.mxu0 0.0
    %2836 = vmatprep.subr.mxu0 0.0
    %2837 = vmatpush2.msra.mxu0 0.0
    %2838 = vmatprep.subr.mxu0 0.0
    %2839 = vmatpush2.msra.mxu0 0.0
    %2840 = vmatprep.subr.mxu0 0.0
    %2841 = vmatpush2.msra.mxu0 0.0
    %2842 = vmatprep.subr.mxu0 0.0
    %2843 = vmatpush2.msra.mxu0 0.0
    %2844 = vmatprep.subr.mxu0 0.0
    %2845 = vmatpush2.msra.mxu0 0.0
    %2846 = vmatprep.subr.mxu0 0.0
    %2847 = vmatpush2.msra.mxu0 0.0
    %2848 = vmatprep.subr.mxu0 0.0
    %2849 = vmatpush2.msra.mxu0 0.0
    %2850 = vmatprep.mubr.f32.mxu0 0.0
    %2851 = vmatmul.mubr.f32.gmra.mxu0 %v2549
    %v2852 = vpop.f32.mrf.mxu0
    %v2853 = vadd.f32 0.0, %v2852
    %v2854 = vpop.f32.mrf.mxu0
    %2855 = vdwg.mxu0
    %v2856 = vadd.f32 %v207, %v2782
    %v2857 = vadd.f32 %v208, %v2784
    %v2858 = vadd.f32 %v2853, %v215
    %v2859 = vxor.u32 %v2856, 2147483648
    %v2860 = vxor.u32 %v2857, 2147483648
    %v2861 = vmul.f32 %v2859, 1.442695
    %v2862 = vpow.pop %v2861
    %v2863 = vmul.f32 %v2860, 1.442695
    %v2864 = vpow.pop %v2863
    %v2865 = vadd.f32 %v2862, 1.0
    %v2866 = vadd.f32 %v2864, 1.0
    %v2867 = vrcp.pop %v2865
    %v2868 = vmul.f32 1.0, %v2867
    %v2869 = vrcp.pop %v2866
    %v2870 = vmul.f32 1.0, %v2869
    %v2871 = vmul.f32 %v2868, %v2858
    %v2872 = vadd.f32 %v209, %v2871
    %v2873 = vtanh.pop %v2872
    %v2874 = vsub.f32 1.0, %v2870
    %v2875 = vmul.f32 %v2874, %v2873
    %v2876 = vmul.f32 %v2870, %v2549
    %v2877 = vadd.f32 %v2875, %v2876
    %2878 = vmatprep.subr.mxu0 %v352
    %2879 = vmatpush1.msra.mxu0 %v351
    %2880 = vmatprep.subr.mxu0 %v348
    %2881 = vmatpush1.msra.mxu0 %v347
    %2882 = vmatprep.subr.mxu0 %v344
    %2883 = vmatpush1.msra.mxu0 %v343
    %2884 = vmatprep.subr.mxu0 %v340
    %2885 = vmatpush1.msra.mxu0 %v339
    %2886 = vmatprep.subr.mxu0 %v336
    %2887 = vmatpush1.msra.mxu0 %v335
    %2888 = vmatprep.subr.mxu0 %v332
    %2889 = vmatpush1.msra.mxu0 %v331
    %2890 = vmatprep.subr.mxu0 %v328
    %2891 = vmatpush1.msra.mxu0 %v327
    %2892 = vmatprep.subr.mxu0 %v324
    %2893 = vmatpush1.msra.mxu0 %v323
    %2894 = vmatprep.subr.mxu0 %v320
    %2895 = vmatpush1.msra.mxu0 %v319
    %2896 = vmatprep.subr.mxu0 %v316
    %2897 = vmatpush1.msra.mxu0 %v315
    %2898 = vmatprep.subr.mxu0 %v312
    %2899 = vmatpush1.msra.mxu0 %v311
    %2900 = vmatprep.subr.mxu0 %v308
    %2901 = vmatpush1.msra.mxu0 %v307
    %2902 = vmatprep.subr.mxu0 %v304
    %2903 = vmatpush1.msra.mxu0 %v303
    %2904 = vmatprep.subr.mxu0 %v300
    %2905 = vmatpush1.msra.mxu0 %v299
    %2906 = vmatprep.subr.mxu0 %v296
    %2907 = vmatpush1.msra.mxu0 %v295
    %2908 = vmatprep.subr.mxu0 %v292
    %2909 = vmatpush1.msra.mxu0 %v291
    %2910 = vmatprep.subr.mxu0 %v416
    %2911 = vmatpush2.msra.mxu0 %v415
    %2912 = vmatprep.subr.mxu0 %v412
    %2913 = vmatpush2.msra.mxu0 %v411
    %2914 = vmatprep.subr.mxu0 %v408
    %2915 = vmatpush2.msra.mxu0 %v407
    %2916 = vmatprep.subr.mxu0 %v404
    %2917 = vmatpush2.msra.mxu0 %v403
    %2918 = vmatprep.subr.mxu0 %v400
    %2919 = vmatpush2.msra.mxu0 %v399
    %2920 = vmatprep.subr.mxu0 %v396
    %2921 = vmatpush2.msra.mxu0 %v395
    %2922 = vmatprep.subr.mxu0 %v392
    %2923 = vmatpush2.msra.mxu0 %v391
    %2924 = vmatprep.subr.mxu0 %v388
    %2925 = vmatpush2.msra.mxu0 %v387
    %2926 = vmatprep.subr.mxu0 %v384
    %2927 = vmatpush2.msra.mxu0 %v383
    %2928 = vmatprep.subr.mxu0 %v380
    %2929 = vmatpush2.msra.mxu0 %v379
    %2930 = vmatprep.subr.mxu0 %v376
    %2931 = vmatpush2.msra.mxu0 %v375
    %2932 = vmatprep.subr.mxu0 %v372
    %2933 = vmatpush2.msra.mxu0 %v371
    %2934 = vmatprep.subr.mxu0 %v368
    %2935 = vmatpush2.msra.mxu0 %v367
    %2936 = vmatprep.subr.mxu0 %v364
    %2937 = vmatpush2.msra.mxu0 %v363
    %2938 = vmatprep.subr.mxu0 %v360
    %2939 = vmatpush2.msra.mxu0 %v359
    %2940 = vmatprep.subr.mxu0 %v356
    %2941 = vmatpush2.msra.mxu0 %v355
    %2942 = vmatprep.mubr.f32.mxu0 %v2714
    %2943 = vmatmul.mubr.f32.gmra.mxu0 %v2877
    %v2944 = vpop.f32.mrf.mxu0
    %v2945 = vadd.f32 0.0, %v2944
    %v2946 = vpop.f32.mrf.mxu0
    %v2947 = vadd.f32 0.0, %v2946
    %2948 = vdwg.mxu0
    %2949 = vmatprep.subr.mxu0 %v354
    %2950 = vmatpush1.msra.mxu0 %v353
    %2951 = vmatprep.subr.mxu0 %v350
    %2952 = vmatpush1.msra.mxu0 %v349
    %2953 = vmatprep.subr.mxu0 %v346
    %2954 = vmatpush1.msra.mxu0 %v345
    %2955 = vmatprep.subr.mxu0 %v342
    %2956 = vmatpush1.msra.mxu0 %v341
    %2957 = vmatprep.subr.mxu0 %v338
    %2958 = vmatpush1.msra.mxu0 %v337
    %2959 = vmatprep.subr.mxu0 %v334
    %2960 = vmatpush1.msra.mxu0 %v333
    %2961 = vmatprep.subr.mxu0 %v330
    %2962 = vmatpush1.msra.mxu0 %v329
    %2963 = vmatprep.subr.mxu0 %v326
    %2964 = vmatpush1.msra.mxu0 %v325
    %2965 = vmatprep.subr.mxu0 %v322
    %2966 = vmatpush1.msra.mxu0 %v321
    %2967 = vmatprep.subr.mxu0 %v318
    %2968 = vmatpush1.msra.mxu0 %v317
    %2969 = vmatprep.subr.mxu0 %v314
    %2970 = vmatpush1.msra.mxu0 %v313
    %2971 = vmatprep.subr.mxu0 %v310
    %2972 = vmatpush1.msra.mxu0 %v309
    %2973 = vmatprep.subr.mxu0 %v306
    %2974 = vmatpush1.msra.mxu0 %v305
    %2975 = vmatprep.subr.mxu0 %v302
    %2976 = vmatpush1.msra.mxu0 %v301
    %2977 = vmatprep.subr.mxu0 %v298
    %2978 = vmatpush1.msra.mxu0 %v297
    %2979 = vmatprep.subr.mxu0 %v294
    %2980 = vmatpush1.msra.mxu0 %v293
    %2981 = vmatprep.subr.mxu0 %v418
    %2982 = vmatpush2.msra.mxu0 %v417
    %2983 = vmatprep.subr.mxu0 %v414
    %2984 = vmatpush2.msra.mxu0 %v413
    %2985 = vmatprep.subr.mxu0 %v410
    %2986 = vmatpush2.msra.mxu0 %v409
    %2987 = vmatprep.subr.mxu0 %v406
    %2988 = vmatpush2.msra.mxu0 %v405
    %2989 = vmatprep.subr.mxu0 %v402
    %2990 = vmatpush2.msra.mxu0 %v401
    %2991 = vmatprep.subr.mxu0 %v398
    %2992 = vmatpush2.msra.mxu0 %v397
    %2993 = vmatprep.subr.mxu0 %v394
    %2994 = vmatpush2.msra.mxu0 %v393
    %2995 = vmatprep.subr.mxu0 %v390
    %2996 = vmatpush2.msra.mxu0 %v389
    %2997 = vmatprep.subr.mxu0 %v386
    %2998 = vmatpush2.msra.mxu0 %v385
    %2999 = vmatprep.subr.mxu0 %v382
    %3000 = vmatpush2.msra.mxu0 %v381
    %3001 = vmatprep.subr.mxu0 %v378
    %3002 = vmatpush2.msra.mxu0 %v377
    %3003 = vmatprep.subr.mxu0 %v374
    %3004 = vmatpush2.msra.mxu0 %v373
    %3005 = vmatprep.subr.mxu0 %v370
    %3006 = vmatpush2.msra.mxu0 %v369
    %3007 = vmatprep.subr.mxu0 %v366
    %3008 = vmatpush2.msra.mxu0 %v365
    %3009 = vmatprep.subr.mxu0 %v362
    %3010 = vmatpush2.msra.mxu0 %v361
    %3011 = vmatprep.subr.mxu0 %v358
    %3012 = vmatpush2.msra.mxu0 %v357
    %3013 = vmatprep.mubr.f32.mxu0 %v2714
    %3014 = vmatmul.mubr.f32.gmra.mxu0 %v2877
    %v3015 = vpop.f32.mrf.mxu0
    %v3016 = vadd.f32 0.0, %v3015
    %v3017 = vpop.f32.mrf.mxu0
    %v3018 = vadd.f32 0.0, %v3017
    %3019 = vdwg.mxu0
    %v3020 = vadd.f32 %v2945, %v222
    %v3021 = vadd.f32 %v2947, %v226
    %v3022 = vadd.f32 %v3016, %v234
    %v3023 = vadd.f32 %v3018, %v241
    %v3024 = vxor.u32 %v3020, 2147483648
    %v3025 = vxor.u32 %v3021, 2147483648
    %v3026 = vmul.f32 %v3024, 1.442695
    %v3027 = vpow.pop %v3026
    %v3028 = vmul.f32 %v3025, 1.442695
    %v3029 = vpow.pop %v3028
    %v3030 = vadd.f32 %v3027, 1.0
    %v3031 = vadd.f32 %v3029, 1.0
    %v3032 = vrcp.pop %v3030
    %v3033 = vmul.f32 1.0, %v3032
    %v3034 = vrcp.pop %v3031
    %v3035 = vmul.f32 1.0, %v3034
    %v3036 = vmul.f32 %v3033, %v3023
    %v3037 = vadd.f32 %v3022, %v3036
    %v3038 = vtanh.pop %v3037
    %v3039 = vsub.f32 1.0, %v3035
    %v3040 = vmul.f32 %v3039, %v3038
    %v3041 = vmul.f32 %v3035, %v2714
    %v3042 = vadd.f32 %v3040, %v3041
    %v3043 = vld [vmem:[#allocation7] sm:$0xff]
    %v3044 = vld [vmem:[#allocation7 + $0x8] sm:$0xff]
    %v3045 = vld [vmem:[#allocation7 + $0x10] sm:$0xff]
    %v3046 = vld [vmem:[#allocation7 + $0x18] sm:$0xff]
    %v3047 = vld [vmem:[#allocation7 + $0x20] sm:$0xff]
    %v3048 = vld [vmem:[#allocation7 + $0x28] sm:$0xff]
    %v3049 = vld [vmem:[#allocation7 + $0x30] sm:$0xff]
    %v3050 = vld [vmem:[#allocation7 + $0x38] sm:$0xff]
    %v3051 = vld [vmem:[#allocation7 + $0x40] sm:$0xff]
    %v3052 = vld [vmem:[#allocation7 + $0x48] sm:$0xff]
    %v3053 = vld [vmem:[#allocation7 + $0x50] sm:$0xff]
    %v3054 = vld [vmem:[#allocation7 + $0x58] sm:$0xff]
    %v3055 = vld [vmem:[#allocation7 + $0x60] sm:$0xff]
    %v3056 = vld [vmem:[#allocation7 + $0x68] sm:$0xff]
    %v3057 = vld [vmem:[#allocation7 + $0x70] sm:$0xff]
    %v3058 = vld [vmem:[#allocation7 + $0x78] sm:$0xff]
    %v3059 = vld [vmem:[%s10] sm:$0x1]
    %v3061 = vlaneseq
    %v3062 = vshrl.u32 %v3061, 7
    %v3063 = vsub.s32 0, %v3062
    %v3064 = vrot.slane %v3059, %v3063
    %3066 = vmatprep.subr.mxu0 0.0
    %3067 = vmatpush1.msra.mxu0 %v3058
    %3068 = vmatprep.subr.mxu0 0.0
    %3069 = vmatpush1.msra.mxu0 %v3057
    %3070 = vmatprep.subr.mxu0 0.0
    %3071 = vmatpush1.msra.mxu0 %v3056
    %3072 = vmatprep.subr.mxu0 0.0
    %3073 = vmatpush1.msra.mxu0 %v3055
    %3074 = vmatprep.subr.mxu0 0.0
    %3075 = vmatpush1.msra.mxu0 %v3054
    %3076 = vmatprep.subr.mxu0 0.0
    %3077 = vmatpush1.msra.mxu0 %v3053
    %3078 = vmatprep.subr.mxu0 0.0
    %3079 = vmatpush1.msra.mxu0 %v3052
    %3080 = vmatprep.subr.mxu0 0.0
    %3081 = vmatpush1.msra.mxu0 %v3051
    %3082 = vmatprep.subr.mxu0 0.0
    %3083 = vmatpush1.msra.mxu0 %v3050
    %3084 = vmatprep.subr.mxu0 0.0
    %3085 = vmatpush1.msra.mxu0 %v3049
    %3086 = vmatprep.subr.mxu0 0.0
    %3087 = vmatpush1.msra.mxu0 %v3048
    %3088 = vmatprep.subr.mxu0 0.0
    %3089 = vmatpush1.msra.mxu0 %v3047
    %3090 = vmatprep.subr.mxu0 0.0
    %3091 = vmatpush1.msra.mxu0 %v3046
    %3092 = vmatprep.subr.mxu0 0.0
    %3093 = vmatpush1.msra.mxu0 %v3045
    %3094 = vmatprep.subr.mxu0 0.0
    %3095 = vmatpush1.msra.mxu0 %v3044
    %3096 = vmatprep.subr.mxu0 0.0
    %3097 = vmatpush1.msra.mxu0 %v3043
    %3098 = vmatprep.subr.mxu0 0.0
    %3099 = vmatpush2.msra.mxu0 0.0
    %3100 = vmatprep.subr.mxu0 0.0
    %3101 = vmatpush2.msra.mxu0 0.0
    %3102 = vmatprep.subr.mxu0 0.0
    %3103 = vmatpush2.msra.mxu0 0.0
    %3104 = vmatprep.subr.mxu0 0.0
    %3105 = vmatpush2.msra.mxu0 0.0
    %3106 = vmatprep.subr.mxu0 0.0
    %3107 = vmatpush2.msra.mxu0 0.0
    %3108 = vmatprep.subr.mxu0 0.0
    %3109 = vmatpush2.msra.mxu0 0.0
    %3110 = vmatprep.subr.mxu0 0.0
    %3111 = vmatpush2.msra.mxu0 0.0
    %3112 = vmatprep.subr.mxu0 0.0
    %3113 = vmatpush2.msra.mxu0 0.0
    %3114 = vmatprep.subr.mxu0 0.0
    %3115 = vmatpush2.msra.mxu0 0.0
    %3116 = vmatprep.subr.mxu0 0.0
    %3117 = vmatpush2.msra.mxu0 0.0
    %3118 = vmatprep.subr.mxu0 0.0
    %3119 = vmatpush2.msra.mxu0 0.0
    %3120 = vmatprep.subr.mxu0 0.0
    %3121 = vmatpush2.msra.mxu0 0.0
    %3122 = vmatprep.subr.mxu0 0.0
    %3123 = vmatpush2.msra.mxu0 0.0
    %3124 = vmatprep.subr.mxu0 0.0
    %3125 = vmatpush2.msra.mxu0 0.0
    %3126 = vmatprep.subr.mxu0 0.0
    %3127 = vmatpush2.msra.mxu0 0.0
    %3128 = vmatprep.subr.mxu0 0.0
    %3129 = vmatpush2.msra.mxu0 0.0
    %3130 = vmatprep.mubr.f32.mxu0 0.0
    %3131 = vmatmul.mubr.f32.gmra.mxu0 %v3042
    %v3132 = vpop.f32.mrf.mxu0
    %v3133 = vadd.f32 %v3064, %v3132
    %v3134 = vpop.f32.mrf.mxu0
    %3135 = vdwg.mxu0
    %3136 = vst [vmem:[#allocation8] sm:$0x3] %v3133
    // Predicated region
    $region58: #{tpu_custom_call.1} parent=1 // pred_check
      _
    $region59: #{tpu_custom_call.1} parent=1 // pred_check_branch
      %3138 = sbr.rel (0) target = $region61
    $region60: #{tpu_custom_call.1} parent=1 // pred_region
      %s3140 = ssub.s32 32, 32
      %3141 = vsyncadd [#allocation4], %s3140
      %s3143 = sshll.u32 [#allocation8], 4
      %s3144 = int_to_ptr.vmem [resolvable:$true] %s3143
      %3146 = dma.vmem_to_hbm [thread:$0]  %s3144, 32, %s11, [#allocation4]
    $region61: #{tpu_custom_call.1} parent=1 // pred_fallthru
      _
    // Predicated region
    $region62: #{tpu_custom_call.1} parent=1 // pred_check
      _
    $region63: #{tpu_custom_call.1} parent=1 // pred_check_branch
      %3148 = sbr.rel (0) target = $region65
    $region64: #{tpu_custom_call.1} parent=1 // pred_region
      %3149 = dma.done [#allocation4], 32
    $region65: #{tpu_custom_call.1} parent=1 // pred_fallthru
      _
    %3150 = vsyncpa [#allocation3], 1
    %3151 = vsyncpa [#allocation6], 1
    %3152 = vsyncpa [#allocation4], 1

</llo_original>
